<compile_context>
chip_gen: v7x
topology: tpu7x:2x2x1
jax: 0.10.0
libtpu: 0.0.40
codegen_flags: <defaults>
</compile_context>

<pallas_src>
import numpy as np

import jax
import jax.numpy as jnp
from jax import lax
from jax.experimental import pallas as pl
from jax.experimental.pallas import tpu as pltpu

_BN_EPS = 1e-5
_LRN_ALPHA = 1e-4
_LRN_K = 1.0

_VMEM_LIMIT_CACHE = None


def _vmem_limit():
    """Generation-aware VMEM budget: ~75% of physical per-core VMEM
    (~48 MiB on v7x, ~96 MiB on v5e/v6e), conservative fallback otherwise."""
    global _VMEM_LIMIT_CACHE
    if _VMEM_LIMIT_CACHE is None:
        limit = 48 * 1024 * 1024
        try:
            cap = int(pltpu.get_tpu_info().vmem_capacity_bytes)
            if cap > 0:
                limit = min(max((cap * 3) // 4, 32 * 1024 * 1024),
                            100 * 1024 * 1024)
        except Exception:
            pass
        _VMEM_LIMIT_CACHE = limit
    return _VMEM_LIMIT_CACHE


def _round_up(x, m):
    return ((x + m - 1) // m) * m


# --------------------------- static layout plan ----------------------------- #

def _make_layout(H, W):
    """Stage schedule + strided 'lazy-subsampled' flat layout (row stride R,
    column step C) carried through the conv/pool stages."""
    stages = []
    h, w = H, W
    R, C = W, 1
    max_off = 2 * R + 2 * C
    while w >= 7 and h >= 7:
        hc, wc = h - 2, w - 2                            # 3x3 conv, stride 1, no pad
        hp, wp = (hc - 3) // 2 + 1, (wc - 3) // 2 + 1    # 3x3 maxpool, stride 2
        max_off = max(max_off, 2 * R + 2 * C)
        stages.append(dict(R=R, C=C, h_in=h, w_in=w, hc=hc, wc=wc,
                           hp=hp, wp=wp, R_out=2 * R, C_out=2 * C))
        R, C = 2 * R, 2 * C
        h, w = hp, wp
    LBUF = H * W
    LMAX = _round_up(LBUF + max_off, 128)                # per-batch segment length
    PAD = max(_round_up(max_off, 128), 128)              # tail slack for tap reads
    return dict(H=H, W=W, LBUF=LBUF, stages=stages, Rf=R, Cf=C, hf=h, wf=w,
                max_off=max_off, LMAX=LMAX, PAD=PAD)


def _make_plan(B, Cin, Cmid, H, W):
    plan = dict(_make_layout(H, W))
    plan.update(B=B, Cin=Cin, Cmid=Cmid,
                NBIG=B * plan["LMAX"], NTOT=B * plan["LMAX"] + plan["PAD"])
    return plan


def _make_masks(plan):
    """Per-stage {0,1} lane masks marking valid positions of the padded flat
    layout (trace-time constants, lane width NBIG = multiple of 128)."""
    LMAX, NBIG, B = plan["LMAX"], plan["NBIG"], plan["B"]

    def seg(R, C, h, w):
        m = np.zeros((LMAX,), np.float32)
        j = (np.arange(h)[:, None] * R + np.arange(w)[None, :] * C).reshape(-1)
        m[j] = 1.0
        return m

    masks = [seg(plan["W"], 1, plan["H"], plan["W"])]
    for st in plan["stages"]:
        masks.append(seg(st["R_out"], st["C_out"], st["hp"], st["wp"]))
    return [jnp.asarray(np.tile(m, B).reshape(1, NBIG)) for m in masks]


def _lrn_band(Cmid):
    # hoisted compile-time constant band matrix for LocalResponseNorm(Cmid)
    row = np.arange(Cmid)[:, None]
    col = np.arange(Cmid)[None, :]
    band = (col >= row - Cmid // 2) & (col <= row + (Cmid - 1) // 2)
    return jnp.asarray(band.astype(np.float32))


# -------------------------- fused localization head ------------------------- #

def _make_head_kernel(plan):
    B, Cin, Cmid = plan["B"], plan["Cin"], plan["Cmid"]
    H, W = plan["H"], plan["W"]
    LBUF, LMAX, PAD = plan["LBUF"], plan["LMAX"], plan["PAD"]
    NBIG, NTOT = plan["NBIG"], plan["NTOT"]
    GAP = LMAX - LBUF
    stages = plan["stages"]
    n_st = len(stages)

    def kernel(*refs):
        it = iter(refs)
        x_ref = next(it)
        w1_ref, b1_ref, g1_ref, be1_ref, m0_ref = (next(it) for _ in range(5))
        st_refs = [tuple(next(it) for _ in range(5)) for _ in range(n_st)]
        band_ref, wreg_ref, breg_ref = next(it), next(it), next(it)
        o_ref = next(it)
        fa = next(it)        # (Cmid, NTOT) f32 feature buffer (single, reused)
        taps = next(it)      # (9*Cmid, NBIG) f32 conv-tap staging buffer
        # NOTE: taps kept f32 so the 8-row stores stay sublane-tile aligned;
        # it is cast to bf16 once, right at the MXU op.

        # Zero only the lanes that are never written but can be read (pad tail
        # + per-batch gap); everything else is overwritten before use.
        fa[:, pl.ds(NBIG, PAD)] = jnp.zeros((Cmid, PAD), jnp.float32)
        if GAP > 0:
            for b in range(B):
                fa[:, pl.ds(b * LMAX + LBUF, GAP)] = jnp.zeros((Cmid, GAP),
                                                               jnp.float32)

        # ---- 1x1 conv (+bias): ONE batched (Cmid,Cin)@(Cin,B*HW) bf16 matmul
        xall = x_ref[...].astype(jnp.bfloat16)                    # (Cin, B*LBUF)
        y = jnp.dot(w1_ref[...], xall,
                    preferred_element_type=jnp.float32) + b1_ref[...]
        for b in range(B):
            fa[:, pl.ds(b * LMAX, LBUF)] = y[:, b * LBUF:(b + 1) * LBUF]

        # ---- single-pass batch-stat BatchNorm + ReLU, fused with its producer
        def bn_relu_store(v, mask_ref, g_ref, be_ref, count):
            mask = mask_ref[...]                                  # (1, NBIG)
            inv_n = 1.0 / float(count)
            vm = v * mask
            mean = jnp.sum(vm, axis=1, keepdims=True) * inv_n
            ex2 = jnp.sum(vm * v, axis=1, keepdims=True) * inv_n
            var = jnp.maximum(ex2 - mean * mean, 0.0)
            yn = (v - mean) * lax.rsqrt(var + _BN_EPS) * g_ref[...] + be_ref[...]
            fa[:, pl.ds(0, NBIG)] = jnp.maximum(yn, 0.0)

        bn_relu_store(fa[:, pl.ds(0, NBIG)], m0_ref, g1_ref, be1_ref, B * H * W)

        # ---- (conv3x3 -> maxpool3x3/2 -> BN -> ReLU) stages, all in VMEM ----
        for s in range(n_st):
            w3_ref, b3_ref, gs_ref, bes_ref, ms_ref = st_refs[s]
            R, C = stages[s]["R"], stages[s]["C"]
            hp, wp = stages[s]["hp"], stages[s]["wp"]

            # Stage the 9 shifted taps, then ONE K=9*Cmid bf16 MXU matmul.
            for k in range(9):
                dy, dx = k // 3, k % 3
                taps[pl.ds(k * Cmid, Cmid), :] = fa[:, pl.ds(dy * R + dx * C,
                                                             NBIG)]
            conv = jnp.dot(w3_ref[...], taps[...].astype(jnp.bfloat16),
                           preferred_element_type=jnp.float32) + b3_ref[...]
            fa[:, pl.ds(0, NBIG)] = conv

            # maxpool 3x3 / stride 2: 9 shifted VPU max taps (stride-2 folded
            # into the layout change (R,C)->(2R,2C)); result goes straight
            # into the BN+ReLU store (no intermediate store/reload).
            pooled = conv
            for k in range(1, 9):
                dy, dx = k // 3, k % 3
                pooled = jnp.maximum(pooled, fa[:, pl.ds(dy * R + dx * C, NBIG)])
            bn_relu_store(pooled, ms_ref, gs_ref, bes_ref, B * hp * wp)

        # ---- LocalResponseNorm(Cmid) across channels (constant band matrix) -
        a = fa[:, pl.ds(0, NBIG)]
        sq = jnp.dot(band_ref[...], a * a, preferred_element_type=jnp.float32)
        rinv = lax.rsqrt(_LRN_K + (_LRN_ALPHA / Cmid) * sq)
        a = a * rinv * jnp.sqrt(rinv)                     # a * den**-0.75

        # ---- regression Linear: lane-dense weight, VPU multiply + reduce ----
        wreg = wreg_ref[...]                              # (8, Cmid, LMAX)
        breg = breg_ref[...]                              # (8, 1)
        for b in range(B):
            slab = a[:, b * LMAX:(b + 1) * LMAX]          # (Cmid, LMAX)
            prod = wreg * slab[None, :, :]                # (8, Cmid, LMAX)
            r = jnp.sum(jnp.sum(prod, axis=2), axis=1, keepdims=True)   # (8,1)
            o_ref[:, pl.ds(b, 1)] = r + breg

    return kernel


def _head_call(kernel, inputs, plan):
    B, Cmid, NTOT, NBIG = plan["B"], plan["Cmid"], plan["NTOT"], plan["NBIG"]
    in_specs = [pl.BlockSpec(tuple(a.shape), lambda i, nd=a.ndim: (0,) * nd)
                for a in inputs]
    # TODO(synk): on v7x the head runs on a single TensorCore (grid=(1,)); a
    # 2-way batch split with cross-core exchange of BN partial sums would
    # roughly halve head latency there.
    return pl.pallas_call(
        kernel,
        out_shape=jax.ShapeDtypeStruct((8, B), jnp.float32),
        grid=(1,),
        in_specs=in_specs,
        out_specs=pl.BlockSpec((8, B), lambda i: (0, 0)),
        scratch_shapes=[pltpu.VMEM((Cmid, NTOT), jnp.float32),
                        pltpu.VMEM((9 * Cmid, NBIG), jnp.float32)],
        compiler_params=pltpu.CompilerParams(
            dimension_semantics=("arbitrary",),
            vmem_limit_bytes=_vmem_limit()),
    )(*inputs)


# ------------------------- grid_sample + scale kernel ------------------------ #

def _make_sample_kernel(C, Hin, Win):
    def kernel(x_ref, xi_ref, wt_ref, m_ref, o_ref):
        img = x_ref[0]                     # (C*Hin, Win) f32 (f32 kept: bf16
        xi = xi_ref[0]                     #  image would break 1e-4 tolerance)
        wt = wt_ref[0]                     # (4, TP): wx0, wx1, wy0, wy1
        tp = o_ref.shape[2]

        # Column mix on the MXU: Ex[w,p] = wx0*[w==x0] + wx1*[w==x1]
        col = lax.broadcasted_iota(jnp.int32, (Win, tp), 0)
        ex = (jnp.where(col == xi[0:1, :], wt[0:1, :], 0.0)
              + jnp.where(col == xi[1:2, :], wt[1:2, :], 0.0))          # (Win,TP)
        cm = jnp.dot(img, ex, preferred_element_type=jnp.float32)       # (C*Hin,TP)

        # Row mix on the VPU/XLU: out[c,p] = sum_y Ey[y,p] * cm[c,y,p]
        row = lax.broadcasted_iota(jnp.int32, (Hin, tp), 0)
        ey = (jnp.where(row == xi[2:3, :], wt[2:3, :], 0.0)
              + jnp.where(row == xi[3:4, :], wt[3:4, :], 0.0))          # (Hin,TP)
        out = jnp.sum(cm.reshape(C, Hin, tp) * ey[None, :, :], axis=1)  # (C,TP)
        o_ref[0] = out * m_ref[0]
    return kernel


def _pick_sampler_tile(HWout, C, Hin, Win):
    budget = 8 * 1024 * 1024                       # per-tile f32 intermediates
    per_col = 4 * (C * Hin + Win + Hin + C + 8)
    tp = HWout
    for cand in (512, 256, 128):
        if HWout % cand == 0:
            tp = cand
            break
    while tp > 128 and HWout % (tp // 2) == 0 and tp * per_col > budget:
        tp //= 2
    return tp


def _sample_and_scale(x3, xi, wts, m3, C, Hin, Win):
    B = x3.shape[0]
    HWout = xi.shape[2]
    TP = _pick_sampler_tile(HWout, C, Hin, Win)
    # TODO(synk): for very large HWout, add pipeline_mode=pl.Buffered(3) on the
    # small idx/weight/output blocks to hide their per-tile DMAs.
    return pl.pallas_call(
        _make_sample_kernel(C, Hin, Win),
        out_shape=jax.ShapeDtypeStruct((B, C, HWout), jnp.float32),
        grid=(B, HWout // TP),
        in_specs=[
            pl.BlockSpec((1, C * Hin, Win), lambda b, t: (b, 0, 0)),
            pl.BlockSpec((1, 4, TP), lambda b, t: (b, 0, t)),
            pl.BlockSpec((1, 4, TP), lambda b, t: (b, 0, t)),
            pl.BlockSpec((1, 1, 1), lambda b, t: (b, 0, 0)),
        ],
        out_specs=pl.BlockSpec((1, C, TP), lambda b, t: (b, 0, t)),
        compiler_params=pltpu.CompilerParams(
            dimension_semantics=("parallel", "parallel"),
            vmem_limit_bytes=_vmem_limit()),
    )(x3, xi, wts, m3)


# --------------------------------- JAX glue ---------------------------------- #

def _normalize_vec(v, eps=1e-12):
    return v / jnp.maximum(jnp.sqrt(jnp.sum(v * v)), eps)


def _spectral_normalize(theta, u0, v0, eps=1e-12):
    # Tiny sequential per-batch power iteration on 2x3 matrices (u, v carry
    # across batch items exactly as in the PyTorch loop).  Kept in JAX glue.
    def body(carry, Wm):
        u, v = carry

        def it(_, uv):
            u, v = uv
            v = _normalize_vec(Wm.T @ u, eps)
            u = _normalize_vec(Wm @ v, eps)
            return (u, v)

        u, v = lax.fori_loop(0, 4, it, (u, v))
        sigma = jnp.dot(u, Wm @ v)
        return (u, v), Wm / sigma

    _, theta_n = lax.scan(body, (u0, v0), theta)
    return theta_n


def _build_sample_taps(theta, Hin, Win):
    # F.affine_grid + F.grid_sample(bilinear, reflection, align_corners=False)
    # reduced to per-output-pixel column/row tap indices + weights (O(H*W)).
    B = theta.shape[0]
    xs = (2.0 * jnp.arange(Win, dtype=jnp.float32) + 1.0) / Win - 1.0
    ys = (2.0 * jnp.arange(Hin, dtype=jnp.float32) + 1.0) / Hin - 1.0
    t = theta
    gx = (t[:, 0, 0][:, None, None] * xs[None, None, :]
          + t[:, 0, 1][:, None, None] * ys[None, :, None]
          + t[:, 0, 2][:, None, None])
    gy = (t[:, 1, 0][:, None, None] * xs[None, None, :]
          + t[:, 1, 1][:, None, None] * ys[None, :, None]
          + t[:, 1, 2][:, None, None])
    ix = ((gx + 1.0) * Win - 1.0) / 2.0
    iy = ((gy + 1.0) * Hin - 1.0) / 2.0

    def reflect(coord, size):
        min_ = -0.5
        span = float(size)
        c = jnp.abs(coord - min_)
        extra = jnp.mod(c, span)
        flips = jnp.floor(c / span)
        return jnp.where(jnp.mod(flips, 2.0) == 0.0, extra + min_,
                         span - extra + min_)

    ix = jnp.clip(reflect(ix, Win), 0.0, Win - 1.0)
    iy = jnp.clip(reflect(iy, Hin), 0.0, Hin - 1.0)
    x0 = jnp.floor(ix)
    y0 = jnp.floor(iy)
    wx1 = ix - x0
    wy1 = iy - y0
    x0i = jnp.clip(x0, 0, Win - 1).astype(jnp.int32)
    x1i = jnp.clip(x0 + 1.0, 0, Win - 1).astype(jnp.int32)
    y0i = jnp.clip(y0, 0, Hin - 1).astype(jnp.int32)
    y1i = jnp.clip(y0 + 1.0, 0, Hin - 1).astype(jnp.int32)
    HW = Hin * Win
    xi = jnp.stack([x0i, x1i, y0i, y1i], axis=1).reshape(B, 4, HW)
    wts = jnp.stack([1.0 - wx1, wx1, 1.0 - wy1, wy1], axis=1).reshape(B, 4, HW)
    return xi.astype(jnp.int32), wts.astype(jnp.float32)


# ------------------------------- forward pass -------------------------------- #

def spatial_transformer_forward(x, params):
    B, Cin, H, W = x.shape
    Cmid = params["conv1_b"].shape[0]
    plan = _make_plan(B, Cin, Cmid, H, W)
    assert len(params["stages"]) == len(plan["stages"])

    masks = _make_masks(plan)                      # trace-time constants
    band = _lrn_band(Cmid)

    # channel-major (Cin, B*H*W): one tiny XLA transpose so the head does a
    # single batched 1x1-conv matmul instead of B tiny ones.
    xT = jnp.transpose(x.reshape(B, Cin, H * W), (1, 0, 2)).reshape(Cin, B * H * W)

    inputs = [xT, params["conv1_w"], params["conv1_b"],
              params["bn1_g"], params["bn1_b"], masks[0]]
    for s, st in enumerate(params["stages"]):
        inputs += [st["conv_w_stk"], st["conv_b"], st["bn_g"], st["bn_b"],
                   masks[s + 1]]
    inputs += [band, params["reg_w_pad"], params["reg_b_pad"]]

    reg = _head_call(_make_head_kernel(plan), inputs, plan).T      # (B, 8)

    theta = reg[:, 0:6].reshape(B, 2, 3)
    m = jax.nn.sigmoid(reg[:, 6])
    theta = _spectral_normalize(theta, params["u0"], params["v0"])

    xi, wts = _build_sample_taps(theta, H, W)
    out = _sample_and_scale(x.reshape(B, Cin * H, W), xi, wts,
                            m.reshape(B, 1, 1).astype(jnp.float32), Cin, H, W)
    return out.reshape(B, Cin, H, W)


# -------------------------------- parameters --------------------------------- #

def make_params(key, in_ch, mid_ch, input_w, input_h):
    layout = _make_layout(input_h, input_w)
    n_st = len(layout["stages"])
    LMAX = layout["LMAX"]
    ks = jax.random.split(key, 2 * n_st + 8)
    ki = 0

    params = {
        "conv1_w": (0.2 * jax.random.normal(ks[ki], (mid_ch, in_ch), jnp.float32)
                    ).astype(jnp.bfloat16),
        "conv1_b": 0.1 * jax.random.normal(ks[ki + 1], (mid_ch, 1), jnp.float32),
        "bn1_g": jnp.ones((mid_ch, 1), jnp.float32),
        "bn1_b": jnp.zeros((mid_ch, 1), jnp.float32),
    }
    ki += 2

    stages = []
    for _ in range(n_st):
        cw = 0.1 * jax.random.normal(ks[ki], (mid_ch, mid_ch, 3, 3), jnp.float32)
        cb = 0.1 * jax.random.normal(ks[ki + 1], (mid_ch, 1), jnp.float32)
        ki += 2
        stages.append({
            # conv_w_stk[o, (dy*3+dx)*Cmid + i] = W[o, i, dy, dx]  (fused-tap order)
            "conv_w_stk": jnp.transpose(cw, (0, 2, 3, 1)
                                        ).reshape(mid_ch, 9 * mid_ch
                                                  ).astype(jnp.bfloat16),
            "conv_b": cb,
            "bn_g": jnp.ones((mid_ch, 1), jnp.float32),
            "bn_b": jnp.zeros((mid_ch, 1), jnp.float32),
        })
    params["stages"] = stages

    hf, wf, Rf, Cf = layout["hf"], layout["wf"], layout["Rf"], layout["Cf"]
    feat_dim = mid_ch * hf * wf
    # module __init__: regression weight zeroed, bias[0:6] = identity affine
    reg_w = jnp.zeros((7, feat_dim), jnp.float32)
    b6 = 0.1 * jax.random.normal(ks[ki], (1,), jnp.float32); ki += 1
    reg_b = jnp.concatenate([jnp.array([1., 0., 0., 0., 1., 0.], jnp.float32),
                             b6, jnp.zeros((1,), jnp.float32)])
    # pack lane-dense: (8 outputs, Cmid, padded flat layout), zeros off-grid
    j_idx = (np.arange(hf)[:, None] * Rf + np.arange(wf)[None, :] * Cf).reshape(-1)
    wr = reg_w.reshape(7, mid_ch, hf * wf)
    params["reg_w_pad"] = jnp.zeros((8, mid_ch, LMAX), jnp.float32
                                    ).at[:7, :, j_idx].set(wr)
    params["reg_b_pad"] = reg_b.reshape(8, 1)

    u0 = jax.random.normal(ks[ki], (2,), jnp.float32); ki += 1
    v0 = jax.random.normal(ks[ki], (3,), jnp.float32); ki += 1
    params["u0"] = _normalize_vec(u0)
    params["v0"] = _normalize_vec(v0)
    return params, (wf, hf)


# ----------------------------------- main ------------------------------------ #

if __name__ == "__main__":
    key = jax.random.PRNGKey(0)
    kx, kp = jax.random.split(key)
    B, Cin, Cmid, H, W = 2, 4, 8, 16, 16
    x = jax.random.normal(kx, (B, Cin, H, W), jnp.float32)
    params, _ = make_params(kp, Cin, Cmid, W, H)

    fwd = jax.jit(spatial_transformer_forward)
    out = jax.block_until_ready(fwd(x, params))

    # Sanity: with the zero-initialized regression weight (as in the module's
    # __init__), theta is the identity transform, so out == x * sigmoid(bias[6]).
    m_expected = jax.nn.sigmoid(params["reg_b_pad"][6, 0])
    assert out.shape == (B, Cin, H, W)
    assert bool(jnp.allclose(out, x * m_expected, rtol=1e-4, atol=1e-4))
    print("KERNEL_OK")
</pallas_src>

<mosaic_0001>
module attributes {stable_mosaic.version = 11 : i64} {
  func.func @kernel(%arg0: i32, %arg1: memref<4x512xf32, #tpu.memory_space<vmem>>, %arg2: memref<8x4xbf16, #tpu.memory_space<vmem>>, %arg3: memref<8x1xf32, #tpu.memory_space<vmem>>, %arg4: memref<8x1xf32, #tpu.memory_space<vmem>>, %arg5: memref<8x1xf32, #tpu.memory_space<vmem>>, %arg6: memref<1x768xf32, #tpu.memory_space<vmem>>, %arg7: memref<8x72xbf16, #tpu.memory_space<vmem>>, %arg8: memref<8x1xf32, #tpu.memory_space<vmem>>, %arg9: memref<8x1xf32, #tpu.memory_space<vmem>>, %arg10: memref<8x1xf32, #tpu.memory_space<vmem>>, %arg11: memref<1x768xf32, #tpu.memory_space<vmem>>, %arg12: memref<8x8xf32, #tpu.memory_space<vmem>>, %arg13: memref<8x8x384xf32, #tpu.memory_space<vmem>>, %arg14: memref<8x1xf32, #tpu.memory_space<vmem>>, %arg15: memref<8x2xf32, #tpu.memory_space<vmem>>, %arg16: memref<8x896xf32, #tpu.memory_space<vmem>>, %arg17: memref<72x768xf32, #tpu.memory_space<vmem>>) attributes {dimension_semantics = [#tpu.dimension_semantics<arbitrary>], iteration_bounds = array<i64: 1>, scalar_prefetch = 0 : i64, scratch_operands = 2 : i64, tpu.core_type = #tpu.core_type<tc>, window_params = [{pipeline_mode = #tpu.pipeline_mode<synchronous>, transform_indices = @transform_0, window_bounds = array<i64: 4, 512>}, {pipeline_mode = #tpu.pipeline_mode<synchronous>, transform_indices = @transform_1, window_bounds = array<i64: 8, 4>}, {pipeline_mode = #tpu.pipeline_mode<synchronous>, transform_indices = @transform_2, window_bounds = array<i64: 8, 1>}, {pipeline_mode = #tpu.pipeline_mode<synchronous>, transform_indices = @transform_3, window_bounds = array<i64: 8, 1>}, {pipeline_mode = #tpu.pipeline_mode<synchronous>, transform_indices = @transform_4, window_bounds = array<i64: 8, 1>}, {pipeline_mode = #tpu.pipeline_mode<synchronous>, transform_indices = @transform_5, window_bounds = array<i64: 1, 768>}, {pipeline_mode = #tpu.pipeline_mode<synchronous>, transform_indices = @transform_6, window_bounds = array<i64: 8, 72>}, {pipeline_mode = #tpu.pipeline_mode<synchronous>, transform_indices = @transform_7, window_bounds = array<i64: 8, 1>}, {pipeline_mode = #tpu.pipeline_mode<synchronous>, transform_indices = @transform_8, window_bounds = array<i64: 8, 1>}, {pipeline_mode = #tpu.pipeline_mode<synchronous>, transform_indices = @transform_9, window_bounds = array<i64: 8, 1>}, {pipeline_mode = #tpu.pipeline_mode<synchronous>, transform_indices = @transform_10, window_bounds = array<i64: 1, 768>}, {pipeline_mode = #tpu.pipeline_mode<synchronous>, transform_indices = @transform_11, window_bounds = array<i64: 8, 8>}, {pipeline_mode = #tpu.pipeline_mode<synchronous>, transform_indices = @transform_12, window_bounds = array<i64: 8, 8, 384>}, {pipeline_mode = #tpu.pipeline_mode<synchronous>, transform_indices = @transform_13, window_bounds = array<i64: 8, 1>}, {pipeline_mode = #tpu.pipeline_mode<synchronous>, transform_indices = @transform_14, window_bounds = array<i64: 8, 2>}]} {
    %cst = arith.constant 0.000000e+00 : f32
    %0 = vector.broadcast %cst : f32 to vector<8x128xf32>
    %c0 = arith.constant 0 : index
    %c768 = arith.constant 768 : index
    %1 = vector.load %arg16[%c0, %c768] : memref<8x896xf32, #tpu.memory_space<vmem>>, vector<8x128xf32>
    tpu.vector_store %arg16[%c0, %c768], %0 {strides = array<i32>} : memref<8x896xf32, #tpu.memory_space<vmem>>, vector<8x128xf32>,
    %cst_0 = arith.constant 0.000000e+00 : f32
    %2 = vector.broadcast %cst_0 : f32 to vector<8x128xf32>
    %c0_1 = arith.constant 0 : index
    %c256 = arith.constant 256 : index
    %3 = vector.load %arg16[%c0_1, %c256] : memref<8x896xf32, #tpu.memory_space<vmem>>, vector<8x128xf32>
    tpu.vector_store %arg16[%c0_1, %c256], %2 {strides = array<i32>} : memref<8x896xf32, #tpu.memory_space<vmem>>, vector<8x128xf32>,
    %cst_2 = arith.constant 0.000000e+00 : f32
    %4 = vector.broadcast %cst_2 : f32 to vector<8x128xf32>
    %c0_3 = arith.constant 0 : index
    %c640 = arith.constant 640 : index
    %5 = vector.load %arg16[%c0_3, %c640] : memref<8x896xf32, #tpu.memory_space<vmem>>, vector<8x128xf32>
    tpu.vector_store %arg16[%c0_3, %c640], %4 {strides = array<i32>} : memref<8x896xf32, #tpu.memory_space<vmem>>, vector<8x128xf32>,
    %c0_4 = arith.constant 0 : index
    %c0_5 = arith.constant 0 : index
    %6 = vector.load %arg1[%c0_4, %c0_5] : memref<4x512xf32, #tpu.memory_space<vmem>>, vector<4x512xf32>
    %7 = arith.truncf %6 : vector<4x512xf32> to vector<4x512xbf16>
    %c0_6 = arith.constant 0 : index
    %c0_7 = arith.constant 0 : index
    %8 = vector.load %arg2[%c0_6, %c0_7] : memref<8x4xbf16, #tpu.memory_space<vmem>>, vector<8x4xbf16>
    %cst_8 = arith.constant dense<0.000000e+00> : vector<8x512xf32>
    %9 = tpu.matmul %8, %7, %cst_8 {dimension_numbers = #tpu.dot_dimension_numbers<[1], [0], [0], [1], [0, 0, 1, 1], [], []>} : vector<8x4xbf16>, vector<4x512xbf16>, vector<8x512xf32> -> vector<8x512xf32>
    %c0_9 = arith.constant 0 : index
    %c0_10 = arith.constant 0 : index
    %10 = vector.load %arg3[%c0_9, %c0_10] : memref<8x1xf32, #tpu.memory_space<vmem>>, vector<8x1xf32>
    %11 = vector.broadcast %10 : vector<8x1xf32> to vector<8x512xf32>
    %12 = arith.addf %9, %11 : vector<8x512xf32>
    %13 = vector.extract_strided_slice %12 {offsets = [0, 0], sizes = [8, 256], strides = [1, 1]} : vector<8x512xf32> to vector<8x256xf32>
    %c0_11 = arith.constant 0 : index
    %c0_12 = arith.constant 0 : index
    %14 = vector.load %arg16[%c0_11, %c0_12] : memref<8x896xf32, #tpu.memory_space<vmem>>, vector<8x256xf32>
    tpu.vector_store %arg16[%c0_11, %c0_12], %13 {strides = array<i32>} : memref<8x896xf32, #tpu.memory_space<vmem>>, vector<8x256xf32>,
    %15 = vector.extract_strided_slice %12 {offsets = [0, 256], sizes = [8, 256], strides = [1, 1]} : vector<8x512xf32> to vector<8x256xf32>
    %c0_13 = arith.constant 0 : index
    %c384 = arith.constant 384 : index
    %16 = vector.load %arg16[%c0_13, %c384] : memref<8x896xf32, #tpu.memory_space<vmem>>, vector<8x256xf32>
    tpu.vector_store %arg16[%c0_13, %c384], %15 {strides = array<i32>} : memref<8x896xf32, #tpu.memory_space<vmem>>, vector<8x256xf32>,
    %c0_14 = arith.constant 0 : index
    %c0_15 = arith.constant 0 : index
    %17 = vector.load %arg16[%c0_14, %c0_15] : memref<8x896xf32, #tpu.memory_space<vmem>>, vector<8x768xf32>
    %c0_16 = arith.constant 0 : index
    %c0_17 = arith.constant 0 : index
    %18 = vector.load %arg6[%c0_16, %c0_17] : memref<1x768xf32, #tpu.memory_space<vmem>>, vector<1x768xf32>
    %19 = vector.broadcast %18 : vector<1x768xf32> to vector<8x768xf32>
    %20 = arith.mulf %17, %19 : vector<8x768xf32>
    %cst_18 = arith.constant dense<0.000000e+00> : vector<8xf32>
    %21 = vector.multi_reduction <add>, %20, %cst_18 [1] : vector<8x768xf32> to vector<8xf32>
    %22 = vector.shape_cast %21 : vector<8xf32> to vector<8x1xf32>
    %cst_19 = arith.constant 0.001953125 : f32
    %23 = vector.broadcast %cst_19 : f32 to vector<8x1xf32>
    %24 = arith.mulf %22, %23 : vector<8x1xf32>
    %25 = arith.mulf %20, %17 : vector<8x768xf32>
    %cst_20 = arith.constant dense<0.000000e+00> : vector<8xf32>
    %26 = vector.multi_reduction <add>, %25, %cst_20 [1] : vector<8x768xf32> to vector<8xf32>
    %27 = vector.shape_cast %26 : vector<8xf32> to vector<8x1xf32>
    %cst_21 = arith.constant 0.001953125 : f32
    %28 = vector.broadcast %cst_21 : f32 to vector<8x1xf32>
    %29 = arith.mulf %27, %28 : vector<8x1xf32>
    %30 = arith.mulf %24, %24 : vector<8x1xf32>
    %31 = arith.subf %29, %30 : vector<8x1xf32>
    %cst_22 = arith.constant 0.000000e+00 : f32
    %32 = vector.broadcast %cst_22 : f32 to vector<8x1xf32>
    %33 = arith.maximumf %31, %32 : vector<8x1xf32>
    %34 = vector.broadcast %24 : vector<8x1xf32> to vector<8x768xf32>
    %35 = arith.subf %17, %34 : vector<8x768xf32>
    %cst_23 = arith.constant 9.99999974E-6 : f32
    %36 = vector.broadcast %cst_23 : f32 to vector<8x1xf32>
    %37 = arith.addf %33, %36 : vector<8x1xf32>
    %38 = math.rsqrt %37 : vector<8x1xf32>
    %39 = vector.broadcast %38 : vector<8x1xf32> to vector<8x768xf32>
    %40 = arith.mulf %35, %39 : vector<8x768xf32>
    %c0_24 = arith.constant 0 : index
    %c0_25 = arith.constant 0 : index
    %41 = vector.load %arg4[%c0_24, %c0_25] : memref<8x1xf32, #tpu.memory_space<vmem>>, vector<8x1xf32>
    %42 = vector.broadcast %41 : vector<8x1xf32> to vector<8x768xf32>
    %43 = arith.mulf %40, %42 : vector<8x768xf32>
    %c0_26 = arith.constant 0 : index
    %c0_27 = arith.constant 0 : index
    %44 = vector.load %arg5[%c0_26, %c0_27] : memref<8x1xf32, #tpu.memory_space<vmem>>, vector<8x1xf32>
    %45 = vector.broadcast %44 : vector<8x1xf32> to vector<8x768xf32>
    %46 = arith.addf %43, %45 : vector<8x768xf32>
    %cst_28 = arith.constant 0.000000e+00 : f32
    %47 = vector.broadcast %cst_28 : f32 to vector<8x768xf32>
    %48 = arith.maximumf %46, %47 : vector<8x768xf32>
    %c0_29 = arith.constant 0 : index
    %c0_30 = arith.constant 0 : index
    %49 = vector.load %arg16[%c0_29, %c0_30] : memref<8x896xf32, #tpu.memory_space<vmem>>, vector<8x768xf32>
    tpu.vector_store %arg16[%c0_29, %c0_30], %48 {strides = array<i32>} : memref<8x896xf32, #tpu.memory_space<vmem>>, vector<8x768xf32>,
    %c0_31 = arith.constant 0 : index
    %c0_32 = arith.constant 0 : index
    %50 = vector.load %arg16[%c0_31, %c0_32] : memref<8x896xf32, #tpu.memory_space<vmem>>, vector<8x768xf32>
    %c0_33 = arith.constant 0 : index
    %c0_34 = arith.constant 0 : index
    %51 = vector.load %arg17[%c0_33, %c0_34] : memref<72x768xf32, #tpu.memory_space<vmem>>, vector<8x768xf32>
    tpu.vector_store %arg17[%c0_33, %c0_34], %50 {strides = array<i32>} : memref<72x768xf32, #tpu.memory_space<vmem>>, vector<8x768xf32>,
    %c0_35 = arith.constant 0 : index
    %c1 = arith.constant 1 : index
    %52 = vector.load %arg16[%c0_35, %c1] : memref<8x896xf32, #tpu.memory_space<vmem>>, vector<8x768xf32>
    %c8 = arith.constant 8 : index
    %c0_36 = arith.constant 0 : index
    %53 = vector.load %arg17[%c8, %c0_36] : memref<72x768xf32, #tpu.memory_space<vmem>>, vector<8x768xf32>
    tpu.vector_store %arg17[%c8, %c0_36], %52 {strides = array<i32>} : memref<72x768xf32, #tpu.memory_space<vmem>>, vector<8x768xf32>,
    %c0_37 = arith.constant 0 : index
    %c2 = arith.constant 2 : index
    %54 = vector.load %arg16[%c0_37, %c2] : memref<8x896xf32, #tpu.memory_space<vmem>>, vector<8x768xf32>
    %c16 = arith.constant 16 : index
    %c0_38 = arith.constant 0 : index
    %55 = vector.load %arg17[%c16, %c0_38] : memref<72x768xf32, #tpu.memory_space<vmem>>, vector<8x768xf32>
    tpu.vector_store %arg17[%c16, %c0_38], %54 {strides = array<i32>} : memref<72x768xf32, #tpu.memory_space<vmem>>, vector<8x768xf32>,
    %c0_39 = arith.constant 0 : index
    %c16_40 = arith.constant 16 : index
    %56 = vector.load %arg16[%c0_39, %c16_40] : memref<8x896xf32, #tpu.memory_space<vmem>>, vector<8x768xf32>
    %c24 = arith.constant 24 : index
    %c0_41 = arith.constant 0 : index
    %57 = vector.load %arg17[%c24, %c0_41] : memref<72x768xf32, #tpu.memory_space<vmem>>, vector<8x768xf32>
    tpu.vector_store %arg17[%c24, %c0_41], %56 {strides = array<i32>} : memref<72x768xf32, #tpu.memory_space<vmem>>, vector<8x768xf32>,
    %c0_42 = arith.constant 0 : index
    %c17 = arith.constant 17 : index
    %58 = vector.load %arg16[%c0_42, %c17] : memref<8x896xf32, #tpu.memory_space<vmem>>, vector<8x768xf32>
    %c32 = arith.constant 32 : index
    %c0_43 = arith.constant 0 : index
    %59 = vector.load %arg17[%c32, %c0_43] : memref<72x768xf32, #tpu.memory_space<vmem>>, vector<8x768xf32>
    tpu.vector_store %arg17[%c32, %c0_43], %58 {strides = array<i32>} : memref<72x768xf32, #tpu.memory_space<vmem>>, vector<8x768xf32>,
    %c0_44 = arith.constant 0 : index
    %c18 = arith.constant 18 : index
    %60 = vector.load %arg16[%c0_44, %c18] : memref<8x896xf32, #tpu.memory_space<vmem>>, vector<8x768xf32>
    %c40 = arith.constant 40 : index
    %c0_45 = arith.constant 0 : index
    %61 = vector.load %arg17[%c40, %c0_45] : memref<72x768xf32, #tpu.memory_space<vmem>>, vector<8x768xf32>
    tpu.vector_store %arg17[%c40, %c0_45], %60 {strides = array<i32>} : memref<72x768xf32, #tpu.memory_space<vmem>>, vector<8x768xf32>,
    %c0_46 = arith.constant 0 : index
    %c32_47 = arith.constant 32 : index
    %62 = vector.load %arg16[%c0_46, %c32_47] : memref<8x896xf32, #tpu.memory_space<vmem>>, vector<8x768xf32>
    %c48 = arith.constant 48 : index
    %c0_48 = arith.constant 0 : index
    %63 = vector.load %arg17[%c48, %c0_48] : memref<72x768xf32, #tpu.memory_space<vmem>>, vector<8x768xf32>
    tpu.vector_store %arg17[%c48, %c0_48], %62 {strides = array<i32>} : memref<72x768xf32, #tpu.memory_space<vmem>>, vector<8x768xf32>,
    %c0_49 = arith.constant 0 : index
    %c33 = arith.constant 33 : index
    %64 = vector.load %arg16[%c0_49, %c33] : memref<8x896xf32, #tpu.memory_space<vmem>>, vector<8x768xf32>
    %c56 = arith.constant 56 : index
    %c0_50 = arith.constant 0 : index
    %65 = vector.load %arg17[%c56, %c0_50] : memref<72x768xf32, #tpu.memory_space<vmem>>, vector<8x768xf32>
    tpu.vector_store %arg17[%c56, %c0_50], %64 {strides = array<i32>} : memref<72x768xf32, #tpu.memory_space<vmem>>, vector<8x768xf32>,
    %c0_51 = arith.constant 0 : index
    %c34 = arith.constant 34 : index
    %66 = vector.load %arg16[%c0_51, %c34] : memref<8x896xf32, #tpu.memory_space<vmem>>, vector<8x768xf32>
    %c64 = arith.constant 64 : index
    %c0_52 = arith.constant 0 : index
    %67 = vector.load %arg17[%c64, %c0_52] : memref<72x768xf32, #tpu.memory_space<vmem>>, vector<8x768xf32>
    tpu.vector_store %arg17[%c64, %c0_52], %66 {strides = array<i32>} : memref<72x768xf32, #tpu.memory_space<vmem>>, vector<8x768xf32>,
    %c0_53 = arith.constant 0 : index
    %c0_54 = arith.constant 0 : index
    %68 = vector.load %arg7[%c0_53, %c0_54] : memref<8x72xbf16, #tpu.memory_space<vmem>>, vector<8x72xbf16>
    %c0_55 = arith.constant 0 : index
    %c0_56 = arith.constant 0 : index
    %69 = vector.load %arg17[%c0_55, %c0_56] : memref<72x768xf32, #tpu.memory_space<vmem>>, vector<72x768xf32>
    %70 = arith.truncf %69 : vector<72x768xf32> to vector<72x768xbf16>
    %cst_57 = arith.constant dense<0.000000e+00> : vector<8x768xf32>
    %71 = tpu.matmul %68, %70, %cst_57 {dimension_numbers = #tpu.dot_dimension_numbers<[1], [0], [0], [1], [0, 0, 1, 1], [], []>} : vector<8x72xbf16>, vector<72x768xbf16>, vector<8x768xf32> -> vector<8x768xf32>
    %c0_58 = arith.constant 0 : index
    %c0_59 = arith.constant 0 : index
    %72 = vector.load %arg8[%c0_58, %c0_59] : memref<8x1xf32, #tpu.memory_space<vmem>>, vector<8x1xf32>
    %73 = vector.broadcast %72 : vector<8x1xf32> to vector<8x768xf32>
    %74 = arith.addf %71, %73 : vector<8x768xf32>
    %c0_60 = arith.constant 0 : index
    %c0_61 = arith.constant 0 : index
    %75 = vector.load %arg16[%c0_60, %c0_61] : memref<8x896xf32, #tpu.memory_space<vmem>>, vector<8x768xf32>
    tpu.vector_store %arg16[%c0_60, %c0_61], %74 {strides = array<i32>} : memref<8x896xf32, #tpu.memory_space<vmem>>, vector<8x768xf32>,
    %c0_62 = arith.constant 0 : index
    %c1_63 = arith.constant 1 : index
    %76 = vector.load %arg16[%c0_62, %c1_63] : memref<8x896xf32, #tpu.memory_space<vmem>>, vector<8x768xf32>
    %77 = arith.maximumf %74, %76 : vector<8x768xf32>
    %c0_64 = arith.constant 0 : index
    %c2_65 = arith.constant 2 : index
    %78 = vector.load %arg16[%c0_64, %c2_65] : memref<8x896xf32, #tpu.memory_space<vmem>>, vector<8x768xf32>
    %79 = arith.maximumf %77, %78 : vector<8x768xf32>
    %c0_66 = arith.constant 0 : index
    %c16_67 = arith.constant 16 : index
    %80 = vector.load %arg16[%c0_66, %c16_67] : memref<8x896xf32, #tpu.memory_space<vmem>>, vector<8x768xf32>
    %81 = arith.maximumf %79, %80 : vector<8x768xf32>
    %c0_68 = arith.constant 0 : index
    %c17_69 = arith.constant 17 : index
    %82 = vector.load %arg16[%c0_68, %c17_69] : memref<8x896xf32, #tpu.memory_space<vmem>>, vector<8x768xf32>
    %83 = arith.maximumf %81, %82 : vector<8x768xf32>
    %c0_70 = arith.constant 0 : index
    %c18_71 = arith.constant 18 : index
    %84 = vector.load %arg16[%c0_70, %c18_71] : memref<8x896xf32, #tpu.memory_space<vmem>>, vector<8x768xf32>
    %85 = arith.maximumf %83, %84 : vector<8x768xf32>
    %c0_72 = arith.constant 0 : index
    %c32_73 = arith.constant 32 : index
    %86 = vector.load %arg16[%c0_72, %c32_73] : memref<8x896xf32, #tpu.memory_space<vmem>>, vector<8x768xf32>
    %87 = arith.maximumf %85, %86 : vector<8x768xf32>
    %c0_74 = arith.constant 0 : index
    %c33_75 = arith.constant 33 : index
    %88 = vector.load %arg16[%c0_74, %c33_75] : memref<8x896xf32, #tpu.memory_space<vmem>>, vector<8x768xf32>
    %89 = arith.maximumf %87, %88 : vector<8x768xf32>
    %c0_76 = arith.constant 0 : index
    %c34_77 = arith.constant 34 : index
    %90 = vector.load %arg16[%c0_76, %c34_77] : memref<8x896xf32, #tpu.memory_space<vmem>>, vector<8x768xf32>
    %91 = arith.maximumf %89, %90 : vector<8x768xf32>
    %c0_78 = arith.constant 0 : index
    %c0_79 = arith.constant 0 : index
    %92 = vector.load %arg11[%c0_78, %c0_79] : memref<1x768xf32, #tpu.memory_space<vmem>>, vector<1x768xf32>
    %93 = vector.broadcast %92 : vector<1x768xf32> to vector<8x768xf32>
    %94 = arith.mulf %91, %93 : vector<8x768xf32>
    %cst_80 = arith.constant dense<0.000000e+00> : vector<8xf32>
    %95 = vector.multi_reduction <add>, %94, %cst_80 [1] : vector<8x768xf32> to vector<8xf32>
    %96 = vector.shape_cast %95 : vector<8xf32> to vector<8x1xf32>
    %cst_81 = arith.constant 0.013888889 : f32
    %97 = vector.broadcast %cst_81 : f32 to vector<8x1xf32>
    %98 = arith.mulf %96, %97 : vector<8x1xf32>
    %99 = arith.mulf %94, %91 : vector<8x768xf32>
    %cst_82 = arith.constant dense<0.000000e+00> : vector<8xf32>
    %100 = vector.multi_reduction <add>, %99, %cst_82 [1] : vector<8x768xf32> to vector<8xf32>
    %101 = vector.shape_cast %100 : vector<8xf32> to vector<8x1xf32>
    %cst_83 = arith.constant 0.013888889 : f32
    %102 = vector.broadcast %cst_83 : f32 to vector<8x1xf32>
    %103 = arith.mulf %101, %102 : vector<8x1xf32>
    %104 = arith.mulf %98, %98 : vector<8x1xf32>
    %105 = arith.subf %103, %104 : vector<8x1xf32>
    %cst_84 = arith.constant 0.000000e+00 : f32
    %106 = vector.broadcast %cst_84 : f32 to vector<8x1xf32>
    %107 = arith.maximumf %105, %106 : vector<8x1xf32>
    %108 = vector.broadcast %98 : vector<8x1xf32> to vector<8x768xf32>
    %109 = arith.subf %91, %108 : vector<8x768xf32>
    %cst_85 = arith.constant 9.99999974E-6 : f32
    %110 = vector.broadcast %cst_85 : f32 to vector<8x1xf32>
    %111 = arith.addf %107, %110 : vector<8x1xf32>
    %112 = math.rsqrt %111 : vector<8x1xf32>
    %113 = vector.broadcast %112 : vector<8x1xf32> to vector<8x768xf32>
    %114 = arith.mulf %109, %113 : vector<8x768xf32>
    %c0_86 = arith.constant 0 : index
    %c0_87 = arith.constant 0 : index
    %115 = vector.load %arg9[%c0_86, %c0_87] : memref<8x1xf32, #tpu.memory_space<vmem>>, vector<8x1xf32>
    %116 = vector.broadcast %115 : vector<8x1xf32> to vector<8x768xf32>
    %117 = arith.mulf %114, %116 : vector<8x768xf32>
    %c0_88 = arith.constant 0 : index
    %c0_89 = arith.constant 0 : index
    %118 = vector.load %arg10[%c0_88, %c0_89] : memref<8x1xf32, #tpu.memory_space<vmem>>, vector<8x1xf32>
    %119 = vector.broadcast %118 : vector<8x1xf32> to vector<8x768xf32>
    %120 = arith.addf %117, %119 : vector<8x768xf32>
    %cst_90 = arith.constant 0.000000e+00 : f32
    %121 = vector.broadcast %cst_90 : f32 to vector<8x768xf32>
    %122 = arith.maximumf %120, %121 : vector<8x768xf32>
    %c0_91 = arith.constant 0 : index
    %c0_92 = arith.constant 0 : index
    %123 = vector.load %arg16[%c0_91, %c0_92] : memref<8x896xf32, #tpu.memory_space<vmem>>, vector<8x768xf32>
    tpu.vector_store %arg16[%c0_91, %c0_92], %122 {strides = array<i32>} : memref<8x896xf32, #tpu.memory_space<vmem>>, vector<8x768xf32>,
    %c0_93 = arith.constant 0 : index
    %c0_94 = arith.constant 0 : index
    %124 = vector.load %arg16[%c0_93, %c0_94] : memref<8x896xf32, #tpu.memory_space<vmem>>, vector<8x768xf32>
    %c0_95 = arith.constant 0 : index
    %c0_96 = arith.constant 0 : index
    %125 = vector.load %arg12[%c0_95, %c0_96] : memref<8x8xf32, #tpu.memory_space<vmem>>, vector<8x8xf32>
    %126 = arith.mulf %124, %124 : vector<8x768xf32>
    %cst_97 = arith.constant dense<0.000000e+00> : vector<8x768xf32>
    %127 = tpu.matmul %125, %126, %cst_97 {dimension_numbers = #tpu.dot_dimension_numbers<[1], [0], [0], [1], [0, 0, 1, 1], [], []>} : vector<8x8xf32>, vector<8x768xf32>, vector<8x768xf32> -> vector<8x768xf32>
    %cst_98 = arith.constant 1.250000e-05 : f32
    %128 = vector.broadcast %cst_98 : f32 to vector<8x768xf32>
    %129 = arith.mulf %128, %127 : vector<8x768xf32>
    %cst_99 = arith.constant 1.000000e+00 : f32
    %130 = vector.broadcast %cst_99 : f32 to vector<8x768xf32>
    %131 = arith.addf %130, %129 : vector<8x768xf32>
    %132 = math.rsqrt %131 : vector<8x768xf32>
    %133 = arith.mulf %124, %132 : vector<8x768xf32>
    %134 = math.sqrt %132 : vector<8x768xf32>
    %135 = arith.mulf %133, %134 : vector<8x768xf32>
    %c0_100 = arith.constant 0 : index
    %c0_101 = arith.constant 0 : index
    %c0_102 = arith.constant 0 : index
    %136 = vector.load %arg13[%c0_100, %c0_101, %c0_102] : memref<8x8x384xf32, #tpu.memory_space<vmem>>, vector<8x8x384xf32>
    %c0_103 = arith.constant 0 : index
    %c0_104 = arith.constant 0 : index
    %137 = vector.load %arg14[%c0_103, %c0_104] : memref<8x1xf32, #tpu.memory_space<vmem>>, vector<8x1xf32>
    %138 = vector.extract_strided_slice %135 {offsets = [0, 0], sizes = [8, 384], strides = [1, 1]} : vector<8x768xf32> to vector<8x384xf32>
    %139 = vector.shape_cast %138 : vector<8x384xf32> to vector<1x8x384xf32>
    %140 = vector.broadcast %139 : vector<1x8x384xf32> to vector<8x8x384xf32>
    %141 = arith.mulf %136, %140 : vector<8x8x384xf32>
    %cst_105 = arith.constant dense<0.000000e+00> : vector<8x8xf32>
    %142 = vector.multi_reduction <add>, %141, %cst_105 [2] : vector<8x8x384xf32> to vector<8x8xf32>
    %cst_106 = arith.constant dense<0.000000e+00> : vector<8xf32>
    %143 = vector.multi_reduction <add>, %142, %cst_106 [1] : vector<8x8xf32> to vector<8xf32>
    %144 = vector.shape_cast %143 : vector<8xf32> to vector<8x1xf32>
    %145 = arith.addf %144, %137 : vector<8x1xf32>
    %c0_107 = arith.constant 0 : index
    %c0_108 = arith.constant 0 : index
    %146 = vector.load %arg15[%c0_107, %c0_108] : memref<8x2xf32, #tpu.memory_space<vmem>>, vector<8x1xf32>
    tpu.vector_store %arg15[%c0_107, %c0_108], %145 {strides = array<i32>} : memref<8x2xf32, #tpu.memory_space<vmem>>, vector<8x1xf32>,
    %147 = vector.extract_strided_slice %135 {offsets = [0, 384], sizes = [8, 384], strides = [1, 1]} : vector<8x768xf32> to vector<8x384xf32>
    %148 = vector.shape_cast %147 : vector<8x384xf32> to vector<1x8x384xf32>
    %149 = vector.broadcast %148 : vector<1x8x384xf32> to vector<8x8x384xf32>
    %150 = arith.mulf %136, %149 : vector<8x8x384xf32>
    %cst_109 = arith.constant dense<0.000000e+00> : vector<8x8xf32>
    %151 = vector.multi_reduction <add>, %150, %cst_109 [2] : vector<8x8x384xf32> to vector<8x8xf32>
    %cst_110 = arith.constant dense<0.000000e+00> : vector<8xf32>
    %152 = vector.multi_reduction <add>, %151, %cst_110 [1] : vector<8x8xf32> to vector<8xf32>
    %153 = vector.shape_cast %152 : vector<8xf32> to vector<8x1xf32>
    %154 = arith.addf %153, %137 : vector<8x1xf32>
    %c0_111 = arith.constant 0 : index
    %c1_112 = arith.constant 1 : index
    %155 = vector.load %arg15[%c0_111, %c1_112] : memref<8x2xf32, #tpu.memory_space<vmem>>, vector<8x1xf32>
    tpu.vector_store %arg15[%c0_111, %c1_112], %154 {strides = array<i32>} : memref<8x2xf32, #tpu.memory_space<vmem>>, vector<8x1xf32>,
    return
  }
  func.func @transform_0(%arg0: i32) -> (i32, i32) {
    %c0_i32 = arith.constant 0 : i32
    %c0_i32_0 = arith.constant 0 : i32
    %c0_i32_1 = arith.constant 0 : i32
    return %c0_i32, %c0_i32_0 : i32, i32
  }
  func.func @transform_1(%arg0: i32) -> (i32, i32) {
    %c0_i32 = arith.constant 0 : i32
    %c0_i32_0 = arith.constant 0 : i32
    %c0_i32_1 = arith.constant 0 : i32
    return %c0_i32, %c0_i32_0 : i32, i32
  }
  func.func @transform_2(%arg0: i32) -> (i32, i32) {
    %c0_i32 = arith.constant 0 : i32
    %c0_i32_0 = arith.constant 0 : i32
    %c0_i32_1 = arith.constant 0 : i32
    return %c0_i32, %c0_i32_0 : i32, i32
  }
  func.func @transform_3(%arg0: i32) -> (i32, i32) {
    %c0_i32 = arith.constant 0 : i32
    %c0_i32_0 = arith.constant 0 : i32
    %c0_i32_1 = arith.constant 0 : i32
    return %c0_i32, %c0_i32_0 : i32, i32
  }
  func.func @transform_4(%arg0: i32) -> (i32, i32) {
    %c0_i32 = arith.constant 0 : i32
    %c0_i32_0 = arith.constant 0 : i32
    %c0_i32_1 = arith.constant 0 : i32
    return %c0_i32, %c0_i32_0 : i32, i32
  }
  func.func @transform_5(%arg0: i32) -> (i32, i32) {
    %c0_i32 = arith.constant 0 : i32
    %c0_i32_0 = arith.constant 0 : i32
    %c0_i32_1 = arith.constant 0 : i32
    return %c0_i32, %c0_i32_0 : i32, i32
  }
  func.func @transform_6(%arg0: i32) -> (i32, i32) {
    %c0_i32 = arith.constant 0 : i32
    %c0_i32_0 = arith.constant 0 : i32
    %c0_i32_1 = arith.constant 0 : i32
    return %c0_i32, %c0_i32_0 : i32, i32
  }
  func.func @transform_7(%arg0: i32) -> (i32, i32) {
    %c0_i32 = arith.constant 0 : i32
    %c0_i32_0 = arith.constant 0 : i32
    %c0_i32_1 = arith.constant 0 : i32
    return %c0_i32, %c0_i32_0 : i32, i32
  }
  func.func @transform_8(%arg0: i32) -> (i32, i32) {
    %c0_i32 = arith.constant 0 : i32
    %c0_i32_0 = arith.constant 0 : i32
    %c0_i32_1 = arith.constant 0 : i32
    return %c0_i32, %c0_i32_0 : i32, i32
  }
  func.func @transform_9(%arg0: i32) -> (i32, i32) {
    %c0_i32 = arith.constant 0 : i32
    %c0_i32_0 = arith.constant 0 : i32
    %c0_i32_1 = arith.constant 0 : i32
    return %c0_i32, %c0_i32_0 : i32, i32
  }
  func.func @transform_10(%arg0: i32) -> (i32, i32) {
    %c0_i32 = arith.constant 0 : i32
    %c0_i32_0 = arith.constant 0 : i32
    %c0_i32_1 = arith.constant 0 : i32
    return %c0_i32, %c0_i32_0 : i32, i32
  }
  func.func @transform_11(%arg0: i32) -> (i32, i32) {
    %c0_i32 = arith.constant 0 : i32
    %c0_i32_0 = arith.constant 0 : i32
    %c0_i32_1 = arith.constant 0 : i32
    return %c0_i32, %c0_i32_0 : i32, i32
  }
  func.func @transform_12(%arg0: i32) -> (i32, i32, i32) {
    %c0_i32 = arith.constant 0 : i32
    %c0_i32_0 = arith.constant 0 : i32
    %c0_i32_1 = arith.constant 0 : i32
    %c0_i32_2 = arith.constant 0 : i32
    return %c0_i32, %c0_i32_0, %c0_i32_1 : i32, i32, i32
  }
  func.func @transform_13(%arg0: i32) -> (i32, i32) {
    %c0_i32 = arith.constant 0 : i32
    %c0_i32_0 = arith.constant 0 : i32
    %c0_i32_1 = arith.constant 0 : i32
    return %c0_i32, %c0_i32_0 : i32, i32
  }
  func.func @transform_14(%arg0: i32) -> (i32, i32) {
    %c0_i32 = arith.constant 0 : i32
    %c0_i32_0 = arith.constant 0 : i32
    %c0_i32_1 = arith.constant 0 : i32
    return %c0_i32, %c0_i32_0 : i32, i32
  }
}

module attributes {stable_mosaic.version = 11 : i64} {
  func.func @kernel(%arg0: i32, %arg1: i32, %arg2: memref<1x64x16xf32, #tpu.memory_space<vmem>>, %arg3: memref<1x4x256xi32, #tpu.memory_space<vmem>>, %arg4: memref<1x4x256xf32, #tpu.memory_space<vmem>>, %arg5: memref<1x1x1xf32, #tpu.memory_space<vmem>>, %arg6: memref<1x4x256xf32, #tpu.memory_space<vmem>>) attributes {dimension_semantics = [#tpu.dimension_semantics<parallel>, #tpu.dimension_semantics<parallel>], iteration_bounds = array<i64: 2, 1>, scalar_prefetch = 0 : i64, scratch_operands = 0 : i64, tpu.core_type = #tpu.core_type<tc>, window_params = [{transform_indices = @transform_0, window_bounds = array<i64: 1, 64, 16>}, {transform_indices = @transform_1, window_bounds = array<i64: 1, 4, 256>}, {transform_indices = @transform_2, window_bounds = array<i64: 1, 4, 256>}, {transform_indices = @transform_3, window_bounds = array<i64: 1, 1, 1>}, {transform_indices = @transform_4, window_bounds = array<i64: 1, 4, 256>}]} {
    %c0 = arith.constant 0 : index
    %c0_0 = arith.constant 0 : index
    %c0_1 = arith.constant 0 : index
    %0 = vector.load %arg2[%c0, %c0_0, %c0_1] : memref<1x64x16xf32, #tpu.memory_space<vmem>>, vector<1x64x16xf32>
    %1 = vector.shape_cast %0 : vector<1x64x16xf32> to vector<64x16xf32>
    %c0_2 = arith.constant 0 : index
    %c0_3 = arith.constant 0 : index
    %c0_4 = arith.constant 0 : index
    %2 = vector.load %arg3[%c0_2, %c0_3, %c0_4] : memref<1x4x256xi32, #tpu.memory_space<vmem>>, vector<1x4x256xi32>
    %3 = vector.shape_cast %2 : vector<1x4x256xi32> to vector<4x256xi32>
    %c0_5 = arith.constant 0 : index
    %c0_6 = arith.constant 0 : index
    %c0_7 = arith.constant 0 : index
    %4 = vector.load %arg4[%c0_5, %c0_6, %c0_7] : memref<1x4x256xf32, #tpu.memory_space<vmem>>, vector<1x4x256xf32>
    %5 = vector.shape_cast %4 : vector<1x4x256xf32> to vector<4x256xf32>
    %6 = tpu.iota {dimensions = array<i32: 0>} : vector<16x256xi32>
    %7 = vector.extract_strided_slice %3 {offsets = [0, 0], sizes = [1, 256], strides = [1, 1]} : vector<4x256xi32> to vector<1x256xi32>
    %8 = vector.broadcast %7 : vector<1x256xi32> to vector<16x256xi32>
    %9 = arith.cmpi eq, %6, %8 : vector<16x256xi32>
    %10 = vector.extract_strided_slice %5 {offsets = [0, 0], sizes = [1, 256], strides = [1, 1]} : vector<4x256xf32> to vector<1x256xf32>
    %cst = arith.constant 0.000000e+00 : f32
    %11 = vector.shape_cast %10 : vector<1x256xf32> to vector<1x256xf32>
    %12 = vector.broadcast %11 : vector<1x256xf32> to vector<16x256xf32>
    %13 = vector.broadcast %cst : f32 to vector<16x256xf32>
    %14 = arith.select %9, %12, %13 : vector<16x256xi1>, vector<16x256xf32>
    %15 = vector.extract_strided_slice %3 {offsets = [1, 0], sizes = [1, 256], strides = [1, 1]} : vector<4x256xi32> to vector<1x256xi32>
    %16 = vector.broadcast %15 : vector<1x256xi32> to vector<16x256xi32>
    %17 = arith.cmpi eq, %6, %16 : vector<16x256xi32>
    %18 = vector.extract_strided_slice %5 {offsets = [1, 0], sizes = [1, 256], strides = [1, 1]} : vector<4x256xf32> to vector<1x256xf32>
    %cst_8 = arith.constant 0.000000e+00 : f32
    %19 = vector.shape_cast %18 : vector<1x256xf32> to vector<1x256xf32>
    %20 = vector.broadcast %19 : vector<1x256xf32> to vector<16x256xf32>
    %21 = vector.broadcast %cst_8 : f32 to vector<16x256xf32>
    %22 = arith.select %17, %20, %21 : vector<16x256xi1>, vector<16x256xf32>
    %23 = arith.addf %14, %22 : vector<16x256xf32>
    %cst_9 = arith.constant dense<0.000000e+00> : vector<64x256xf32>
    %24 = tpu.matmul %1, %23, %cst_9 {dimension_numbers = #tpu.dot_dimension_numbers<[1], [0], [0], [1], [0, 0, 1, 1], [], []>} : vector<64x16xf32>, vector<16x256xf32>, vector<64x256xf32> -> vector<64x256xf32>
    %25 = tpu.iota {dimensions = array<i32: 0>} : vector<16x256xi32>
    %26 = vector.extract_strided_slice %3 {offsets = [2, 0], sizes = [1, 256], strides = [1, 1]} : vector<4x256xi32> to vector<1x256xi32>
    %27 = vector.broadcast %26 : vector<1x256xi32> to vector<16x256xi32>
    %28 = arith.cmpi eq, %25, %27 : vector<16x256xi32>
    %29 = vector.extract_strided_slice %5 {offsets = [2, 0], sizes = [1, 256], strides = [1, 1]} : vector<4x256xf32> to vector<1x256xf32>
    %cst_10 = arith.constant 0.000000e+00 : f32
    %30 = vector.shape_cast %29 : vector<1x256xf32> to vector<1x256xf32>
    %31 = vector.broadcast %30 : vector<1x256xf32> to vector<16x256xf32>
    %32 = vector.broadcast %cst_10 : f32 to vector<16x256xf32>
    %33 = arith.select %28, %31, %32 : vector<16x256xi1>, vector<16x256xf32>
    %34 = vector.extract_strided_slice %3 {offsets = [3, 0], sizes = [1, 256], strides = [1, 1]} : vector<4x256xi32> to vector<1x256xi32>
    %35 = vector.broadcast %34 : vector<1x256xi32> to vector<16x256xi32>
    %36 = arith.cmpi eq, %25, %35 : vector<16x256xi32>
    %37 = vector.extract_strided_slice %5 {offsets = [3, 0], sizes = [1, 256], strides = [1, 1]} : vector<4x256xf32> to vector<1x256xf32>
    %cst_11 = arith.constant 0.000000e+00 : f32
    %38 = vector.shape_cast %37 : vector<1x256xf32> to vector<1x256xf32>
    %39 = vector.broadcast %38 : vector<1x256xf32> to vector<16x256xf32>
    %40 = vector.broadcast %cst_11 : f32 to vector<16x256xf32>
    %41 = arith.select %36, %39, %40 : vector<16x256xi1>, vector<16x256xf32>
    %42 = arith.addf %33, %41 : vector<16x256xf32>
    %43 = vector.shape_cast %24 : vector<64x256xf32> to vector<4x16x256xf32>
    %44 = vector.shape_cast %42 : vector<16x256xf32> to vector<1x16x256xf32>
    %45 = vector.broadcast %44 : vector<1x16x256xf32> to vector<4x16x256xf32>
    %46 = arith.mulf %43, %45 : vector<4x16x256xf32>
    %cst_12 = arith.constant dense<0.000000e+00> : vector<4x256xf32>
    %47 = vector.multi_reduction <add>, %46, %cst_12 [1] : vector<4x16x256xf32> to vector<4x256xf32>
    %c0_13 = arith.constant 0 : index
    %c0_14 = arith.constant 0 : index
    %c0_15 = arith.constant 0 : index
    %48 = vector.load %arg5[%c0_13, %c0_14, %c0_15] : memref<1x1x1xf32, #tpu.memory_space<vmem>>, vector<1x1x1xf32>
    %49 = vector.shape_cast %48 : vector<1x1x1xf32> to vector<1x1xf32>
    %50 = vector.broadcast %49 : vector<1x1xf32> to vector<4x256xf32>
    %51 = arith.mulf %47, %50 : vector<4x256xf32>
    %c0_16 = arith.constant 0 : index
    %c0_17 = arith.constant 0 : index
    %c0_18 = arith.constant 0 : index
    %52 = vector.load %arg6[%c0_16, %c0_17, %c0_18] : memref<1x4x256xf32, #tpu.memory_space<vmem>>, vector<1x4x256xf32>
    %53 = vector.shape_cast %52 : vector<1x4x256xf32> to vector<4x256xf32>
    %54 = vector.shape_cast %51 : vector<4x256xf32> to vector<1x4x256xf32>
    tpu.vector_store %arg6[%c0_16, %c0_17, %c0_18], %54 {strides = array<i32>} : memref<1x4x256xf32, #tpu.memory_space<vmem>>, vector<1x4x256xf32>,
    return
  }
  func.func @transform_0(%arg0: i32, %arg1: i32) -> (i32, i32, i32) {
    %c0_i32 = arith.constant 0 : i32
    %c0_i32_0 = arith.constant 0 : i32
    %c0_i32_1 = arith.constant 0 : i32
    return %arg0, %c0_i32, %c0_i32_0 : i32, i32, i32
  }
  func.func @transform_1(%arg0: i32, %arg1: i32) -> (i32, i32, i32) {
    %c0_i32 = arith.constant 0 : i32
    %c0_i32_0 = arith.constant 0 : i32
    return %arg0, %c0_i32, %arg1 : i32, i32, i32
  }
  func.func @transform_2(%arg0: i32, %arg1: i32) -> (i32, i32, i32) {
    %c0_i32 = arith.constant 0 : i32
    %c0_i32_0 = arith.constant 0 : i32
    return %arg0, %c0_i32, %arg1 : i32, i32, i32
  }
  func.func @transform_3(%arg0: i32, %arg1: i32) -> (i32, i32, i32) {
    %c0_i32 = arith.constant 0 : i32
    %c0_i32_0 = arith.constant 0 : i32
    %c0_i32_1 = arith.constant 0 : i32
    return %arg0, %c0_i32, %c0_i32_0 : i32, i32, i32
  }
  func.func @transform_4(%arg0: i32, %arg1: i32) -> (i32, i32, i32) {
    %c0_i32 = arith.constant 0 : i32
    %c0_i32_0 = arith.constant 0 : i32
    return %arg0, %c0_i32, %arg1 : i32, i32, i32
  }
}

</mosaic_0001>

<llo_original>
// kernel: custom-call
$region0: #{custom-call}
  %s0 = inlined_call_operand.vmem [shape: f32[2,2,3], index: 0, kind: output, shape index: {}]

// kernel: spatial_transformer_forward.3
$region0: #{spatial_transformer_forward.3}
  #allocation0 [shape = 'u32[]', space=smem, size = 0x4, offset = 0x4, fixed_abs, tag = 'smem constant byte address 0x4 - core index']
  #allocation1 [shape = 'u32[144,128]{1,0:T(1,128)}', space=vmem, size = 0x12000, scoped, tag = 'internal scratch']
  %s0 = inlined_call_operand.vmem [shape: f32[2,64,16], index: 0, kind: input, shape index: {}]
  %s1 = inlined_call_operand.vmem [shape: s32[2,4,256], index: 1, kind: input, shape index: {}]
  %s2 = inlined_call_operand.vmem [shape: f32[2,4,256], index: 2, kind: input, shape index: {}]
  %s3 = inlined_call_operand.vmem [shape: f32[2,1,1], index: 3, kind: input, shape index: {}]
  %s4 = inlined_call_operand.vmem [shape: f32[2,4,256], index: 4, kind: output, shape index: {}]
  %s5 = sld [smem:[#allocation0]]
  $region49: #{spatial_transformer_forward.3} parent=0
    _
  %s7 = ssub.s32 1, %s5
  %s8 = scalar_select 0, %s7, %s5
  loop: start=0, step=1, limit=4
  $region2: #{spatial_transformer_forward.3} parent=0 // loop_pre_header
    _
  $region3: #{spatial_transformer_forward.3} parent=0 // loop_header
    %s10 = sphi 0, %s14
    %p11 = scmp.ge.s32.totalorder %s10, 4
    %s17 = sphi 0, %s29
    %s18 = sphi 0, %s25
    %s19 = sphi 0, %s17
    %s20 = sphi 0, %s18
    %s21 = sphi 0, %s19
    %s22 = sphi 0, %s20
    %s32 = sphi 0, %s34
    %s35 = sphi 0, %s32
    %s36 = sphi 0, %s35
    %s52 = sphi 0, %s36
    %s60 = sphi 0, %s62
    %s63 = sphi 0, %s60
    %s64 = sphi 0, %s63
    %s80 = sphi 0, %s64
    %s88 = sphi 0, %s90
    %s91 = sphi 0, %s88
    %s92 = sphi 0, %s91
    %s108 = sphi 0, %s92
    %s114 = sphi 0, %s116
    %s117 = sphi 0, %s114
    %s118 = sphi 0, %s117
    %s134 = sphi 0, %s118
    %s142 = sphi 0, %s144
    %s145 = sphi 0, %s142
    %s146 = sphi 0, %s145
    %s162 = sphi 0, %s146
  $region4: #{spatial_transformer_forward.3} parent=0 // loop_header_branch
    %13 = sbr.rel (%p11) target = $region8
  $region5: #{spatial_transformer_forward.3} parent=0 // loop_body
    %s15 = ssub.s32 %s10, 1
    %s16 = ssub.s32 %s10, 2
    %s23 = sadd.s32 1, %s18
    %p24 = scmp.ge.s32.totalorder %s23, 1
    %s25 = scalar_select %p24, 0, %s23
    %s26 = sadd.s32 1, %s17
    %s27 = scalar_select %p24, %s26, %s17
    %p28 = scmp.ge.s32.totalorder %s27, 2
    %s29 = scalar_select %p28, 0, %s27
    %s30 = ssub.s32 %s17, %s29
    %p31 = scmp.eq.s32.totalorder %s30, 0
    %s33 = sadd.s32 %s32, 1
    %s34 = scalar_select %p31, %s32, %s33
    %p37 = pneg %p31
    %p38 = scmp.eq.s32.totalorder %s10, 1
    %p39 = por %p37, %p38
    %p40 = scmp.ne.s32.totalorder %s32, %s35
    %p41 = scmp.eq.s32.totalorder %s10, 0
    %p42 = por %p40, %p41
    %p43 = scmp.ne.s32.totalorder %s32, %s35
    %p44 = scmp.eq.s32.totalorder %s15, 1
    %p45 = por %p43, %p44
    %p46 = scmp.ne.s32.totalorder %s35, %s36
    %p47 = scmp.eq.s32.totalorder %s15, 0
    %p48 = por %p46, %p47
    %p49 = scmp.ne.s32.totalorder %s35, %s36
    %p50 = scmp.eq.s32.totalorder %s16, 1
    %p51 = por %p49, %p50
    %p53 = scmp.ne.s32.totalorder %s36, %s52
    %p54 = scmp.eq.s32.totalorder %s16, 0
    %p55 = por %p53, %p54
    %s56 = ssub.s32 %s17, %s29
    %s57 = ssub.s32 %s18, %s25
    %s58 = sor.u32 %s56, %s57
    %p59 = scmp.eq.s32.totalorder %s58, 0
    %s61 = sadd.s32 %s60, 1
    %s62 = scalar_select %p59, %s60, %s61
    %p65 = pneg %p59
    %p66 = scmp.eq.s32.totalorder %s10, 1
    %p67 = por %p65, %p66
    %p68 = scmp.ne.s32.totalorder %s60, %s63
    %p69 = scmp.eq.s32.totalorder %s10, 0
    %p70 = por %p68, %p69
    %p71 = scmp.ne.s32.totalorder %s60, %s63
    %p72 = scmp.eq.s32.totalorder %s15, 1
    %p73 = por %p71, %p72
    %p74 = scmp.ne.s32.totalorder %s63, %s64
    %p75 = scmp.eq.s32.totalorder %s15, 0
    %p76 = por %p74, %p75
    %p77 = scmp.ne.s32.totalorder %s63, %s64
    %p78 = scmp.eq.s32.totalorder %s16, 1
    %p79 = por %p77, %p78
    %p81 = scmp.ne.s32.totalorder %s64, %s80
    %p82 = scmp.eq.s32.totalorder %s16, 0
    %p83 = por %p81, %p82
    %s84 = ssub.s32 %s17, %s29
    %s85 = ssub.s32 %s18, %s25
    %s86 = sor.u32 %s84, %s85
    %p87 = scmp.eq.s32.totalorder %s86, 0
    %s89 = sadd.s32 %s88, 1
    %s90 = scalar_select %p87, %s88, %s89
    %p93 = pneg %p87
    %p94 = scmp.eq.s32.totalorder %s10, 1
    %p95 = por %p93, %p94
    %p96 = scmp.ne.s32.totalorder %s88, %s91
    %p97 = scmp.eq.s32.totalorder %s10, 0
    %p98 = por %p96, %p97
    %p99 = scmp.ne.s32.totalorder %s88, %s91
    %p100 = scmp.eq.s32.totalorder %s15, 1
    %p101 = por %p99, %p100
    %p102 = scmp.ne.s32.totalorder %s91, %s92
    %p103 = scmp.eq.s32.totalorder %s15, 0
    %p104 = por %p102, %p103
    %p105 = scmp.ne.s32.totalorder %s91, %s92
    %p106 = scmp.eq.s32.totalorder %s16, 1
    %p107 = por %p105, %p106
    %p109 = scmp.ne.s32.totalorder %s92, %s108
    %p110 = scmp.eq.s32.totalorder %s16, 0
    %p111 = por %p109, %p110
    %s112 = ssub.s32 %s17, %s29
    %p113 = scmp.eq.s32.totalorder %s112, 0
    %s115 = sadd.s32 %s114, 1
    %s116 = scalar_select %p113, %s114, %s115
    %p119 = pneg %p113
    %p120 = scmp.eq.s32.totalorder %s10, 1
    %p121 = por %p119, %p120
    %p122 = scmp.ne.s32.totalorder %s114, %s117
    %p123 = scmp.eq.s32.totalorder %s10, 0
    %p124 = por %p122, %p123
    %p125 = scmp.ne.s32.totalorder %s114, %s117
    %p126 = scmp.eq.s32.totalorder %s15, 1
    %p127 = por %p125, %p126
    %p128 = scmp.ne.s32.totalorder %s117, %s118
    %p129 = scmp.eq.s32.totalorder %s15, 0
    %p130 = por %p128, %p129
    %p131 = scmp.ne.s32.totalorder %s117, %s118
    %p132 = scmp.eq.s32.totalorder %s16, 1
    %p133 = por %p131, %p132
    %p135 = scmp.ne.s32.totalorder %s118, %s134
    %p136 = scmp.eq.s32.totalorder %s16, 0
    %p137 = por %p135, %p136
    %s138 = ssub.s32 %s17, %s29
    %s139 = ssub.s32 %s18, %s25
    %s140 = sor.u32 %s138, %s139
    %p141 = scmp.eq.s32.totalorder %s140, 0
    %s143 = sadd.s32 %s142, 1
    %s144 = scalar_select %p141, %s142, %s143
    %p147 = pneg %p141
    %p148 = scmp.eq.s32.totalorder %s10, 1
    %p149 = por %p147, %p148
    %p150 = scmp.ne.s32.totalorder %s142, %s145
    %p151 = scmp.eq.s32.totalorder %s10, 0
    %p152 = por %p150, %p151
    %p153 = scmp.ne.s32.totalorder %s142, %s145
    %p154 = scmp.eq.s32.totalorder %s15, 1
    %p155 = por %p153, %p154
    %p156 = scmp.ne.s32.totalorder %s145, %s146
    %p157 = scmp.eq.s32.totalorder %s15, 0
    %p158 = por %p156, %p157
    %p159 = scmp.ne.s32.totalorder %s145, %s146
    %p160 = scmp.eq.s32.totalorder %s16, 1
    %p161 = por %p159, %p160
    %p163 = scmp.ne.s32.totalorder %s146, %s162
    %p164 = scmp.eq.s32.totalorder %s16, 0
    %p165 = por %p163, %p164
    %p166 = scmp.le.s32.totalorder 1, %s10
    %p167 = scmp.lt.s32.totalorder %s10, 3
    %p168 = pnand %p166, %p167
    %p169 = pneg %p168
    // Predicated region
    $region9: #{spatial_transformer_forward.3} parent=5 // pred_check
      _
    $region10: #{spatial_transformer_forward.3} parent=5 // pred_check_branch
      %171 = sbr.rel (%p168) target = $region12
    $region11: #{spatial_transformer_forward.3} parent=5 // pred_region
      %s172 = ssub.s32 %s10, 1
    $region12: #{spatial_transformer_forward.3} parent=5 // pred_fallthru
      _
    %p173 = scmp.lt.s32.totalorder %s10, 2
    // Predicated region
    $region13: #{spatial_transformer_forward.3} parent=5 // pred_check
      %p174 = pneg %p173
    $region14: #{spatial_transformer_forward.3} parent=5 // pred_check_branch
      %176 = sbr.rel (%p174) target = $region16
    $region15: #{spatial_transformer_forward.3} parent=5 // pred_region
      // Predicated region
      $region17: #{spatial_transformer_forward.3} parent=15 // pred_check
        %p177 = pneg %p42
      $region18: #{spatial_transformer_forward.3} parent=15 // pred_check_branch
        %179 = sbr.rel (%p177) target = $region20
      $region19: #{spatial_transformer_forward.3} parent=15 // pred_region
        %p180 = scmp.lt.s32.totalorder %s17, 1
        %s181 = scalar_select %p180, %s17, 1
        %s182 = smul.addr %s181, 8
        %s183 = smul.addr %s182, 8
        %s184 = scalar_lea.vmem %s0, %s183
      $region20: #{spatial_transformer_forward.3} parent=15 // pred_fallthru
        _
      // Predicated region
      $region21: #{spatial_transformer_forward.3} parent=15 // pred_check
        %p185 = pneg %p70
      $region22: #{spatial_transformer_forward.3} parent=15 // pred_check_branch
        %187 = sbr.rel (%p185) target = $region24
      $region23: #{spatial_transformer_forward.3} parent=15 // pred_region
        %s188 = smul.u32 2, %s18
        %p189 = scmp.lt.s32.totalorder %s17, 1
        %s190 = scalar_select %p189, %s17, 1
        %p191 = scmp.lt.s32.totalorder %s188, 1
        %s192 = scalar_select %p191, %s188, 1
        %s193 = smul.addr %s190, 2
        %s194 = sadd.s32 %s192, %s193
        %s195 = smul.addr %s194, 4
        %s196 = scalar_lea.vmem %s1, %s195
        %s197 = smul.u32 2, %s18
      $region24: #{spatial_transformer_forward.3} parent=15 // pred_fallthru
        _
      // Predicated region
      $region25: #{spatial_transformer_forward.3} parent=15 // pred_check
        %p198 = pneg %p98
      $region26: #{spatial_transformer_forward.3} parent=15 // pred_check_branch
        %200 = sbr.rel (%p198) target = $region28
      $region27: #{spatial_transformer_forward.3} parent=15 // pred_region
        %s201 = smul.u32 2, %s18
        %p202 = scmp.lt.s32.totalorder %s17, 1
        %s203 = scalar_select %p202, %s17, 1
        %p204 = scmp.lt.s32.totalorder %s201, 1
        %s205 = scalar_select %p204, %s201, 1
        %s206 = smul.addr %s203, 2
        %s207 = sadd.s32 %s205, %s206
        %s208 = smul.addr %s207, 4
        %s209 = scalar_lea.vmem %s2, %s208
        %s210 = smul.u32 2, %s18
      $region28: #{spatial_transformer_forward.3} parent=15 // pred_fallthru
        _
      // Predicated region
      $region29: #{spatial_transformer_forward.3} parent=15 // pred_check
        %p211 = pneg %p124
      $region30: #{spatial_transformer_forward.3} parent=15 // pred_check_branch
        %213 = sbr.rel (%p211) target = $region32
      $region31: #{spatial_transformer_forward.3} parent=15 // pred_region
        %p214 = scmp.lt.s32.totalorder %s17, 1
        %s215 = scalar_select %p214, %s17, 1
        %s216 = scalar_lea.vmem %s3, %s215
      $region32: #{spatial_transformer_forward.3} parent=15 // pred_fallthru
        _
    $region16: #{spatial_transformer_forward.3} parent=5 // pred_fallthru
      _
    %p217 = scmp.le.s32.totalorder 1, %s10
    %p218 = scmp.lt.s32.totalorder %s10, 3
    %p219 = pnand %p217, %p218
    %p220 = pneg %p219
    // Predicated region
    $region33: #{spatial_transformer_forward.3} parent=5 // pred_check
      _
    $region34: #{spatial_transformer_forward.3} parent=5 // pred_check_branch
      %222 = sbr.rel (%p219) target = $region36
    $region35: #{spatial_transformer_forward.3} parent=5 // pred_region
      %s223 = ssub.s32 %s10, 1
      %p224 = scmp.lt.s32.totalorder %s19, 1
      %s225 = scalar_select %p224, %s19, 1
      %s226 = smul.addr %s225, 8
      %s227 = smul.addr %s226, 8
      %s228 = scalar_lea.vmem %s0, %s227
      %p229 = pneg %p48
      %p230 = pneg %p45
      %s231 = smul.u32 2, %s20
      %p232 = scmp.lt.s32.totalorder %s19, 1
      %s233 = scalar_select %p232, %s19, 1
      %p234 = scmp.lt.s32.totalorder %s231, 1
      %s235 = scalar_select %p234, %s231, 1
      %s236 = smul.addr %s233, 2
      %s237 = sadd.s32 %s235, %s236
      %s238 = smul.addr %s237, 4
      %s239 = scalar_lea.vmem %s1, %s238
      %p240 = pneg %p76
      %p241 = pneg %p73
      %s242 = smul.u32 2, %s20
      %p243 = scmp.lt.s32.totalorder %s19, 1
      %s244 = scalar_select %p243, %s19, 1
      %p245 = scmp.lt.s32.totalorder %s242, 1
      %s246 = scalar_select %p245, %s242, 1
      %s247 = smul.addr %s244, 2
      %s248 = sadd.s32 %s246, %s247
      %s249 = smul.addr %s248, 4
      %s250 = scalar_lea.vmem %s2, %s249
      %p251 = pneg %p104
      %p252 = pneg %p101
      %p253 = scmp.lt.s32.totalorder %s19, 1
      %s254 = scalar_select %p253, %s19, 1
      %s255 = scalar_lea.vmem %s3, %s254
      %p256 = pneg %p130
      %p257 = pneg %p127
      %p258 = pneg %p158
      %p259 = pneg %p155
      %s260 = smul.u32 2, %s20
      %p261 = scmp.lt.s32.totalorder %s19, 1
      %s262 = scalar_select %p261, %s19, 1
      %p263 = scmp.lt.s32.totalorder %s260, 1
      %s264 = scalar_select %p263, %s260, 1
      %s265 = smul.addr %s262, 2
      %s266 = sadd.s32 %s264, %s265
      %s267 = smul.addr %s266, 4
      %s268 = scalar_lea.vmem %s4, %s267
      %p269 = scmp.lt.s32.totalorder %s19, 1
      %s270 = scalar_select %p269, %s19, 1
      %s271 = smul.addr %s270, 8
      %s272 = smul.addr %s271, 8
      %s273 = scalar_lea.vmem %s0, %s272
      %s274 = smul.u32 2, %s20
      %p275 = scmp.lt.s32.totalorder %s19, 1
      %s276 = scalar_select %p275, %s19, 1
      %p277 = scmp.lt.s32.totalorder %s274, 1
      %s278 = scalar_select %p277, %s274, 1
      %s279 = smul.addr %s276, 2
      %s280 = sadd.s32 %s278, %s279
      %s281 = smul.addr %s280, 4
      %s282 = scalar_lea.vmem %s1, %s281
      %s283 = smul.u32 2, %s20
      %s284 = smul.u32 2, %s20
      %p285 = scmp.lt.s32.totalorder %s19, 1
      %s286 = scalar_select %p285, %s19, 1
      %p287 = scmp.lt.s32.totalorder %s284, 1
      %s288 = scalar_select %p287, %s284, 1
      %s289 = smul.addr %s286, 2
      %s290 = sadd.s32 %s288, %s289
      %s291 = smul.addr %s290, 4
      %s292 = scalar_lea.vmem %s2, %s291
      %s293 = smul.u32 2, %s20
      %p294 = scmp.lt.s32.totalorder %s19, 1
      %s295 = scalar_select %p294, %s19, 1
      %s296 = scalar_lea.vmem %s3, %s295
      %s297 = smul.u32 2, %s20
      %p298 = scmp.lt.s32.totalorder %s19, 1
      %s299 = scalar_select %p298, %s19, 1
      %p300 = scmp.lt.s32.totalorder %s297, 1
      %s301 = scalar_select %p300, %s297, 1
      %s302 = smul.addr %s299, 2
      %s303 = sadd.s32 %s301, %s302
      %s304 = smul.addr %s303, 4
      %s305 = scalar_lea.vmem %s4, %s304
      %s306 = smul.u32 2, %s20
      %v307 = vld [vmem:[%s273] sm:$0xff]
      %v308 = vld [vmem:[%s273 + $0x8] sm:$0xff]
      %v309 = vld [vmem:[%s273 + $0x10] sm:$0xff]
      %v310 = vld [vmem:[%s273 + $0x18] sm:$0xff]
      %v311 = vld [vmem:[%s273 + $0x20] sm:$0xff]
      %v312 = vld [vmem:[%s273 + $0x28] sm:$0xff]
      %v313 = vld [vmem:[%s273 + $0x30] sm:$0xff]
      %v314 = vld [vmem:[%s273 + $0x38] sm:$0xff]
      %v315 = vld [vmem:[%s282] sm:$0xff]
      %v316 = vld [vmem:[%s292] sm:$0xff]
      %v317 = vlaneseq
      %v318 = vshrl.u32 %v317, 7
      %v319 = vadd.s32 %v318, 8
      %v320 = vlaneseq
      %v321 = vshrl.u32 %v320, 7
      %v322 = vsub.s32 0, %v321
      %v323 = vrot.slane %v315, %v322
      %v324 = vlaneseq
      %v325 = vshrl.u32 %v324, 7
      %v326 = vsub.s32 4, %v325
      %v327 = vrot.slane %v315, %v326
      %v328 = vlaneseq
      %v329 = vshrl.u32 %v328, 7
      %v330 = vsub.s32 0, %v329
      %v331 = vrot.slane %v323, %v330
      %v332 = vlaneseq
      %v333 = vshrl.u32 %v332, 7
      %v334 = vsub.s32 0, %v333
      %v335 = vrot.slane %v327, %v334
      %vm336 = vcmp.eq.s32.totalorder %v318, %v331
      %vm337 = vcmp.eq.s32.totalorder %v318, %v335
      %vm338 = vcmp.eq.s32.totalorder %v319, %v331
      %vm339 = vcmp.eq.s32.totalorder %v319, %v335
      %v341 = vlaneseq
      %v342 = vshrl.u32 %v341, 7
      %v343 = vsub.s32 0, %v342
      %v344 = vrot.slane %v316, %v343
      %v345 = vlaneseq
      %v346 = vshrl.u32 %v345, 7
      %v347 = vsub.s32 4, %v346
      %v348 = vrot.slane %v316, %v347
      %v351 = vlaneseq
      %v352 = vshrl.u32 %v351, 7
      %v353 = vsub.s32 0, %v352
      %v354 = vrot.slane %v344, %v353
      %v355 = vlaneseq
      %v356 = vshrl.u32 %v355, 7
      %v357 = vsub.s32 0, %v356
      %v358 = vrot.slane %v348, %v357
      %v359 = vsel %vm336, %v354, 0.0
      %v360 = vsel %vm337, %v358, 0.0
      %v361 = vsel %vm338, %v354, 0.0
      %v362 = vsel %vm339, %v358, 0.0
      %v363 = vlaneseq
      %v364 = vshrl.u32 %v363, 7
      %v365 = vsub.s32 1, %v364
      %v366 = vrot.slane %v315, %v365
      %v367 = vlaneseq
      %v368 = vshrl.u32 %v367, 7
      %v369 = vsub.s32 5, %v368
      %v370 = vrot.slane %v315, %v369
      %v371 = vlaneseq
      %v372 = vshrl.u32 %v371, 7
      %v373 = vsub.s32 1, %v372
      %v374 = vrot.slane %v366, %v373
      %v375 = vlaneseq
      %v376 = vshrl.u32 %v375, 7
      %v377 = vsub.s32 1, %v376
      %v378 = vrot.slane %v370, %v377
      %vm379 = vcmp.eq.s32.totalorder %v318, %v374
      %vm380 = vcmp.eq.s32.totalorder %v318, %v378
      %vm381 = vcmp.eq.s32.totalorder %v319, %v374
      %vm382 = vcmp.eq.s32.totalorder %v319, %v378
      %v383 = vlaneseq
      %v384 = vshrl.u32 %v383, 7
      %v385 = vsub.s32 1, %v384
      %v386 = vrot.slane %v316, %v385
      %v387 = vlaneseq
      %v388 = vshrl.u32 %v387, 7
      %v389 = vsub.s32 5, %v388
      %v390 = vrot.slane %v316, %v389
      %v393 = vlaneseq
      %v394 = vshrl.u32 %v393, 7
      %v395 = vsub.s32 1, %v394
      %v396 = vrot.slane %v386, %v395
      %v397 = vlaneseq
      %v398 = vshrl.u32 %v397, 7
      %v399 = vsub.s32 1, %v398
      %v400 = vrot.slane %v390, %v399
      %v401 = vsel %vm379, %v396, 0.0
      %v402 = vsel %vm380, %v400, 0.0
      %v403 = vsel %vm381, %v396, 0.0
      %v404 = vsel %vm382, %v400, 0.0
      %v405 = vadd.f32 %v359, %v401
      %v406 = vadd.f32 %v360, %v402
      %v407 = vadd.f32 %v361, %v403
      %v408 = vadd.f32 %v362, %v404
      %vm409 = vcmask 130048
      %v411 = vsel %vm409, %v307, 0
      %v414 = vsel %vm409, %v308, 0
      %v417 = vsel %vm409, %v309, 0
      %v420 = vsel %vm409, %v310, 0
      %v423 = vsel %vm409, %v311, 0
      %v426 = vsel %vm409, %v312, 0
      %v429 = vsel %vm409, %v313, 0
      %v432 = vsel %vm409, %v314, 0
      %434 = vmatprep.subr.mxu0 %v406
      %435 = vmatpush1.msra.mxu0 %v405
      %436 = vmatprep.subr.mxu0 %v408
      %437 = vmatpush1.msra.mxu0 %v407
      %438 = vmatprep.subr.mxu0 0.0
      %439 = vmatpush1.msra.mxu0 0.0
      %440 = vmatprep.subr.mxu0 0.0
      %441 = vmatpush1.msra.mxu0 0.0
      %442 = vmatprep.subr.mxu0 0.0
      %443 = vmatpush1.msra.mxu0 0.0
      %444 = vmatprep.subr.mxu0 0.0
      %445 = vmatpush1.msra.mxu0 0.0
      %446 = vmatprep.subr.mxu0 0.0
      %447 = vmatpush1.msra.mxu0 0.0
      %448 = vmatprep.subr.mxu0 0.0
      %449 = vmatpush1.msra.mxu0 0.0
      %450 = vmatprep.subr.mxu0 0.0
      %451 = vmatpush1.msra.mxu0 0.0
      %452 = vmatprep.subr.mxu0 0.0
      %453 = vmatpush1.msra.mxu0 0.0
      %454 = vmatprep.subr.mxu0 0.0
      %455 = vmatpush1.msra.mxu0 0.0
      %456 = vmatprep.subr.mxu0 0.0
      %457 = vmatpush1.msra.mxu0 0.0
      %458 = vmatprep.subr.mxu0 0.0
      %459 = vmatpush1.msra.mxu0 0.0
      %460 = vmatprep.subr.mxu0 0.0
      %461 = vmatpush1.msra.mxu0 0.0
      %462 = vmatprep.subr.mxu0 0.0
      %463 = vmatpush1.msra.mxu0 0.0
      %464 = vmatprep.subr.mxu0 0.0
      %465 = vmatpush1.msra.mxu0 0.0
      %466 = vmatprep.subr.mxu0 0.0
      %467 = vmatpush1.msra.mxu0 0.0
      %468 = vmatprep.subr.mxu0 0.0
      %469 = vmatpush1.msra.mxu0 0.0
      %470 = vmatprep.subr.mxu0 0.0
      %471 = vmatpush1.msra.mxu0 0.0
      %472 = vmatprep.subr.mxu0 0.0
      %473 = vmatpush1.msra.mxu0 0.0
      %474 = vmatprep.subr.mxu0 0.0
      %475 = vmatpush1.msra.mxu0 0.0
      %476 = vmatprep.subr.mxu0 0.0
      %477 = vmatpush1.msra.mxu0 0.0
      %478 = vmatprep.subr.mxu0 0.0
      %479 = vmatpush1.msra.mxu0 0.0
      %480 = vmatprep.subr.mxu0 0.0
      %481 = vmatpush1.msra.mxu0 0.0
      %482 = vmatprep.subr.mxu0 0.0
      %483 = vmatpush1.msra.mxu0 0.0
      %484 = vmatprep.subr.mxu0 0.0
      %485 = vmatpush1.msra.mxu0 0.0
      %486 = vmatprep.subr.mxu0 0.0
      %487 = vmatpush1.msra.mxu0 0.0
      %488 = vmatprep.subr.mxu0 0.0
      %489 = vmatpush1.msra.mxu0 0.0
      %490 = vmatprep.subr.mxu0 0.0
      %491 = vmatpush1.msra.mxu0 0.0
      %492 = vmatprep.subr.mxu0 0.0
      %493 = vmatpush1.msra.mxu0 0.0
      %494 = vmatprep.subr.mxu0 0.0
      %495 = vmatpush1.msra.mxu0 0.0
      %496 = vmatprep.subr.mxu0 0.0
      %497 = vmatpush1.msra.mxu0 0.0
      %498 = vmatprep.mubr.f32.mxu0 0.0
      %499 = vmatmul.mubr.f32.gmra.mrb[0].mxu0 %v411
      %v500 = vpop.f32.mrb[0].mxu0
      %v501 = vadd.f32 0.0, %v500
      %v502 = vpop.f32.mrb[0].mxu0
      %v503 = vadd.f32 0.0, %v502
      %504 = vmatprep.mubr.f32.mxu0 0.0
      %505 = vmatmul.mubr.f32.gmra.mrb[0].mxu0 %v414
      %v506 = vpop.f32.mrb[0].mxu0
      %v507 = vadd.f32 0.0, %v506
      %v508 = vpop.f32.mrb[0].mxu0
      %v509 = vadd.f32 0.0, %v508
      %510 = vmatprep.mubr.f32.mxu0 0.0
      %511 = vmatmul.mubr.f32.gmra.mrb[0].mxu0 %v417
      %v512 = vpop.f32.mrb[0].mxu0
      %v513 = vadd.f32 0.0, %v512
      %v514 = vpop.f32.mrb[0].mxu0
      %v515 = vadd.f32 0.0, %v514
      %516 = vmatprep.mubr.f32.mxu0 0.0
      %517 = vmatmul.mubr.f32.gmra.mrb[0].mxu0 %v420
      %v518 = vpop.f32.mrb[0].mxu0
      %v519 = vadd.f32 0.0, %v518
      %v520 = vpop.f32.mrb[0].mxu0
      %v521 = vadd.f32 0.0, %v520
      %522 = vmatprep.mubr.f32.mxu0 0.0
      %523 = vmatmul.mubr.f32.gmra.mrb[0].mxu0 %v423
      %v524 = vpop.f32.mrb[0].mxu0
      %v525 = vadd.f32 0.0, %v524
      %v526 = vpop.f32.mrb[0].mxu0
      %v527 = vadd.f32 0.0, %v526
      %528 = vmatprep.mubr.f32.mxu0 0.0
      %529 = vmatmul.mubr.f32.gmra.mrb[0].mxu0 %v426
      %v530 = vpop.f32.mrb[0].mxu0
      %v531 = vadd.f32 0.0, %v530
      %v532 = vpop.f32.mrb[0].mxu0
      %v533 = vadd.f32 0.0, %v532
      %534 = vmatprep.mubr.f32.mxu0 0.0
      %535 = vmatmul.mubr.f32.gmra.mrb[0].mxu0 %v429
      %v536 = vpop.f32.mrb[0].mxu0
      %v537 = vadd.f32 0.0, %v536
      %v538 = vpop.f32.mrb[0].mxu0
      %v539 = vadd.f32 0.0, %v538
      %540 = vmatprep.mubr.f32.mxu0 0.0
      %541 = vmatmul.mubr.f32.gmra.mrb[0].mxu0 %v432
      %v542 = vpop.f32.mrb[0].mxu0
      %v543 = vadd.f32 0.0, %v542
      %v544 = vpop.f32.mrb[0].mxu0
      %v545 = vadd.f32 0.0, %v544
      %546 = vdwg.mxu0
      %v547 = vlaneseq
      %v548 = vshrl.u32 %v547, 7
      %v549 = vsub.s32 2, %v548
      %v550 = vrot.slane %v315, %v549
      %v551 = vlaneseq
      %v552 = vshrl.u32 %v551, 7
      %v553 = vsub.s32 6, %v552
      %v554 = vrot.slane %v315, %v553
      %v555 = vlaneseq
      %v556 = vshrl.u32 %v555, 7
      %v557 = vsub.s32 2, %v556
      %v558 = vrot.slane %v550, %v557
      %v559 = vlaneseq
      %v560 = vshrl.u32 %v559, 7
      %v561 = vsub.s32 2, %v560
      %v562 = vrot.slane %v554, %v561
      %vm563 = vcmp.eq.s32.totalorder %v318, %v558
      %vm564 = vcmp.eq.s32.totalorder %v318, %v562
      %vm565 = vcmp.eq.s32.totalorder %v319, %v558
      %vm566 = vcmp.eq.s32.totalorder %v319, %v562
      %v567 = vlaneseq
      %v568 = vshrl.u32 %v567, 7
      %v569 = vsub.s32 2, %v568
      %v570 = vrot.slane %v316, %v569
      %v571 = vlaneseq
      %v572 = vshrl.u32 %v571, 7
      %v573 = vsub.s32 6, %v572
      %v574 = vrot.slane %v316, %v573
      %v577 = vlaneseq
      %v578 = vshrl.u32 %v577, 7
      %v579 = vsub.s32 2, %v578
      %v580 = vrot.slane %v570, %v579
      %v581 = vlaneseq
      %v582 = vshrl.u32 %v581, 7
      %v583 = vsub.s32 2, %v582
      %v584 = vrot.slane %v574, %v583
      %v585 = vsel %vm563, %v580, 0.0
      %v586 = vsel %vm564, %v584, 0.0
      %v587 = vsel %vm565, %v580, 0.0
      %v588 = vsel %vm566, %v584, 0.0
      %v589 = vlaneseq
      %v590 = vshrl.u32 %v589, 7
      %v591 = vsub.s32 3, %v590
      %v592 = vrot.slane %v315, %v591
      %v593 = vlaneseq
      %v594 = vshrl.u32 %v593, 7
      %v595 = vsub.s32 7, %v594
      %v596 = vrot.slane %v315, %v595
      %v597 = vlaneseq
      %v598 = vshrl.u32 %v597, 7
      %v599 = vsub.s32 3, %v598
      %v600 = vrot.slane %v592, %v599
      %v601 = vlaneseq
      %v602 = vshrl.u32 %v601, 7
      %v603 = vsub.s32 3, %v602
      %v604 = vrot.slane %v596, %v603
      %vm605 = vcmp.eq.s32.totalorder %v318, %v600
      %vm606 = vcmp.eq.s32.totalorder %v318, %v604
      %vm607 = vcmp.eq.s32.totalorder %v319, %v600
      %vm608 = vcmp.eq.s32.totalorder %v319, %v604
      %v609 = vlaneseq
      %v610 = vshrl.u32 %v609, 7
      %v611 = vsub.s32 3, %v610
      %v612 = vrot.slane %v316, %v611
      %v613 = vlaneseq
      %v614 = vshrl.u32 %v613, 7
      %v615 = vsub.s32 7, %v614
      %v616 = vrot.slane %v316, %v615
      %v619 = vlaneseq
      %v620 = vshrl.u32 %v619, 7
      %v621 = vsub.s32 3, %v620
      %v622 = vrot.slane %v612, %v621
      %v623 = vlaneseq
      %v624 = vshrl.u32 %v623, 7
      %v625 = vsub.s32 3, %v624
      %v626 = vrot.slane %v616, %v625
      %v627 = vsel %vm605, %v622, 0.0
      %v628 = vsel %vm606, %v626, 0.0
      %v629 = vsel %vm607, %v622, 0.0
      %v630 = vsel %vm608, %v626, 0.0
      %v631 = vadd.f32 %v585, %v627
      %v632 = vadd.f32 %v586, %v628
      %v633 = vadd.f32 %v587, %v629
      %v634 = vadd.f32 %v588, %v630
      %v635 = vmul.f32 %v501, %v631
      %v636 = vmul.f32 %v503, %v632
      %v637 = vmul.f32 %v507, %v633
      %v638 = vmul.f32 %v509, %v634
      %v639 = vmul.f32 %v513, %v631
      %v640 = vmul.f32 %v515, %v632
      %v641 = vmul.f32 %v519, %v633
      %v642 = vmul.f32 %v521, %v634
      %v643 = vmul.f32 %v525, %v631
      %v644 = vmul.f32 %v527, %v632
      %v645 = vmul.f32 %v531, %v633
      %v646 = vmul.f32 %v533, %v634
      %v647 = vmul.f32 %v537, %v631
      %v648 = vmul.f32 %v539, %v632
      %v649 = vmul.f32 %v543, %v633
      %v650 = vmul.f32 %v545, %v634
      %v651 = vadd.f32 %v635, %v637
      %v652 = vrot.slane %v651, 4
      %v653 = vadd.f32 %v651, %v652
      %v654 = vrot.slane %v653, 2
      %v655 = vadd.f32 %v653, %v654
      %v656 = vrot.slane %v655, 1
      %v657 = vadd.f32 %v655, %v656
      %v658 = vadd.f32 %v636, %v638
      %v659 = vrot.slane %v658, 4
      %v660 = vadd.f32 %v658, %v659
      %v661 = vrot.slane %v660, 2
      %v662 = vadd.f32 %v660, %v661
      %v663 = vrot.slane %v662, 1
      %v664 = vadd.f32 %v662, %v663
      %v665 = vadd.f32 %v639, %v641
      %v666 = vrot.slane %v665, 4
      %v667 = vadd.f32 %v665, %v666
      %v668 = vrot.slane %v667, 2
      %v669 = vadd.f32 %v667, %v668
      %v670 = vrot.slane %v669, 1
      %v671 = vadd.f32 %v669, %v670
      %v672 = vadd.f32 %v640, %v642
      %v673 = vrot.slane %v672, 4
      %v674 = vadd.f32 %v672, %v673
      %v675 = vrot.slane %v674, 2
      %v676 = vadd.f32 %v674, %v675
      %v677 = vrot.slane %v676, 1
      %v678 = vadd.f32 %v676, %v677
      %v679 = vadd.f32 %v643, %v645
      %v680 = vrot.slane %v679, 4
      %v681 = vadd.f32 %v679, %v680
      %v682 = vrot.slane %v681, 2
      %v683 = vadd.f32 %v681, %v682
      %v684 = vrot.slane %v683, 1
      %v685 = vadd.f32 %v683, %v684
      %v686 = vadd.f32 %v644, %v646
      %v687 = vrot.slane %v686, 4
      %v688 = vadd.f32 %v686, %v687
      %v689 = vrot.slane %v688, 2
      %v690 = vadd.f32 %v688, %v689
      %v691 = vrot.slane %v690, 1
      %v692 = vadd.f32 %v690, %v691
      %v693 = vadd.f32 %v647, %v649
      %v694 = vrot.slane %v693, 4
      %v695 = vadd.f32 %v693, %v694
      %v696 = vrot.slane %v695, 2
      %v697 = vadd.f32 %v695, %v696
      %v698 = vrot.slane %v697, 1
      %v699 = vadd.f32 %v697, %v698
      %v700 = vadd.f32 %v648, %v650
      %v701 = vrot.slane %v700, 4
      %v702 = vadd.f32 %v700, %v701
      %v703 = vrot.slane %v702, 2
      %v704 = vadd.f32 %v702, %v703
      %v705 = vrot.slane %v704, 1
      %v706 = vadd.f32 %v704, %v705
      %v707 = vld [vmem:[%s296] sm:$0x1]
      %v709 = vlaneseq
      %v710 = vshrl.u32 %v709, 7
      %v711 = vsub.s32 0, %v710
      %v712 = vrot.slane %v707, %v711
      %713 = vset.pattern.permute.xlu0 0
      %714 = vperm.xlu0 %713, %v712
      %v715 = vpop.permute.xlu0 %714
      %v717 = vmul.f32 %v657, %v715
      %v718 = vmul.f32 %v664, %v715
      %v719 = vmul.f32 %v671, %v715
      %v720 = vmul.f32 %v678, %v715
      %v721 = vmul.f32 %v685, %v715
      %v722 = vmul.f32 %v692, %v715
      %v723 = vmul.f32 %v699, %v715
      %v724 = vmul.f32 %v706, %v715
      %v733 = vcombine.low %v717, %v718
      %v734 = vcombine.low %v719, %v720
      %v735 = vcombine.low %v721, %v722
      %v736 = vcombine.low %v723, %v724
      %v737 = vrot.slane %v734, 7
      %vm738 = vcmask 1041409
      %v739 = vsel %vm738, %v737, %v733
      %vm740 = vcmask 1045509
      %v741 = vsel %vm740, %v737, %v739
      %v742 = vrot.slane %v735, 6
      %vm743 = vcmask 1042434
      %v744 = vsel %vm743, %v742, %v741
      %vm745 = vcmask 1046534
      %v746 = vsel %vm745, %v742, %v744
      %v747 = vrot.slane %v736, 5
      %vm748 = vcmask 1043459
      %v749 = vsel %vm748, %v747, %v746
      %vm750 = vcmask 1047559
      %v751 = vsel %vm750, %v747, %v749
      %753 = vst [vmem:[%s305] sm:$0xff] %v751
      %s754 = smul.u32 2, %s20
      %p755 = scmp.lt.s32.totalorder %s19, 1
      %s756 = scalar_select %p755, %s19, 1
      %p757 = scmp.lt.s32.totalorder %s754, 1
      %s758 = scalar_select %p757, %s754, 1
      %s759 = smul.addr %s756, 2
      %s760 = sadd.s32 %s758, %s759
      %s761 = smul.addr %s760, 4
      %s762 = scalar_lea.vmem %s4, %s761
      // Predicated region
      $region37: #{spatial_transformer_forward.3} parent=35 // pred_check
        %p763 = pneg %p155
      $region38: #{spatial_transformer_forward.3} parent=35 // pred_check_branch
        %765 = sbr.rel (%p763) target = $region40
      $region39: #{spatial_transformer_forward.3} parent=35 // pred_region
        %s766 = smul.u32 2, %s20
      $region40: #{spatial_transformer_forward.3} parent=35 // pred_fallthru
        _
    $region36: #{spatial_transformer_forward.3} parent=5 // pred_fallthru
      _
    %p767 = scmp.le.s32.totalorder 2, %s10
    // Predicated region
    $region41: #{spatial_transformer_forward.3} parent=5 // pred_check
      %p768 = pneg %p767
    $region42: #{spatial_transformer_forward.3} parent=5 // pred_check_branch
      %770 = sbr.rel (%p768) target = $region44
    $region43: #{spatial_transformer_forward.3} parent=5 // pred_region
      %s771 = ssub.s32 %s10, 2
      // Predicated region
      $region45: #{spatial_transformer_forward.3} parent=43 // pred_check
        %p772 = pneg %p161
      $region46: #{spatial_transformer_forward.3} parent=43 // pred_check_branch
        %774 = sbr.rel (%p772) target = $region48
      $region47: #{spatial_transformer_forward.3} parent=43 // pred_region
        %s775 = smul.u32 2, %s22
        %p776 = scmp.lt.s32.totalorder %s21, 1
        %s777 = scalar_select %p776, %s21, 1
        %p778 = scmp.lt.s32.totalorder %s775, 1
        %s779 = scalar_select %p778, %s775, 1
        %s780 = smul.addr %s777, 2
        %s781 = sadd.s32 %s779, %s780
        %s782 = smul.addr %s781, 4
        %s783 = scalar_lea.vmem %s4, %s782
      $region48: #{spatial_transformer_forward.3} parent=43 // pred_fallthru
        _
    $region44: #{spatial_transformer_forward.3} parent=5 // pred_fallthru
      _
  $region6: #{spatial_transformer_forward.3} parent=0 // loop_footer
    %s14 = sadd.s32 1, %s10
  $region7: #{spatial_transformer_forward.3} parent=0 // loop_footer_branch
    %9 = sbr.rel target = $region3
  $region8: #{spatial_transformer_forward.3} parent=0 // loop_exit
    _

// kernel: spatial_transformer_forward.2
$region0: #{spatial_transformer_forward.2}
  #allocation0 [shape = 'u32[]', space=smem, size = 0x4, offset = 0x4, fixed_abs, tag = 'smem constant byte address 0x4 - core index']
  #allocation1 [shape = 'u32[144,128]{1,0:T(1,128)}', space=vmem, size = 0x12000, scoped, tag = 'internal scratch']
  #allocation2 [shape = 'f32[8,896]{1,0:T(8,128)}', space=vmem, size = 0x7000, scoped, tag = 'scratch operand']
  #allocation3 [shape = 'f32[72,768]{1,0:T(8,128)}', space=vmem, size = 0x36000, scoped, tag = 'scratch operand']
  %s0 = inlined_call_operand.vmem [shape: f32[4,512], index: 0, kind: input, shape index: {}]
  %s1 = inlined_call_operand.vmem [shape: bf16[8,4], index: 1, kind: input, shape index: {}]
  %s2 = inlined_call_operand.vmem [shape: f32[8,1], index: 2, kind: input, shape index: {}]
  %s3 = inlined_call_operand.vmem [shape: f32[8,1], index: 3, kind: input, shape index: {}]
  %s4 = inlined_call_operand.vmem [shape: f32[8,1], index: 4, kind: input, shape index: {}]
  %s5 = inlined_call_operand.vmem [shape: f32[1,768], index: 5, kind: input, shape index: {}]
  %s6 = inlined_call_operand.vmem [shape: bf16[8,72], index: 6, kind: input, shape index: {}]
  %s7 = inlined_call_operand.vmem [shape: f32[8,1], index: 7, kind: input, shape index: {}]
  %s8 = inlined_call_operand.vmem [shape: f32[8,1], index: 8, kind: input, shape index: {}]
  %s9 = inlined_call_operand.vmem [shape: f32[8,1], index: 9, kind: input, shape index: {}]
  %s10 = inlined_call_operand.vmem [shape: f32[1,768], index: 10, kind: input, shape index: {}]
  %s11 = inlined_call_operand.vmem [shape: f32[8,8], index: 11, kind: input, shape index: {}]
  %s12 = inlined_call_operand.vmem [shape: f32[8,8,384], index: 12, kind: input, shape index: {}]
  %s13 = inlined_call_operand.vmem [shape: f32[8,1], index: 13, kind: input, shape index: {}]
  %s14 = inlined_call_operand.vmem [shape: f32[8,2], index: 14, kind: output, shape index: {}]
  %s15 = sld [smem:[#allocation0]]
  $region66: #{spatial_transformer_forward.2} parent=0
    _
  %s17 = ssub.s32 1, %s15
  %s18 = scalar_select 0, %s17, %s15
  // Predicated region
  $region2: #{spatial_transformer_forward.2} parent=0 // pred_check
    _
  $region3: #{spatial_transformer_forward.2} parent=0 // pred_check_branch
    %20 = sbr.rel (0) target = $region5
  $region4: #{spatial_transformer_forward.2} parent=0 // pred_region
    _
  $region5: #{spatial_transformer_forward.2} parent=0 // pred_fallthru
    _
  // Predicated region
  $region6: #{spatial_transformer_forward.2} parent=0 // pred_check
    _
  $region7: #{spatial_transformer_forward.2} parent=0 // pred_check_branch
    %22 = sbr.rel (0) target = $region9
  $region8: #{spatial_transformer_forward.2} parent=0 // pred_region
    _
  $region9: #{spatial_transformer_forward.2} parent=0 // pred_fallthru
    _
  // Predicated region
  $region10: #{spatial_transformer_forward.2} parent=0 // pred_check
    _
  $region11: #{spatial_transformer_forward.2} parent=0 // pred_check_branch
    %24 = sbr.rel (0) target = $region13
  $region12: #{spatial_transformer_forward.2} parent=0 // pred_region
    _
  $region13: #{spatial_transformer_forward.2} parent=0 // pred_fallthru
    _
  // Predicated region
  $region14: #{spatial_transformer_forward.2} parent=0 // pred_check
    _
  $region15: #{spatial_transformer_forward.2} parent=0 // pred_check_branch
    %26 = sbr.rel (0) target = $region17
  $region16: #{spatial_transformer_forward.2} parent=0 // pred_region
    _
  $region17: #{spatial_transformer_forward.2} parent=0 // pred_fallthru
    _
  // Predicated region
  $region18: #{spatial_transformer_forward.2} parent=0 // pred_check
    _
  $region19: #{spatial_transformer_forward.2} parent=0 // pred_check_branch
    %28 = sbr.rel (0) target = $region21
  $region20: #{spatial_transformer_forward.2} parent=0 // pred_region
    _
  $region21: #{spatial_transformer_forward.2} parent=0 // pred_fallthru
    _
  // Predicated region
  $region22: #{spatial_transformer_forward.2} parent=0 // pred_check
    _
  $region23: #{spatial_transformer_forward.2} parent=0 // pred_check_branch
    %30 = sbr.rel (0) target = $region25
  $region24: #{spatial_transformer_forward.2} parent=0 // pred_region
    _
  $region25: #{spatial_transformer_forward.2} parent=0 // pred_fallthru
    _
  // Predicated region
  $region26: #{spatial_transformer_forward.2} parent=0 // pred_check
    _
  $region27: #{spatial_transformer_forward.2} parent=0 // pred_check_branch
    %32 = sbr.rel (0) target = $region29
  $region28: #{spatial_transformer_forward.2} parent=0 // pred_region
    _
  $region29: #{spatial_transformer_forward.2} parent=0 // pred_fallthru
    _
  // Predicated region
  $region30: #{spatial_transformer_forward.2} parent=0 // pred_check
    _
  $region31: #{spatial_transformer_forward.2} parent=0 // pred_check_branch
    %34 = sbr.rel (0) target = $region33
  $region32: #{spatial_transformer_forward.2} parent=0 // pred_region
    _
  $region33: #{spatial_transformer_forward.2} parent=0 // pred_fallthru
    _
  // Predicated region
  $region34: #{spatial_transformer_forward.2} parent=0 // pred_check
    _
  $region35: #{spatial_transformer_forward.2} parent=0 // pred_check_branch
    %36 = sbr.rel (0) target = $region37
  $region36: #{spatial_transformer_forward.2} parent=0 // pred_region
    _
  $region37: #{spatial_transformer_forward.2} parent=0 // pred_fallthru
    _
  // Predicated region
  $region38: #{spatial_transformer_forward.2} parent=0 // pred_check
    _
  $region39: #{spatial_transformer_forward.2} parent=0 // pred_check_branch
    %38 = sbr.rel (0) target = $region41
  $region40: #{spatial_transformer_forward.2} parent=0 // pred_region
    _
  $region41: #{spatial_transformer_forward.2} parent=0 // pred_fallthru
    _
  // Predicated region
  $region42: #{spatial_transformer_forward.2} parent=0 // pred_check
    _
  $region43: #{spatial_transformer_forward.2} parent=0 // pred_check_branch
    %40 = sbr.rel (0) target = $region45
  $region44: #{spatial_transformer_forward.2} parent=0 // pred_region
    _
  $region45: #{spatial_transformer_forward.2} parent=0 // pred_fallthru
    _
  // Predicated region
  $region46: #{spatial_transformer_forward.2} parent=0 // pred_check
    _
  $region47: #{spatial_transformer_forward.2} parent=0 // pred_check_branch
    %42 = sbr.rel (0) target = $region49
  $region48: #{spatial_transformer_forward.2} parent=0 // pred_region
    _
  $region49: #{spatial_transformer_forward.2} parent=0 // pred_fallthru
    _
  // Predicated region
  $region50: #{spatial_transformer_forward.2} parent=0 // pred_check
    _
  $region51: #{spatial_transformer_forward.2} parent=0 // pred_check_branch
    %44 = sbr.rel (0) target = $region53
  $region52: #{spatial_transformer_forward.2} parent=0 // pred_region
    _
  $region53: #{spatial_transformer_forward.2} parent=0 // pred_fallthru
    _
  // Predicated region
  $region54: #{spatial_transformer_forward.2} parent=0 // pred_check
    _
  $region55: #{spatial_transformer_forward.2} parent=0 // pred_check_branch
    %46 = sbr.rel (0) target = $region57
  $region56: #{spatial_transformer_forward.2} parent=0 // pred_region
    _
  $region57: #{spatial_transformer_forward.2} parent=0 // pred_fallthru
    _
  %48 = vst [vmem:[#allocation2 + $0x30] sm:$0xff] 0.0
  %49 = vst [vmem:[#allocation2 + $0x10] sm:$0xff] 0.0
  %50 = vst [vmem:[#allocation2 + $0x28] sm:$0xff] 0.0
  %v51 = vld [vmem:[%s0] sm:$0xff]
  %v52 = vld [vmem:[%s0 + $0x8] sm:$0xff]
  %v55 = vcombine.high %v51, %v51
  %v56 = vcombine.high %v52, %v52
  %v59 = vpack.c.bf16 %v51, %v51
  %v60 = vpack.c.bf16 %v55, %v55
  %v61 = vpack.c.bf16 %v52, %v52
  %v62 = vpack.c.bf16 %v56, %v56
  %v63 = vld [vmem:[%s1] sm:$0xf]
  %v64 = vld [vmem:[%s2] sm:$0xff]
  %66 = vset.pattern.permute.xlu0 0
  %67 = vperm.xlu0 %66, %v64
  %v68 = vpop.permute.xlu0 %67
  %vm70 = vcmask 31744
  %v72 = vsel %vm70, %v63, 0
  %vm74 = vcmask 1041408
  %v76 = vsel %vm74, %v59, 0
  %v79 = vsel %vm74, %v60, 0
  %v82 = vsel %vm74, %v61, 0
  %v85 = vsel %vm74, %v62, 0
  %87 = vmatprep.subr.bf16.mxu0 %v79
  %88 = vmatpush1.bf16.msra.mxu0 %v76
  %89 = vmatprep.subr.bf16.mxu0 0
  %90 = vmatpush1.bf16.msra.mxu0 0
  %91 = vmatprep.subr.bf16.mxu0 0
  %92 = vmatpush1.bf16.msra.mxu0 0
  %93 = vmatprep.subr.bf16.mxu0 0
  %94 = vmatpush1.bf16.msra.mxu0 0
  %95 = vmatprep.subr.bf16.mxu0 0
  %96 = vmatpush1.bf16.msra.mxu0 0
  %97 = vmatprep.subr.bf16.mxu0 0
  %98 = vmatpush1.bf16.msra.mxu0 0
  %99 = vmatprep.subr.bf16.mxu0 0
  %100 = vmatpush1.bf16.msra.mxu0 0
  %101 = vmatprep.subr.bf16.mxu0 0
  %102 = vmatpush1.bf16.msra.mxu0 0
  %103 = vmatprep.subr.bf16.mxu0 0
  %104 = vmatpush1.bf16.msra.mxu0 0
  %105 = vmatprep.subr.bf16.mxu0 0
  %106 = vmatpush1.bf16.msra.mxu0 0
  %107 = vmatprep.subr.bf16.mxu0 0
  %108 = vmatpush1.bf16.msra.mxu0 0
  %109 = vmatprep.subr.bf16.mxu0 0
  %110 = vmatpush1.bf16.msra.mxu0 0
  %111 = vmatprep.subr.bf16.mxu0 0
  %112 = vmatpush1.bf16.msra.mxu0 0
  %113 = vmatprep.subr.bf16.mxu0 0
  %114 = vmatpush1.bf16.msra.mxu0 0
  %115 = vmatprep.subr.bf16.mxu0 0
  %116 = vmatpush1.bf16.msra.mxu0 0
  %117 = vmatprep.subr.bf16.mxu0 0
  %118 = vmatpush1.bf16.msra.mxu0 0
  %119 = vmatprep.mubr.bf16.mxu0 0
  %120 = vmatmul.mubr.bf16.gmra.mrb[0].mxu0 %v72
  %v121 = vpop.f32.mrb[0].mxu0
  %v122 = vadd.f32 %v68, %v121
  %v123 = vpop.f32.mrb[0].mxu0
  %v124 = vadd.f32 %v68, %v123
  %v125 = vpop.f32.mrb[0].mxu0
  %v126 = vpop.f32.mrb[0].mxu0
  %127 = vdwg.mxu0
  %128 = vmatprep.subr.bf16.mxu0 %v85
  %129 = vmatpush1.bf16.msra.mxu0 %v82
  %130 = vmatprep.subr.bf16.mxu0 0
  %131 = vmatpush1.bf16.msra.mxu0 0
  %132 = vmatprep.subr.bf16.mxu0 0
  %133 = vmatpush1.bf16.msra.mxu0 0
  %134 = vmatprep.subr.bf16.mxu0 0
  %135 = vmatpush1.bf16.msra.mxu0 0
  %136 = vmatprep.subr.bf16.mxu0 0
  %137 = vmatpush1.bf16.msra.mxu0 0
  %138 = vmatprep.subr.bf16.mxu0 0
  %139 = vmatpush1.bf16.msra.mxu0 0
  %140 = vmatprep.subr.bf16.mxu0 0
  %141 = vmatpush1.bf16.msra.mxu0 0
  %142 = vmatprep.subr.bf16.mxu0 0
  %143 = vmatpush1.bf16.msra.mxu0 0
  %144 = vmatprep.subr.bf16.mxu0 0
  %145 = vmatpush1.bf16.msra.mxu0 0
  %146 = vmatprep.subr.bf16.mxu0 0
  %147 = vmatpush1.bf16.msra.mxu0 0
  %148 = vmatprep.subr.bf16.mxu0 0
  %149 = vmatpush1.bf16.msra.mxu0 0
  %150 = vmatprep.subr.bf16.mxu0 0
  %151 = vmatpush1.bf16.msra.mxu0 0
  %152 = vmatprep.subr.bf16.mxu0 0
  %153 = vmatpush1.bf16.msra.mxu0 0
  %154 = vmatprep.subr.bf16.mxu0 0
  %155 = vmatpush1.bf16.msra.mxu0 0
  %156 = vmatprep.subr.bf16.mxu0 0
  %157 = vmatpush1.bf16.msra.mxu0 0
  %158 = vmatprep.subr.bf16.mxu0 0
  %159 = vmatpush1.bf16.msra.mxu0 0
  %160 = vmatprep.mubr.bf16.mxu0 0
  %161 = vmatmul.mubr.bf16.gmra.mrb[0].mxu0 %v72
  %v162 = vpop.f32.mrb[0].mxu0
  %v163 = vadd.f32 %v68, %v162
  %v164 = vpop.f32.mrb[0].mxu0
  %v165 = vadd.f32 %v68, %v164
  %v166 = vpop.f32.mrb[0].mxu0
  %v167 = vpop.f32.mrb[0].mxu0
  %168 = vdwg.mxu0
  %169 = vst [vmem:[#allocation2] sm:$0xff] %v122
  %170 = vst [vmem:[#allocation2 + $0x8] sm:$0xff] %v124
  %171 = vst [vmem:[#allocation2 + $0x18] sm:$0xff] %v163
  %172 = vst [vmem:[#allocation2 + $0x20] sm:$0xff] %v165
  %v173 = vld [vmem:[#allocation2] sm:$0xff]
  %v174 = vld [vmem:[#allocation2 + $0x8] sm:$0xff]
  %v175 = vld [vmem:[#allocation2 + $0x10] sm:$0xff]
  %v176 = vld [vmem:[#allocation2 + $0x18] sm:$0xff]
  %v177 = vld [vmem:[#allocation2 + $0x20] sm:$0xff]
  %v178 = vld [vmem:[#allocation2 + $0x28] sm:$0xff]
  %v179 = vld [vmem:[%s5] sm:$0x3f]
  %v181 = vlaneseq
  %v182 = vshrl.u32 %v181, 7
  %v183 = vsub.s32 0, %v182
  %v184 = vrot.slane %v179, %v183
  %v185 = vlaneseq
  %v186 = vshrl.u32 %v185, 7
  %v187 = vsub.s32 1, %v186
  %v188 = vrot.slane %v179, %v187
  %v189 = vlaneseq
  %v190 = vshrl.u32 %v189, 7
  %v191 = vsub.s32 2, %v190
  %v192 = vrot.slane %v179, %v191
  %v193 = vlaneseq
  %v194 = vshrl.u32 %v193, 7
  %v195 = vsub.s32 3, %v194
  %v196 = vrot.slane %v179, %v195
  %v197 = vlaneseq
  %v198 = vshrl.u32 %v197, 7
  %v199 = vsub.s32 4, %v198
  %v200 = vrot.slane %v179, %v199
  %v201 = vlaneseq
  %v202 = vshrl.u32 %v201, 7
  %v203 = vsub.s32 5, %v202
  %v204 = vrot.slane %v179, %v203
  %v211 = vmul.f32 %v173, %v184
  %v212 = vmul.f32 %v174, %v188
  %v213 = vmul.f32 %v175, %v192
  %v214 = vmul.f32 %v176, %v196
  %v215 = vmul.f32 %v177, %v200
  %v216 = vmul.f32 %v178, %v204
  %v217 = vadd.f32 %v211, %v212
  %v218 = vadd.f32 %v217, %v213
  %v219 = vadd.f32 %v218, %v214
  %v220 = vadd.f32 %v219, %v215
  %v221 = vadd.f32 %v220, %v216
  %222 = vadd.xlane.f32.xlu0 %v221
  %v223 = vpop.xlane.xlu0 %222
  %v224 = vmul.f32 %v223, 0.001953125
  %v225 = vmul.f32 %v211, %v173
  %v226 = vmul.f32 %v212, %v174
  %v227 = vmul.f32 %v213, %v175
  %v228 = vmul.f32 %v214, %v176
  %v229 = vmul.f32 %v215, %v177
  %v230 = vmul.f32 %v216, %v178
  %v231 = vadd.f32 %v225, %v226
  %v232 = vadd.f32 %v231, %v227
  %v233 = vadd.f32 %v232, %v228
  %v234 = vadd.f32 %v233, %v229
  %v235 = vadd.f32 %v234, %v230
  %236 = vadd.xlane.f32.xlu0 %v235
  %v237 = vpop.xlane.xlu0 %236
  %v238 = vmul.f32 %v237, 0.001953125
  %v239 = vmul.f32 %v224, %v224
  %v240 = vsub.f32 %v238, %v239
  %v241 = vmax.f32 %v240, 0.0
  %v242 = vsub.f32 %v173, %v224
  %v243 = vsub.f32 %v174, %v224
  %v244 = vsub.f32 %v175, %v224
  %v245 = vsub.f32 %v176, %v224
  %v246 = vsub.f32 %v177, %v224
  %v247 = vsub.f32 %v178, %v224
  %v248 = vadd.f32 %v241, 1e-05
  %v249 = vrsqrt.pop %v248
  %v250 = vmul.f32 %v242, %v249
  %v251 = vmul.f32 %v243, %v249
  %v252 = vmul.f32 %v244, %v249
  %v253 = vmul.f32 %v245, %v249
  %v254 = vmul.f32 %v246, %v249
  %v255 = vmul.f32 %v247, %v249
  %v256 = vld [vmem:[%s3] sm:$0xff]
  %258 = vset.pattern.permute.xlu0 0
  %259 = vperm.xlu0 %258, %v256
  %v260 = vpop.permute.xlu0 %259
  %v262 = vmul.f32 %v250, %v260
  %v263 = vmul.f32 %v251, %v260
  %v264 = vmul.f32 %v252, %v260
  %v265 = vmul.f32 %v253, %v260
  %v266 = vmul.f32 %v254, %v260
  %v267 = vmul.f32 %v255, %v260
  %v268 = vld [vmem:[%s4] sm:$0xff]
  %270 = vset.pattern.permute.xlu0 0
  %271 = vperm.xlu0 %270, %v268
  %v272 = vpop.permute.xlu0 %271
  %v274 = vadd.f32 %v262, %v272
  %v275 = vadd.f32 %v263, %v272
  %v276 = vadd.f32 %v264, %v272
  %v277 = vadd.f32 %v265, %v272
  %v278 = vadd.f32 %v266, %v272
  %v279 = vadd.f32 %v267, %v272
  %v280 = vmax.f32 %v274, 0.0
  %v281 = vmax.f32 %v275, 0.0
  %v282 = vmax.f32 %v276, 0.0
  %v283 = vmax.f32 %v277, 0.0
  %v284 = vmax.f32 %v278, 0.0
  %v285 = vmax.f32 %v279, 0.0
  %286 = vst [vmem:[#allocation2] sm:$0xff] %v280
  %287 = vst [vmem:[#allocation2 + $0x8] sm:$0xff] %v281
  %288 = vst [vmem:[#allocation2 + $0x10] sm:$0xff] %v282
  %289 = vst [vmem:[#allocation2 + $0x18] sm:$0xff] %v283
  %290 = vst [vmem:[#allocation2 + $0x20] sm:$0xff] %v284
  %291 = vst [vmem:[#allocation2 + $0x28] sm:$0xff] %v285
  %v292 = vld [vmem:[#allocation2] sm:$0xff]
  %v293 = vld [vmem:[#allocation2 + $0x8] sm:$0xff]
  %v294 = vld [vmem:[#allocation2 + $0x10] sm:$0xff]
  %v295 = vld [vmem:[#allocation2 + $0x18] sm:$0xff]
  %v296 = vld [vmem:[#allocation2 + $0x20] sm:$0xff]
  %v297 = vld [vmem:[#allocation2 + $0x28] sm:$0xff]
  %298 = vst [vmem:[#allocation3] sm:$0xff] %v292
  %299 = vst [vmem:[#allocation3 + $0x8] sm:$0xff] %v293
  %300 = vst [vmem:[#allocation3 + $0x10] sm:$0xff] %v294
  %301 = vst [vmem:[#allocation3 + $0x18] sm:$0xff] %v295
  %302 = vst [vmem:[#allocation3 + $0x20] sm:$0xff] %v296
  %303 = vst [vmem:[#allocation3 + $0x28] sm:$0xff] %v297
  %v304 = vld [vmem:[#allocation2] sm:$0xff]
  %v305 = vld [vmem:[#allocation2 + $0x8] sm:$0xff]
  %v306 = vld [vmem:[#allocation2 + $0x10] sm:$0xff]
  %v307 = vld [vmem:[#allocation2 + $0x18] sm:$0xff]
  %v308 = vld [vmem:[#allocation2 + $0x20] sm:$0xff]
  %v309 = vld [vmem:[#allocation2 + $0x28] sm:$0xff]
  %v310 = vld [vmem:[#allocation2 + $0x30] sm:$0xff]
  %318 = vrot.lane.b32.xlu0 %v304, 127
  %v319 = vpop.permute.xlu0 %318
  %320 = vrot.lane.b32.xlu0 %v305, 127
  %v321 = vpop.permute.xlu0 %320
  %322 = vrot.lane.b32.xlu0 %v306, 127
  %v323 = vpop.permute.xlu0 %322
  %324 = vrot.lane.b32.xlu0 %v307, 127
  %v325 = vpop.permute.xlu0 %324
  %326 = vrot.lane.b32.xlu0 %v308, 127
  %v327 = vpop.permute.xlu0 %326
  %328 = vrot.lane.b32.xlu0 %v309, 127
  %v329 = vpop.permute.xlu0 %328
  %330 = vrot.lane.b32.xlu0 %v310, 127
  %v331 = vpop.permute.xlu0 %330
  %vm332 = vcmask 1039360
  %v333 = vsel %vm332, %v319, %v321
  %v334 = vsel %vm332, %v321, %v323
  %v335 = vsel %vm332, %v323, %v325
  %v336 = vsel %vm332, %v325, %v327
  %v337 = vsel %vm332, %v327, %v329
  %v338 = vsel %vm332, %v329, %v331
  %345 = vst [vmem:[#allocation3 + $0x30] sm:$0xff] %v333
  %346 = vst [vmem:[#allocation3 + $0x38] sm:$0xff] %v334
  %347 = vst [vmem:[#allocation3 + $0x40] sm:$0xff] %v335
  %348 = vst [vmem:[#allocation3 + $0x48] sm:$0xff] %v336
  %349 = vst [vmem:[#allocation3 + $0x50] sm:$0xff] %v337
  %350 = vst [vmem:[#allocation3 + $0x58] sm:$0xff] %v338
  %v351 = vld [vmem:[#allocation2] sm:$0xff]
  %v352 = vld [vmem:[#allocation2 + $0x8] sm:$0xff]
  %v353 = vld [vmem:[#allocation2 + $0x10] sm:$0xff]
  %v354 = vld [vmem:[#allocation2 + $0x18] sm:$0xff]
  %v355 = vld [vmem:[#allocation2 + $0x20] sm:$0xff]
  %v356 = vld [vmem:[#allocation2 + $0x28] sm:$0xff]
  %v357 = vld [vmem:[#allocation2 + $0x30] sm:$0xff]
  %365 = vrot.lane.b32.xlu0 %v351, 126
  %v366 = vpop.permute.xlu0 %365
  %367 = vrot.lane.b32.xlu0 %v352, 126
  %v368 = vpop.permute.xlu0 %367
  %369 = vrot.lane.b32.xlu0 %v353, 126
  %v370 = vpop.permute.xlu0 %369
  %371 = vrot.lane.b32.xlu0 %v354, 126
  %v372 = vpop.permute.xlu0 %371
  %373 = vrot.lane.b32.xlu0 %v355, 126
  %v374 = vpop.permute.xlu0 %373
  %375 = vrot.lane.b32.xlu0 %v356, 126
  %v376 = vpop.permute.xlu0 %375
  %377 = vrot.lane.b32.xlu0 %v357, 126
  %v378 = vpop.permute.xlu0 %377
  %vm379 = vcmask 1031168
  %v380 = vsel %vm379, %v366, %v368
  %v381 = vsel %vm379, %v368, %v370
  %v382 = vsel %vm379, %v370, %v372
  %v383 = vsel %vm379, %v372, %v374
  %v384 = vsel %vm379, %v374, %v376
  %v385 = vsel %vm379, %v376, %v378
  %392 = vst [vmem:[#allocation3 + $0x60] sm:$0xff] %v380
  %393 = vst [vmem:[#allocation3 + $0x68] sm:$0xff] %v381
  %394 = vst [vmem:[#allocation3 + $0x70] sm:$0xff] %v382
  %395 = vst [vmem:[#allocation3 + $0x78] sm:$0xff] %v383
  %396 = vst [vmem:[#allocation3 + $0x80] sm:$0xff] %v384
  %397 = vst [vmem:[#allocation3 + $0x88] sm:$0xff] %v385
  %v398 = vld [vmem:[#allocation2] sm:$0xff]
  %v399 = vld [vmem:[#allocation2 + $0x8] sm:$0xff]
  %v400 = vld [vmem:[#allocation2 + $0x10] sm:$0xff]
  %v401 = vld [vmem:[#allocation2 + $0x18] sm:$0xff]
  %v402 = vld [vmem:[#allocation2 + $0x20] sm:$0xff]
  %v403 = vld [vmem:[#allocation2 + $0x28] sm:$0xff]
  %v404 = vld [vmem:[#allocation2 + $0x30] sm:$0xff]
  %412 = vrot.lane.b32.xlu0 %v398, 112
  %v413 = vpop.permute.xlu0 %412
  %414 = vrot.lane.b32.xlu0 %v399, 112
  %v415 = vpop.permute.xlu0 %414
  %416 = vrot.lane.b32.xlu0 %v400, 112
  %v417 = vpop.permute.xlu0 %416
  %418 = vrot.lane.b32.xlu0 %v401, 112
  %v419 = vpop.permute.xlu0 %418
  %420 = vrot.lane.b32.xlu0 %v402, 112
  %v421 = vpop.permute.xlu0 %420
  %422 = vrot.lane.b32.xlu0 %v403, 112
  %v423 = vpop.permute.xlu0 %422
  %424 = vrot.lane.b32.xlu0 %v404, 112
  %v425 = vpop.permute.xlu0 %424
  %vm426 = vcmask 916480
  %v427 = vsel %vm426, %v413, %v415
  %v428 = vsel %vm426, %v415, %v417
  %v429 = vsel %vm426, %v417, %v419
  %v430 = vsel %vm426, %v419, %v421
  %v431 = vsel %vm426, %v421, %v423
  %v432 = vsel %vm426, %v423, %v425
  %439 = vst [vmem:[#allocation3 + $0x90] sm:$0xff] %v427
  %440 = vst [vmem:[#allocation3 + $0x98] sm:$0xff] %v428
  %441 = vst [vmem:[#allocation3 + $0xa0] sm:$0xff] %v429
  %442 = vst [vmem:[#allocation3 + $0xa8] sm:$0xff] %v430
  %443 = vst [vmem:[#allocation3 + $0xb0] sm:$0xff] %v431
  %444 = vst [vmem:[#allocation3 + $0xb8] sm:$0xff] %v432
  %v445 = vld [vmem:[#allocation2] sm:$0xff]
  %v446 = vld [vmem:[#allocation2 + $0x8] sm:$0xff]
  %v447 = vld [vmem:[#allocation2 + $0x10] sm:$0xff]
  %v448 = vld [vmem:[#allocation2 + $0x18] sm:$0xff]
  %v449 = vld [vmem:[#allocation2 + $0x20] sm:$0xff]
  %v450 = vld [vmem:[#allocation2 + $0x28] sm:$0xff]
  %v451 = vld [vmem:[#allocation2 + $0x30] sm:$0xff]
  %459 = vrot.lane.b32.xlu0 %v445, 111
  %v460 = vpop.permute.xlu0 %459
  %461 = vrot.lane.b32.xlu0 %v446, 111
  %v462 = vpop.permute.xlu0 %461
  %463 = vrot.lane.b32.xlu0 %v447, 111
  %v464 = vpop.permute.xlu0 %463
  %465 = vrot.lane.b32.xlu0 %v448, 111
  %v466 = vpop.permute.xlu0 %465
  %467 = vrot.lane.b32.xlu0 %v449, 111
  %v468 = vpop.permute.xlu0 %467
  %469 = vrot.lane.b32.xlu0 %v450, 111
  %v470 = vpop.permute.xlu0 %469
  %471 = vrot.lane.b32.xlu0 %v451, 111
  %v472 = vpop.permute.xlu0 %471
  %vm473 = vcmask 908288
  %v474 = vsel %vm473, %v460, %v462
  %v475 = vsel %vm473, %v462, %v464
  %v476 = vsel %vm473, %v464, %v466
  %v477 = vsel %vm473, %v466, %v468
  %v478 = vsel %vm473, %v468, %v470
  %v479 = vsel %vm473, %v470, %v472
  %486 = vst [vmem:[#allocation3 + $0xc0] sm:$0xff] %v474
  %487 = vst [vmem:[#allocation3 + $0xc8] sm:$0xff] %v475
  %488 = vst [vmem:[#allocation3 + $0xd0] sm:$0xff] %v476
  %489 = vst [vmem:[#allocation3 + $0xd8] sm:$0xff] %v477
  %490 = vst [vmem:[#allocation3 + $0xe0] sm:$0xff] %v478
  %491 = vst [vmem:[#allocation3 + $0xe8] sm:$0xff] %v479
  %v492 = vld [vmem:[#allocation2] sm:$0xff]
  %v493 = vld [vmem:[#allocation2 + $0x8] sm:$0xff]
  %v494 = vld [vmem:[#allocation2 + $0x10] sm:$0xff]
  %v495 = vld [vmem:[#allocation2 + $0x18] sm:$0xff]
  %v496 = vld [vmem:[#allocation2 + $0x20] sm:$0xff]
  %v497 = vld [vmem:[#allocation2 + $0x28] sm:$0xff]
  %v498 = vld [vmem:[#allocation2 + $0x30] sm:$0xff]
  %506 = vrot.lane.b32.xlu0 %v492, 110
  %v507 = vpop.permute.xlu0 %506
  %508 = vrot.lane.b32.xlu0 %v493, 110
  %v509 = vpop.permute.xlu0 %508
  %510 = vrot.lane.b32.xlu0 %v494, 110
  %v511 = vpop.permute.xlu0 %510
  %512 = vrot.lane.b32.xlu0 %v495, 110
  %v513 = vpop.permute.xlu0 %512
  %514 = vrot.lane.b32.xlu0 %v496, 110
  %v515 = vpop.permute.xlu0 %514
  %516 = vrot.lane.b32.xlu0 %v497, 110
  %v517 = vpop.permute.xlu0 %516
  %518 = vrot.lane.b32.xlu0 %v498, 110
  %v519 = vpop.permute.xlu0 %518
  %vm520 = vcmask 900096
  %v521 = vsel %vm520, %v507, %v509
  %v522 = vsel %vm520, %v509, %v511
  %v523 = vsel %vm520, %v511, %v513
  %v524 = vsel %vm520, %v513, %v515
  %v525 = vsel %vm520, %v515, %v517
  %v526 = vsel %vm520, %v517, %v519
  %533 = vst [vmem:[#allocation3 + $0xf0] sm:$0xff] %v521
  %534 = vst [vmem:[#allocation3 + $0xf8] sm:$0xff] %v522
  %535 = vst [vmem:[#allocation3 + $0x100] sm:$0xff] %v523
  %536 = vst [vmem:[#allocation3 + $0x108] sm:$0xff] %v524
  %537 = vst [vmem:[#allocation3 + $0x110] sm:$0xff] %v525
  %538 = vst [vmem:[#allocation3 + $0x118] sm:$0xff] %v526
  %v539 = vld [vmem:[#allocation2] sm:$0xff]
  %v540 = vld [vmem:[#allocation2 + $0x8] sm:$0xff]
  %v541 = vld [vmem:[#allocation2 + $0x10] sm:$0xff]
  %v542 = vld [vmem:[#allocation2 + $0x18] sm:$0xff]
  %v543 = vld [vmem:[#allocation2 + $0x20] sm:$0xff]
  %v544 = vld [vmem:[#allocation2 + $0x28] sm:$0xff]
  %v545 = vld [vmem:[#allocation2 + $0x30] sm:$0xff]
  %553 = vrot.lane.b32.xlu0 %v539, 96
  %v554 = vpop.permute.xlu0 %553
  %555 = vrot.lane.b32.xlu0 %v540, 96
  %v556 = vpop.permute.xlu0 %555
  %557 = vrot.lane.b32.xlu0 %v541, 96
  %v558 = vpop.permute.xlu0 %557
  %559 = vrot.lane.b32.xlu0 %v542, 96
  %v560 = vpop.permute.xlu0 %559
  %561 = vrot.lane.b32.xlu0 %v543, 96
  %v562 = vpop.permute.xlu0 %561
  %563 = vrot.lane.b32.xlu0 %v544, 96
  %v564 = vpop.permute.xlu0 %563
  %565 = vrot.lane.b32.xlu0 %v545, 96
  %v566 = vpop.permute.xlu0 %565
  %vm567 = vcmask 785408
  %v568 = vsel %vm567, %v554, %v556
  %v569 = vsel %vm567, %v556, %v558
  %v570 = vsel %vm567, %v558, %v560
  %v571 = vsel %vm567, %v560, %v562
  %v572 = vsel %vm567, %v562, %v564
  %v573 = vsel %vm567, %v564, %v566
  %580 = vst [vmem:[#allocation3 + $0x120] sm:$0xff] %v568
  %581 = vst [vmem:[#allocation3 + $0x128] sm:$0xff] %v569
  %582 = vst [vmem:[#allocation3 + $0x130] sm:$0xff] %v570
  %583 = vst [vmem:[#allocation3 + $0x138] sm:$0xff] %v571
  %584 = vst [vmem:[#allocation3 + $0x140] sm:$0xff] %v572
  %585 = vst [vmem:[#allocation3 + $0x148] sm:$0xff] %v573
  %v586 = vld [vmem:[#allocation2] sm:$0xff]
  %v587 = vld [vmem:[#allocation2 + $0x8] sm:$0xff]
  %v588 = vld [vmem:[#allocation2 + $0x10] sm:$0xff]
  %v589 = vld [vmem:[#allocation2 + $0x18] sm:$0xff]
  %v590 = vld [vmem:[#allocation2 + $0x20] sm:$0xff]
  %v591 = vld [vmem:[#allocation2 + $0x28] sm:$0xff]
  %v592 = vld [vmem:[#allocation2 + $0x30] sm:$0xff]
  %600 = vrot.lane.b32.xlu0 %v586, 95
  %v601 = vpop.permute.xlu0 %600
  %602 = vrot.lane.b32.xlu0 %v587, 95
  %v603 = vpop.permute.xlu0 %602
  %604 = vrot.lane.b32.xlu0 %v588, 95
  %v605 = vpop.permute.xlu0 %604
  %606 = vrot.lane.b32.xlu0 %v589, 95
  %v607 = vpop.permute.xlu0 %606
  %608 = vrot.lane.b32.xlu0 %v590, 95
  %v609 = vpop.permute.xlu0 %608
  %610 = vrot.lane.b32.xlu0 %v591, 95
  %v611 = vpop.permute.xlu0 %610
  %612 = vrot.lane.b32.xlu0 %v592, 95
  %v613 = vpop.permute.xlu0 %612
  %vm614 = vcmask 777216
  %v615 = vsel %vm614, %v601, %v603
  %v616 = vsel %vm614, %v603, %v605
  %v617 = vsel %vm614, %v605, %v607
  %v618 = vsel %vm614, %v607, %v609
  %v619 = vsel %vm614, %v609, %v611
  %v620 = vsel %vm614, %v611, %v613
  %627 = vst [vmem:[#allocation3 + $0x150] sm:$0xff] %v615
  %628 = vst [vmem:[#allocation3 + $0x158] sm:$0xff] %v616
  %629 = vst [vmem:[#allocation3 + $0x160] sm:$0xff] %v617
  %630 = vst [vmem:[#allocation3 + $0x168] sm:$0xff] %v618
  %631 = vst [vmem:[#allocation3 + $0x170] sm:$0xff] %v619
  %632 = vst [vmem:[#allocation3 + $0x178] sm:$0xff] %v620
  %v633 = vld [vmem:[#allocation2] sm:$0xff]
  %v634 = vld [vmem:[#allocation2 + $0x8] sm:$0xff]
  %v635 = vld [vmem:[#allocation2 + $0x10] sm:$0xff]
  %v636 = vld [vmem:[#allocation2 + $0x18] sm:$0xff]
  %v637 = vld [vmem:[#allocation2 + $0x20] sm:$0xff]
  %v638 = vld [vmem:[#allocation2 + $0x28] sm:$0xff]
  %v639 = vld [vmem:[#allocation2 + $0x30] sm:$0xff]
  %647 = vrot.lane.b32.xlu0 %v633, 94
  %v648 = vpop.permute.xlu0 %647
  %649 = vrot.lane.b32.xlu0 %v634, 94
  %v650 = vpop.permute.xlu0 %649
  %651 = vrot.lane.b32.xlu0 %v635, 94
  %v652 = vpop.permute.xlu0 %651
  %653 = vrot.lane.b32.xlu0 %v636, 94
  %v654 = vpop.permute.xlu0 %653
  %655 = vrot.lane.b32.xlu0 %v637, 94
  %v656 = vpop.permute.xlu0 %655
  %657 = vrot.lane.b32.xlu0 %v638, 94
  %v658 = vpop.permute.xlu0 %657
  %659 = vrot.lane.b32.xlu0 %v639, 94
  %v660 = vpop.permute.xlu0 %659
  %vm661 = vcmask 769024
  %v662 = vsel %vm661, %v648, %v650
  %v663 = vsel %vm661, %v650, %v652
  %v664 = vsel %vm661, %v652, %v654
  %v665 = vsel %vm661, %v654, %v656
  %v666 = vsel %vm661, %v656, %v658
  %v667 = vsel %vm661, %v658, %v660
  %674 = vst [vmem:[#allocation3 + $0x180] sm:$0xff] %v662
  %675 = vst [vmem:[#allocation3 + $0x188] sm:$0xff] %v663
  %676 = vst [vmem:[#allocation3 + $0x190] sm:$0xff] %v664
  %677 = vst [vmem:[#allocation3 + $0x198] sm:$0xff] %v665
  %678 = vst [vmem:[#allocation3 + $0x1a0] sm:$0xff] %v666
  %679 = vst [vmem:[#allocation3 + $0x1a8] sm:$0xff] %v667
  %v680 = vld [vmem:[%s6] sm:$0xf]
  %v681 = vld [vmem:[#allocation3] sm:$0xff]
  %v682 = vld [vmem:[#allocation3 + $0x8] sm:$0xff]
  %v683 = vld [vmem:[#allocation3 + $0x10] sm:$0xff]
  %v684 = vld [vmem:[#allocation3 + $0x18] sm:$0xff]
  %v685 = vld [vmem:[#allocation3 + $0x20] sm:$0xff]
  %v686 = vld [vmem:[#allocation3 + $0x28] sm:$0xff]
  %v687 = vld [vmem:[#allocation3 + $0x30] sm:$0xff]
  %v688 = vld [vmem:[#allocation3 + $0x38] sm:$0xff]
  %v689 = vld [vmem:[#allocation3 + $0x40] sm:$0xff]
  %v690 = vld [vmem:[#allocation3 + $0x48] sm:$0xff]
  %v691 = vld [vmem:[#allocation3 + $0x50] sm:$0xff]
  %v692 = vld [vmem:[#allocation3 + $0x58] sm:$0xff]
  %v693 = vld [vmem:[#allocation3 + $0x60] sm:$0xff]
  %v694 = vld [vmem:[#allocation3 + $0x68] sm:$0xff]
  %v695 = vld [vmem:[#allocation3 + $0x70] sm:$0xff]
  %v696 = vld [vmem:[#allocation3 + $0x78] sm:$0xff]
  %v697 = vld [vmem:[#allocation3 + $0x80] sm:$0xff]
  %v698 = vld [vmem:[#allocation3 + $0x88] sm:$0xff]
  %v699 = vld [vmem:[#allocation3 + $0x90] sm:$0xff]
  %v700 = vld [vmem:[#allocation3 + $0x98] sm:$0xff]
  %v701 = vld [vmem:[#allocation3 + $0xa0] sm:$0xff]
  %v702 = vld [vmem:[#allocation3 + $0xa8] sm:$0xff]
  %v703 = vld [vmem:[#allocation3 + $0xb0] sm:$0xff]
  %v704 = vld [vmem:[#allocation3 + $0xb8] sm:$0xff]
  %v705 = vld [vmem:[#allocation3 + $0xc0] sm:$0xff]
  %v706 = vld [vmem:[#allocation3 + $0xc8] sm:$0xff]
  %v707 = vld [vmem:[#allocation3 + $0xd0] sm:$0xff]
  %v708 = vld [vmem:[#allocation3 + $0xd8] sm:$0xff]
  %v709 = vld [vmem:[#allocation3 + $0xe0] sm:$0xff]
  %v710 = vld [vmem:[#allocation3 + $0xe8] sm:$0xff]
  %v711 = vld [vmem:[#allocation3 + $0xf0] sm:$0xff]
  %v712 = vld [vmem:[#allocation3 + $0xf8] sm:$0xff]
  %v713 = vld [vmem:[#allocation3 + $0x100] sm:$0xff]
  %v714 = vld [vmem:[#allocation3 + $0x108] sm:$0xff]
  %v715 = vld [vmem:[#allocation3 + $0x110] sm:$0xff]
  %v716 = vld [vmem:[#allocation3 + $0x118] sm:$0xff]
  %v717 = vld [vmem:[#allocation3 + $0x120] sm:$0xff]
  %v718 = vld [vmem:[#allocation3 + $0x128] sm:$0xff]
  %v719 = vld [vmem:[#allocation3 + $0x130] sm:$0xff]
  %v720 = vld [vmem:[#allocation3 + $0x138] sm:$0xff]
  %v721 = vld [vmem:[#allocation3 + $0x140] sm:$0xff]
  %v722 = vld [vmem:[#allocation3 + $0x148] sm:$0xff]
  %v723 = vld [vmem:[#allocation3 + $0x150] sm:$0xff]
  %v724 = vld [vmem:[#allocation3 + $0x158] sm:$0xff]
  %v725 = vld [vmem:[#allocation3 + $0x160] sm:$0xff]
  %v726 = vld [vmem:[#allocation3 + $0x168] sm:$0xff]
  %v727 = vld [vmem:[#allocation3 + $0x170] sm:$0xff]
  %v728 = vld [vmem:[#allocation3 + $0x178] sm:$0xff]
  %v729 = vld [vmem:[#allocation3 + $0x180] sm:$0xff]
  %v730 = vld [vmem:[#allocation3 + $0x188] sm:$0xff]
  %v731 = vld [vmem:[#allocation3 + $0x190] sm:$0xff]
  %v732 = vld [vmem:[#allocation3 + $0x198] sm:$0xff]
  %v733 = vld [vmem:[#allocation3 + $0x1a0] sm:$0xff]
  %v734 = vld [vmem:[#allocation3 + $0x1a8] sm:$0xff]
  %v735 = vpack.c.bf16 %v687, %v681
  %v736 = vpack.c.bf16 %v688, %v682
  %v737 = vpack.c.bf16 %v689, %v683
  %v738 = vpack.c.bf16 %v690, %v684
  %v739 = vpack.c.bf16 %v691, %v685
  %v740 = vpack.c.bf16 %v692, %v686
  %v741 = vpack.c.bf16 %v699, %v693
  %v742 = vpack.c.bf16 %v700, %v694
  %v743 = vpack.c.bf16 %v701, %v695
  %v744 = vpack.c.bf16 %v702, %v696
  %v745 = vpack.c.bf16 %v703, %v697
  %v746 = vpack.c.bf16 %v704, %v698
  %v747 = vpack.c.bf16 %v711, %v705
  %v748 = vpack.c.bf16 %v712, %v706
  %v749 = vpack.c.bf16 %v713, %v707
  %v750 = vpack.c.bf16 %v714, %v708
  %v751 = vpack.c.bf16 %v715, %v709
  %v752 = vpack.c.bf16 %v716, %v710
  %v753 = vpack.c.bf16 %v723, %v717
  %v754 = vpack.c.bf16 %v724, %v718
  %v755 = vpack.c.bf16 %v725, %v719
  %v756 = vpack.c.bf16 %v726, %v720
  %v757 = vpack.c.bf16 %v727, %v721
  %v758 = vpack.c.bf16 %v728, %v722
  %v759 = vpack.c.bf16 %v729, %v729
  %v760 = vpack.c.bf16 %v730, %v730
  %v761 = vpack.c.bf16 %v731, %v731
  %v762 = vpack.c.bf16 %v732, %v732
  %v763 = vpack.c.bf16 %v733, %v733
  %v764 = vpack.c.bf16 %v734, %v734
  %v765 = vld [vmem:[%s7] sm:$0xff]
  %767 = vset.pattern.permute.xlu0 0
  %768 = vperm.xlu0 %767, %v765
  %v769 = vpop.permute.xlu0 %768
  %vm771 = vcmask 588800
  %v773 = vsel %vm771, %v680, 0
  %vm775 = vcmask 1043456
  %v777 = vsel %vm775, %v759, 0
  %v780 = vsel %vm775, %v760, 0
  %v783 = vsel %vm775, %v761, 0
  %v786 = vsel %vm775, %v762, 0
  %v789 = vsel %vm775, %v763, 0
  %v792 = vsel %vm775, %v764, 0
  %794 = vmatprep.subr.bf16.mxu0 %v736
  %795 = vmatpush1.bf16.msra.mxu0 %v735
  %796 = vmatprep.subr.bf16.mxu0 %v742
  %797 = vmatpush1.bf16.msra.mxu0 %v741
  %798 = vmatprep.subr.bf16.mxu0 %v748
  %799 = vmatpush1.bf16.msra.mxu0 %v747
  %800 = vmatprep.subr.bf16.mxu0 %v754
  %801 = vmatpush1.bf16.msra.mxu0 %v753
  %802 = vmatprep.subr.bf16.mxu0 %v780
  %803 = vmatpush1.bf16.msra.mxu0 %v777
  %804 = vmatprep.subr.bf16.mxu0 0
  %805 = vmatpush1.bf16.msra.mxu0 0
  %806 = vmatprep.subr.bf16.mxu0 0
  %807 = vmatpush1.bf16.msra.mxu0 0
  %808 = vmatprep.subr.bf16.mxu0 0
  %809 = vmatpush1.bf16.msra.mxu0 0
  %810 = vmatprep.subr.bf16.mxu0 0
  %811 = vmatpush1.bf16.msra.mxu0 0
  %812 = vmatprep.subr.bf16.mxu0 0
  %813 = vmatpush1.bf16.msra.mxu0 0
  %814 = vmatprep.subr.bf16.mxu0 0
  %815 = vmatpush1.bf16.msra.mxu0 0
  %816 = vmatprep.subr.bf16.mxu0 0
  %817 = vmatpush1.bf16.msra.mxu0 0
  %818 = vmatprep.subr.bf16.mxu0 0
  %819 = vmatpush1.bf16.msra.mxu0 0
  %820 = vmatprep.subr.bf16.mxu0 0
  %821 = vmatpush1.bf16.msra.mxu0 0
  %822 = vmatprep.subr.bf16.mxu0 0
  %823 = vmatpush1.bf16.msra.mxu0 0
  %824 = vmatprep.subr.bf16.mxu0 0
  %825 = vmatpush1.bf16.msra.mxu0 0
  %826 = vmatprep.mubr.bf16.mxu0 0
  %827 = vmatmul.mubr.bf16.gmra.mrb[0].mxu0 %v773
  %v828 = vpop.f32.mrb[0].mxu0
  %v829 = vadd.f32 %v769, %v828
  %v830 = vpop.f32.mrb[0].mxu0
  %v831 = vadd.f32 %v769, %v830
  %v832 = vpop.f32.mrb[0].mxu0
  %v833 = vpop.f32.mrb[0].mxu0
  %834 = vdwg.mxu0
  %835 = vmatprep.subr.bf16.mxu0 %v738
  %836 = vmatpush1.bf16.msra.mxu0 %v737
  %837 = vmatprep.subr.bf16.mxu0 %v744
  %838 = vmatpush1.bf16.msra.mxu0 %v743
  %839 = vmatprep.subr.bf16.mxu0 %v750
  %840 = vmatpush1.bf16.msra.mxu0 %v749
  %841 = vmatprep.subr.bf16.mxu0 %v756
  %842 = vmatpush1.bf16.msra.mxu0 %v755
  %843 = vmatprep.subr.bf16.mxu0 %v786
  %844 = vmatpush1.bf16.msra.mxu0 %v783
  %845 = vmatprep.subr.bf16.mxu0 0
  %846 = vmatpush1.bf16.msra.mxu0 0
  %847 = vmatprep.subr.bf16.mxu0 0
  %848 = vmatpush1.bf16.msra.mxu0 0
  %849 = vmatprep.subr.bf16.mxu0 0
  %850 = vmatpush1.bf16.msra.mxu0 0
  %851 = vmatprep.subr.bf16.mxu0 0
  %852 = vmatpush1.bf16.msra.mxu0 0
  %853 = vmatprep.subr.bf16.mxu0 0
  %854 = vmatpush1.bf16.msra.mxu0 0
  %855 = vmatprep.subr.bf16.mxu0 0
  %856 = vmatpush1.bf16.msra.mxu0 0
  %857 = vmatprep.subr.bf16.mxu0 0
  %858 = vmatpush1.bf16.msra.mxu0 0
  %859 = vmatprep.subr.bf16.mxu0 0
  %860 = vmatpush1.bf16.msra.mxu0 0
  %861 = vmatprep.subr.bf16.mxu0 0
  %862 = vmatpush1.bf16.msra.mxu0 0
  %863 = vmatprep.subr.bf16.mxu0 0
  %864 = vmatpush1.bf16.msra.mxu0 0
  %865 = vmatprep.subr.bf16.mxu0 0
  %866 = vmatpush1.bf16.msra.mxu0 0
  %867 = vmatprep.mubr.bf16.mxu0 0
  %868 = vmatmul.mubr.bf16.gmra.mrb[0].mxu0 %v773
  %v869 = vpop.f32.mrb[0].mxu0
  %v870 = vadd.f32 %v769, %v869
  %v871 = vpop.f32.mrb[0].mxu0
  %v872 = vadd.f32 %v769, %v871
  %v873 = vpop.f32.mrb[0].mxu0
  %v874 = vpop.f32.mrb[0].mxu0
  %875 = vdwg.mxu0
  %876 = vmatprep.subr.bf16.mxu0 %v740
  %877 = vmatpush1.bf16.msra.mxu0 %v739
  %878 = vmatprep.subr.bf16.mxu0 %v746
  %879 = vmatpush1.bf16.msra.mxu0 %v745
  %880 = vmatprep.subr.bf16.mxu0 %v752
  %881 = vmatpush1.bf16.msra.mxu0 %v751
  %882 = vmatprep.subr.bf16.mxu0 %v758
  %883 = vmatpush1.bf16.msra.mxu0 %v757
  %884 = vmatprep.subr.bf16.mxu0 %v792
  %885 = vmatpush1.bf16.msra.mxu0 %v789
  %886 = vmatprep.subr.bf16.mxu0 0
  %887 = vmatpush1.bf16.msra.mxu0 0
  %888 = vmatprep.subr.bf16.mxu0 0
  %889 = vmatpush1.bf16.msra.mxu0 0
  %890 = vmatprep.subr.bf16.mxu0 0
  %891 = vmatpush1.bf16.msra.mxu0 0
  %892 = vmatprep.subr.bf16.mxu0 0
  %893 = vmatpush1.bf16.msra.mxu0 0
  %894 = vmatprep.subr.bf16.mxu0 0
  %895 = vmatpush1.bf16.msra.mxu0 0
  %896 = vmatprep.subr.bf16.mxu0 0
  %897 = vmatpush1.bf16.msra.mxu0 0
  %898 = vmatprep.subr.bf16.mxu0 0
  %899 = vmatpush1.bf16.msra.mxu0 0
  %900 = vmatprep.subr.bf16.mxu0 0
  %901 = vmatpush1.bf16.msra.mxu0 0
  %902 = vmatprep.subr.bf16.mxu0 0
  %903 = vmatpush1.bf16.msra.mxu0 0
  %904 = vmatprep.subr.bf16.mxu0 0
  %905 = vmatpush1.bf16.msra.mxu0 0
  %906 = vmatprep.subr.bf16.mxu0 0
  %907 = vmatpush1.bf16.msra.mxu0 0
  %908 = vmatprep.mubr.bf16.mxu0 0
  %909 = vmatmul.mubr.bf16.gmra.mrb[0].mxu0 %v773
  %v910 = vpop.f32.mrb[0].mxu0
  %v911 = vadd.f32 %v769, %v910
  %v912 = vpop.f32.mrb[0].mxu0
  %v913 = vadd.f32 %v769, %v912
  %v914 = vpop.f32.mrb[0].mxu0
  %v915 = vpop.f32.mrb[0].mxu0
  %916 = vdwg.mxu0
  %917 = vst [vmem:[#allocation2] sm:$0xff] %v829
  %918 = vst [vmem:[#allocation2 + $0x8] sm:$0xff] %v831
  %919 = vst [vmem:[#allocation2 + $0x10] sm:$0xff] %v870
  %920 = vst [vmem:[#allocation2 + $0x18] sm:$0xff] %v872
  %921 = vst [vmem:[#allocation2 + $0x20] sm:$0xff] %v911
  %922 = vst [vmem:[#allocation2 + $0x28] sm:$0xff] %v913
  %v923 = vld [vmem:[#allocation2] sm:$0xff]
  %v924 = vld [vmem:[#allocation2 + $0x8] sm:$0xff]
  %v925 = vld [vmem:[#allocation2 + $0x10] sm:$0xff]
  %v926 = vld [vmem:[#allocation2 + $0x18] sm:$0xff]
  %v927 = vld [vmem:[#allocation2 + $0x20] sm:$0xff]
  %v928 = vld [vmem:[#allocation2 + $0x28] sm:$0xff]
  %v929 = vld [vmem:[#allocation2 + $0x30] sm:$0xff]
  %937 = vrot.lane.b32.xlu0 %v923, 127
  %v938 = vpop.permute.xlu0 %937
  %939 = vrot.lane.b32.xlu0 %v924, 127
  %v940 = vpop.permute.xlu0 %939
  %941 = vrot.lane.b32.xlu0 %v925, 127
  %v942 = vpop.permute.xlu0 %941
  %943 = vrot.lane.b32.xlu0 %v926, 127
  %v944 = vpop.permute.xlu0 %943
  %945 = vrot.lane.b32.xlu0 %v927, 127
  %v946 = vpop.permute.xlu0 %945
  %947 = vrot.lane.b32.xlu0 %v928, 127
  %v948 = vpop.permute.xlu0 %947
  %949 = vrot.lane.b32.xlu0 %v929, 127
  %v950 = vpop.permute.xlu0 %949
  %v951 = vsel %vm332, %v938, %v940
  %v952 = vsel %vm332, %v940, %v942
  %v953 = vsel %vm332, %v942, %v944
  %v954 = vsel %vm332, %v944, %v946
  %v955 = vsel %vm332, %v946, %v948
  %v956 = vsel %vm332, %v948, %v950
  %v963 = vmax.f32 %v829, %v951
  %v964 = vmax.f32 %v831, %v952
  %v965 = vmax.f32 %v870, %v953
  %v966 = vmax.f32 %v872, %v954
  %v967 = vmax.f32 %v911, %v955
  %v968 = vmax.f32 %v913, %v956
  %969 = vrot.lane.b32.xlu0 %v923, 126
  %v970 = vpop.permute.xlu0 %969
  %971 = vrot.lane.b32.xlu0 %v924, 126
  %v972 = vpop.permute.xlu0 %971
  %973 = vrot.lane.b32.xlu0 %v925, 126
  %v974 = vpop.permute.xlu0 %973
  %975 = vrot.lane.b32.xlu0 %v926, 126
  %v976 = vpop.permute.xlu0 %975
  %977 = vrot.lane.b32.xlu0 %v927, 126
  %v978 = vpop.permute.xlu0 %977
  %979 = vrot.lane.b32.xlu0 %v928, 126
  %v980 = vpop.permute.xlu0 %979
  %981 = vrot.lane.b32.xlu0 %v929, 126
  %v982 = vpop.permute.xlu0 %981
  %v983 = vsel %vm379, %v970, %v972
  %v984 = vsel %vm379, %v972, %v974
  %v985 = vsel %vm379, %v974, %v976
  %v986 = vsel %vm379, %v976, %v978
  %v987 = vsel %vm379, %v978, %v980
  %v988 = vsel %vm379, %v980, %v982
  %v995 = vmax.f32 %v963, %v983
  %v996 = vmax.f32 %v964, %v984
  %v997 = vmax.f32 %v965, %v985
  %v998 = vmax.f32 %v966, %v986
  %v999 = vmax.f32 %v967, %v987
  %v1000 = vmax.f32 %v968, %v988
  %1001 = vrot.lane.b32.xlu0 %v923, 112
  %v1002 = vpop.permute.xlu0 %1001
  %1003 = vrot.lane.b32.xlu0 %v924, 112
  %v1004 = vpop.permute.xlu0 %1003
  %1005 = vrot.lane.b32.xlu0 %v925, 112
  %v1006 = vpop.permute.xlu0 %1005
  %1007 = vrot.lane.b32.xlu0 %v926, 112
  %v1008 = vpop.permute.xlu0 %1007
  %1009 = vrot.lane.b32.xlu0 %v927, 112
  %v1010 = vpop.permute.xlu0 %1009
  %1011 = vrot.lane.b32.xlu0 %v928, 112
  %v1012 = vpop.permute.xlu0 %1011
  %1013 = vrot.lane.b32.xlu0 %v929, 112
  %v1014 = vpop.permute.xlu0 %1013
  %v1015 = vsel %vm426, %v1002, %v1004
  %v1016 = vsel %vm426, %v1004, %v1006
  %v1017 = vsel %vm426, %v1006, %v1008
  %v1018 = vsel %vm426, %v1008, %v1010
  %v1019 = vsel %vm426, %v1010, %v1012
  %v1020 = vsel %vm426, %v1012, %v1014
  %v1027 = vmax.f32 %v995, %v1015
  %v1028 = vmax.f32 %v996, %v1016
  %v1029 = vmax.f32 %v997, %v1017
  %v1030 = vmax.f32 %v998, %v1018
  %v1031 = vmax.f32 %v999, %v1019
  %v1032 = vmax.f32 %v1000, %v1020
  %1033 = vrot.lane.b32.xlu0 %v923, 111
  %v1034 = vpop.permute.xlu0 %1033
  %1035 = vrot.lane.b32.xlu0 %v924, 111
  %v1036 = vpop.permute.xlu0 %1035
  %1037 = vrot.lane.b32.xlu0 %v925, 111
  %v1038 = vpop.permute.xlu0 %1037
  %1039 = vrot.lane.b32.xlu0 %v926, 111
  %v1040 = vpop.permute.xlu0 %1039
  %1041 = vrot.lane.b32.xlu0 %v927, 111
  %v1042 = vpop.permute.xlu0 %1041
  %1043 = vrot.lane.b32.xlu0 %v928, 111
  %v1044 = vpop.permute.xlu0 %1043
  %1045 = vrot.lane.b32.xlu0 %v929, 111
  %v1046 = vpop.permute.xlu0 %1045
  %v1047 = vsel %vm473, %v1034, %v1036
  %v1048 = vsel %vm473, %v1036, %v1038
  %v1049 = vsel %vm473, %v1038, %v1040
  %v1050 = vsel %vm473, %v1040, %v1042
  %v1051 = vsel %vm473, %v1042, %v1044
  %v1052 = vsel %vm473, %v1044, %v1046
  %v1059 = vmax.f32 %v1027, %v1047
  %v1060 = vmax.f32 %v1028, %v1048
  %v1061 = vmax.f32 %v1029, %v1049
  %v1062 = vmax.f32 %v1030, %v1050
  %v1063 = vmax.f32 %v1031, %v1051
  %v1064 = vmax.f32 %v1032, %v1052
  %1065 = vrot.lane.b32.xlu0 %v923, 110
  %v1066 = vpop.permute.xlu0 %1065
  %1067 = vrot.lane.b32.xlu0 %v924, 110
  %v1068 = vpop.permute.xlu0 %1067
  %1069 = vrot.lane.b32.xlu0 %v925, 110
  %v1070 = vpop.permute.xlu0 %1069
  %1071 = vrot.lane.b32.xlu0 %v926, 110
  %v1072 = vpop.permute.xlu0 %1071
  %1073 = vrot.lane.b32.xlu0 %v927, 110
  %v1074 = vpop.permute.xlu0 %1073
  %1075 = vrot.lane.b32.xlu0 %v928, 110
  %v1076 = vpop.permute.xlu0 %1075
  %1077 = vrot.lane.b32.xlu0 %v929, 110
  %v1078 = vpop.permute.xlu0 %1077
  %v1079 = vsel %vm520, %v1066, %v1068
  %v1080 = vsel %vm520, %v1068, %v1070
  %v1081 = vsel %vm520, %v1070, %v1072
  %v1082 = vsel %vm520, %v1072, %v1074
  %v1083 = vsel %vm520, %v1074, %v1076
  %v1084 = vsel %vm520, %v1076, %v1078
  %v1091 = vmax.f32 %v1059, %v1079
  %v1092 = vmax.f32 %v1060, %v1080
  %v1093 = vmax.f32 %v1061, %v1081
  %v1094 = vmax.f32 %v1062, %v1082
  %v1095 = vmax.f32 %v1063, %v1083
  %v1096 = vmax.f32 %v1064, %v1084
  %1097 = vrot.lane.b32.xlu0 %v923, 96
  %v1098 = vpop.permute.xlu0 %1097
  %1099 = vrot.lane.b32.xlu0 %v924, 96
  %v1100 = vpop.permute.xlu0 %1099
  %1101 = vrot.lane.b32.xlu0 %v925, 96
  %v1102 = vpop.permute.xlu0 %1101
  %1103 = vrot.lane.b32.xlu0 %v926, 96
  %v1104 = vpop.permute.xlu0 %1103
  %1105 = vrot.lane.b32.xlu0 %v927, 96
  %v1106 = vpop.permute.xlu0 %1105
  %1107 = vrot.lane.b32.xlu0 %v928, 96
  %v1108 = vpop.permute.xlu0 %1107
  %1109 = vrot.lane.b32.xlu0 %v929, 96
  %v1110 = vpop.permute.xlu0 %1109
  %v1111 = vsel %vm567, %v1098, %v1100
  %v1112 = vsel %vm567, %v1100, %v1102
  %v1113 = vsel %vm567, %v1102, %v1104
  %v1114 = vsel %vm567, %v1104, %v1106
  %v1115 = vsel %vm567, %v1106, %v1108
  %v1116 = vsel %vm567, %v1108, %v1110
  %v1123 = vmax.f32 %v1091, %v1111
  %v1124 = vmax.f32 %v1092, %v1112
  %v1125 = vmax.f32 %v1093, %v1113
  %v1126 = vmax.f32 %v1094, %v1114
  %v1127 = vmax.f32 %v1095, %v1115
  %v1128 = vmax.f32 %v1096, %v1116
  %1129 = vrot.lane.b32.xlu0 %v923, 95
  %v1130 = vpop.permute.xlu0 %1129
  %1131 = vrot.lane.b32.xlu0 %v924, 95
  %v1132 = vpop.permute.xlu0 %1131
  %1133 = vrot.lane.b32.xlu0 %v925, 95
  %v1134 = vpop.permute.xlu0 %1133
  %1135 = vrot.lane.b32.xlu0 %v926, 95
  %v1136 = vpop.permute.xlu0 %1135
  %1137 = vrot.lane.b32.xlu0 %v927, 95
  %v1138 = vpop.permute.xlu0 %1137
  %1139 = vrot.lane.b32.xlu0 %v928, 95
  %v1140 = vpop.permute.xlu0 %1139
  %1141 = vrot.lane.b32.xlu0 %v929, 95
  %v1142 = vpop.permute.xlu0 %1141
  %v1143 = vsel %vm614, %v1130, %v1132
  %v1144 = vsel %vm614, %v1132, %v1134
  %v1145 = vsel %vm614, %v1134, %v1136
  %v1146 = vsel %vm614, %v1136, %v1138
  %v1147 = vsel %vm614, %v1138, %v1140
  %v1148 = vsel %vm614, %v1140, %v1142
  %v1155 = vmax.f32 %v1123, %v1143
  %v1156 = vmax.f32 %v1124, %v1144
  %v1157 = vmax.f32 %v1125, %v1145
  %v1158 = vmax.f32 %v1126, %v1146
  %v1159 = vmax.f32 %v1127, %v1147
  %v1160 = vmax.f32 %v1128, %v1148
  %1161 = vrot.lane.b32.xlu0 %v923, 94
  %v1162 = vpop.permute.xlu0 %1161
  %1163 = vrot.lane.b32.xlu0 %v924, 94
  %v1164 = vpop.permute.xlu0 %1163
  %1165 = vrot.lane.b32.xlu0 %v925, 94
  %v1166 = vpop.permute.xlu0 %1165
  %1167 = vrot.lane.b32.xlu0 %v926, 94
  %v1168 = vpop.permute.xlu0 %1167
  %1169 = vrot.lane.b32.xlu0 %v927, 94
  %v1170 = vpop.permute.xlu0 %1169
  %1171 = vrot.lane.b32.xlu0 %v928, 94
  %v1172 = vpop.permute.xlu0 %1171
  %1173 = vrot.lane.b32.xlu0 %v929, 94
  %v1174 = vpop.permute.xlu0 %1173
  %v1175 = vsel %vm661, %v1162, %v1164
  %v1176 = vsel %vm661, %v1164, %v1166
  %v1177 = vsel %vm661, %v1166, %v1168
  %v1178 = vsel %vm661, %v1168, %v1170
  %v1179 = vsel %vm661, %v1170, %v1172
  %v1180 = vsel %vm661, %v1172, %v1174
  %v1187 = vmax.f32 %v1155, %v1175
  %v1188 = vmax.f32 %v1156, %v1176
  %v1189 = vmax.f32 %v1157, %v1177
  %v1190 = vmax.f32 %v1158, %v1178
  %v1191 = vmax.f32 %v1159, %v1179
  %v1192 = vmax.f32 %v1160, %v1180
  %v1193 = vld [vmem:[%s10] sm:$0x3f]
  %v1195 = vlaneseq
  %v1196 = vshrl.u32 %v1195, 7
  %v1197 = vsub.s32 0, %v1196
  %v1198 = vrot.slane %v1193, %v1197
  %v1199 = vlaneseq
  %v1200 = vshrl.u32 %v1199, 7
  %v1201 = vsub.s32 1, %v1200
  %v1202 = vrot.slane %v1193, %v1201
  %v1203 = vlaneseq
  %v1204 = vshrl.u32 %v1203, 7
  %v1205 = vsub.s32 2, %v1204
  %v1206 = vrot.slane %v1193, %v1205
  %v1207 = vlaneseq
  %v1208 = vshrl.u32 %v1207, 7
  %v1209 = vsub.s32 3, %v1208
  %v1210 = vrot.slane %v1193, %v1209
  %v1211 = vlaneseq
  %v1212 = vshrl.u32 %v1211, 7
  %v1213 = vsub.s32 4, %v1212
  %v1214 = vrot.slane %v1193, %v1213
  %v1215 = vlaneseq
  %v1216 = vshrl.u32 %v1215, 7
  %v1217 = vsub.s32 5, %v1216
  %v1218 = vrot.slane %v1193, %v1217
  %v1225 = vmul.f32 %v1187, %v1198
  %v1226 = vmul.f32 %v1188, %v1202
  %v1227 = vmul.f32 %v1189, %v1206
  %v1228 = vmul.f32 %v1190, %v1210
  %v1229 = vmul.f32 %v1191, %v1214
  %v1230 = vmul.f32 %v1192, %v1218
  %v1231 = vadd.f32 %v1225, %v1226
  %v1232 = vadd.f32 %v1231, %v1227
  %v1233 = vadd.f32 %v1232, %v1228
  %v1234 = vadd.f32 %v1233, %v1229
  %v1235 = vadd.f32 %v1234, %v1230
  %1236 = vadd.xlane.f32.xlu0 %v1235
  %v1237 = vpop.xlane.xlu0 %1236
  %v1238 = vmul.f32 %v1237, 0.013888889
  %v1239 = vmul.f32 %v1225, %v1187
  %v1240 = vmul.f32 %v1226, %v1188
  %v1241 = vmul.f32 %v1227, %v1189
  %v1242 = vmul.f32 %v1228, %v1190
  %v1243 = vmul.f32 %v1229, %v1191
  %v1244 = vmul.f32 %v1230, %v1192
  %v1245 = vadd.f32 %v1239, %v1240
  %v1246 = vadd.f32 %v1245, %v1241
  %v1247 = vadd.f32 %v1246, %v1242
  %v1248 = vadd.f32 %v1247, %v1243
  %v1249 = vadd.f32 %v1248, %v1244
  %1250 = vadd.xlane.f32.xlu0 %v1249
  %v1251 = vpop.xlane.xlu0 %1250
  %v1252 = vmul.f32 %v1251, 0.013888889
  %v1253 = vmul.f32 %v1238, %v1238
  %v1254 = vsub.f32 %v1252, %v1253
  %v1255 = vmax.f32 %v1254, 0.0
  %v1256 = vsub.f32 %v1187, %v1238
  %v1257 = vsub.f32 %v1188, %v1238
  %v1258 = vsub.f32 %v1189, %v1238
  %v1259 = vsub.f32 %v1190, %v1238
  %v1260 = vsub.f32 %v1191, %v1238
  %v1261 = vsub.f32 %v1192, %v1238
  %v1262 = vadd.f32 %v1255, 1e-05
  %v1263 = vrsqrt.pop %v1262
  %v1264 = vmul.f32 %v1256, %v1263
  %v1265 = vmul.f32 %v1257, %v1263
  %v1266 = vmul.f32 %v1258, %v1263
  %v1267 = vmul.f32 %v1259, %v1263
  %v1268 = vmul.f32 %v1260, %v1263
  %v1269 = vmul.f32 %v1261, %v1263
  %v1270 = vld [vmem:[%s8] sm:$0xff]
  %1272 = vset.pattern.permute.xlu0 0
  %1273 = vperm.xlu0 %1272, %v1270
  %v1274 = vpop.permute.xlu0 %1273
  %v1276 = vmul.f32 %v1264, %v1274
  %v1277 = vmul.f32 %v1265, %v1274
  %v1278 = vmul.f32 %v1266, %v1274
  %v1279 = vmul.f32 %v1267, %v1274
  %v1280 = vmul.f32 %v1268, %v1274
  %v1281 = vmul.f32 %v1269, %v1274
  %v1282 = vld [vmem:[%s9] sm:$0xff]
  %1284 = vset.pattern.permute.xlu0 0
  %1285 = vperm.xlu0 %1284, %v1282
  %v1286 = vpop.permute.xlu0 %1285
  %v1288 = vadd.f32 %v1276, %v1286
  %v1289 = vadd.f32 %v1277, %v1286
  %v1290 = vadd.f32 %v1278, %v1286
  %v1291 = vadd.f32 %v1279, %v1286
  %v1292 = vadd.f32 %v1280, %v1286
  %v1293 = vadd.f32 %v1281, %v1286
  %v1294 = vmax.f32 %v1288, 0.0
  %v1295 = vmax.f32 %v1289, 0.0
  %v1296 = vmax.f32 %v1290, 0.0
  %v1297 = vmax.f32 %v1291, 0.0
  %v1298 = vmax.f32 %v1292, 0.0
  %v1299 = vmax.f32 %v1293, 0.0
  %1300 = vst [vmem:[#allocation2] sm:$0xff] %v1294
  %1301 = vst [vmem:[#allocation2 + $0x8] sm:$0xff] %v1295
  %1302 = vst [vmem:[#allocation2 + $0x10] sm:$0xff] %v1296
  %1303 = vst [vmem:[#allocation2 + $0x18] sm:$0xff] %v1297
  %1304 = vst [vmem:[#allocation2 + $0x20] sm:$0xff] %v1298
  %1305 = vst [vmem:[#allocation2 + $0x28] sm:$0xff] %v1299
  %v1306 = vld [vmem:[#allocation2] sm:$0xff]
  %v1307 = vld [vmem:[#allocation2 + $0x8] sm:$0xff]
  %v1308 = vld [vmem:[#allocation2 + $0x10] sm:$0xff]
  %v1309 = vld [vmem:[#allocation2 + $0x18] sm:$0xff]
  %v1310 = vld [vmem:[#allocation2 + $0x20] sm:$0xff]
  %v1311 = vld [vmem:[#allocation2 + $0x28] sm:$0xff]
  %v1312 = vld [vmem:[%s11] sm:$0xff]
  %v1313 = vmul.f32 %v1306, %v1306
  %v1314 = vmul.f32 %v1307, %v1307
  %v1315 = vmul.f32 %v1308, %v1308
  %v1316 = vmul.f32 %v1309, %v1309
  %v1317 = vmul.f32 %v1310, %v1310
  %v1318 = vmul.f32 %v1311, %v1311
  %vm1319 = vcmask 64512
  %v1321 = vsel %vm1319, %v1312, 0
  %1323 = vmatprep.subr.mxu0 %v1314
  %1324 = vmatpush1.msra.mxu0 %v1313
  %1325 = vmatprep.subr.mxu0 0.0
  %1326 = vmatpush1.msra.mxu0 0.0
  %1327 = vmatprep.subr.mxu0 0.0
  %1328 = vmatpush1.msra.mxu0 0.0
  %1329 = vmatprep.subr.mxu0 0.0
  %1330 = vmatpush1.msra.mxu0 0.0
  %1331 = vmatprep.subr.mxu0 0.0
  %1332 = vmatpush1.msra.mxu0 0.0
  %1333 = vmatprep.subr.mxu0 0.0
  %1334 = vmatpush1.msra.mxu0 0.0
  %1335 = vmatprep.subr.mxu0 0.0
  %1336 = vmatpush1.msra.mxu0 0.0
  %1337 = vmatprep.subr.mxu0 0.0
  %1338 = vmatpush1.msra.mxu0 0.0
  %1339 = vmatprep.subr.mxu0 0.0
  %1340 = vmatpush1.msra.mxu0 0.0
  %1341 = vmatprep.subr.mxu0 0.0
  %1342 = vmatpush1.msra.mxu0 0.0
  %1343 = vmatprep.subr.mxu0 0.0
  %1344 = vmatpush1.msra.mxu0 0.0
  %1345 = vmatprep.subr.mxu0 0.0
  %1346 = vmatpush1.msra.mxu0 0.0
  %1347 = vmatprep.subr.mxu0 0.0
  %1348 = vmatpush1.msra.mxu0 0.0
  %1349 = vmatprep.subr.mxu0 0.0
  %1350 = vmatpush1.msra.mxu0 0.0
  %1351 = vmatprep.subr.mxu0 0.0
  %1352 = vmatpush1.msra.mxu0 0.0
  %1353 = vmatprep.subr.mxu0 0.0
  %1354 = vmatpush1.msra.mxu0 0.0
  %1355 = vmatprep.subr.mxu0 0.0
  %1356 = vmatpush1.msra.mxu0 0.0
  %1357 = vmatprep.subr.mxu0 0.0
  %1358 = vmatpush1.msra.mxu0 0.0
  %1359 = vmatprep.subr.mxu0 0.0
  %1360 = vmatpush1.msra.mxu0 0.0
  %1361 = vmatprep.subr.mxu0 0.0
  %1362 = vmatpush1.msra.mxu0 0.0
  %1363 = vmatprep.subr.mxu0 0.0
  %1364 = vmatpush1.msra.mxu0 0.0
  %1365 = vmatprep.subr.mxu0 0.0
  %1366 = vmatpush1.msra.mxu0 0.0
  %1367 = vmatprep.subr.mxu0 0.0
  %1368 = vmatpush1.msra.mxu0 0.0
  %1369 = vmatprep.subr.mxu0 0.0
  %1370 = vmatpush1.msra.mxu0 0.0
  %1371 = vmatprep.subr.mxu0 0.0
  %1372 = vmatpush1.msra.mxu0 0.0
  %1373 = vmatprep.subr.mxu0 0.0
  %1374 = vmatpush1.msra.mxu0 0.0
  %1375 = vmatprep.subr.mxu0 0.0
  %1376 = vmatpush1.msra.mxu0 0.0
  %1377 = vmatprep.subr.mxu0 0.0
  %1378 = vmatpush1.msra.mxu0 0.0
  %1379 = vmatprep.subr.mxu0 0.0
  %1380 = vmatpush1.msra.mxu0 0.0
  %1381 = vmatprep.subr.mxu0 0.0
  %1382 = vmatpush1.msra.mxu0 0.0
  %1383 = vmatprep.subr.mxu0 0.0
  %1384 = vmatpush1.msra.mxu0 0.0
  %1385 = vmatprep.subr.mxu0 0.0
  %1386 = vmatpush1.msra.mxu0 0.0
  %1387 = vmatprep.mubr.f32.mxu0 0.0
  %1388 = vmatmul.mubr.f32.gmra.mrb[0].mxu0 %v1321
  %v1389 = vpop.f32.mrb[0].mxu0
  %v1390 = vadd.f32 0.0, %v1389
  %v1391 = vpop.f32.mrb[0].mxu0
  %v1392 = vadd.f32 0.0, %v1391
  %1393 = vdwg.mxu0
  %1394 = vmatprep.subr.mxu0 %v1316
  %1395 = vmatpush1.msra.mxu0 %v1315
  %1396 = vmatprep.subr.mxu0 0.0
  %1397 = vmatpush1.msra.mxu0 0.0
  %1398 = vmatprep.subr.mxu0 0.0
  %1399 = vmatpush1.msra.mxu0 0.0
  %1400 = vmatprep.subr.mxu0 0.0
  %1401 = vmatpush1.msra.mxu0 0.0
  %1402 = vmatprep.subr.mxu0 0.0
  %1403 = vmatpush1.msra.mxu0 0.0
  %1404 = vmatprep.subr.mxu0 0.0
  %1405 = vmatpush1.msra.mxu0 0.0
  %1406 = vmatprep.subr.mxu0 0.0
  %1407 = vmatpush1.msra.mxu0 0.0
  %1408 = vmatprep.subr.mxu0 0.0
  %1409 = vmatpush1.msra.mxu0 0.0
  %1410 = vmatprep.subr.mxu0 0.0
  %1411 = vmatpush1.msra.mxu0 0.0
  %1412 = vmatprep.subr.mxu0 0.0
  %1413 = vmatpush1.msra.mxu0 0.0
  %1414 = vmatprep.subr.mxu0 0.0
  %1415 = vmatpush1.msra.mxu0 0.0
  %1416 = vmatprep.subr.mxu0 0.0
  %1417 = vmatpush1.msra.mxu0 0.0
  %1418 = vmatprep.subr.mxu0 0.0
  %1419 = vmatpush1.msra.mxu0 0.0
  %1420 = vmatprep.subr.mxu0 0.0
  %1421 = vmatpush1.msra.mxu0 0.0
  %1422 = vmatprep.subr.mxu0 0.0
  %1423 = vmatpush1.msra.mxu0 0.0
  %1424 = vmatprep.subr.mxu0 0.0
  %1425 = vmatpush1.msra.mxu0 0.0
  %1426 = vmatprep.subr.mxu0 0.0
  %1427 = vmatpush1.msra.mxu0 0.0
  %1428 = vmatprep.subr.mxu0 0.0
  %1429 = vmatpush1.msra.mxu0 0.0
  %1430 = vmatprep.subr.mxu0 0.0
  %1431 = vmatpush1.msra.mxu0 0.0
  %1432 = vmatprep.subr.mxu0 0.0
  %1433 = vmatpush1.msra.mxu0 0.0
  %1434 = vmatprep.subr.mxu0 0.0
  %1435 = vmatpush1.msra.mxu0 0.0
  %1436 = vmatprep.subr.mxu0 0.0
  %1437 = vmatpush1.msra.mxu0 0.0
  %1438 = vmatprep.subr.mxu0 0.0
  %1439 = vmatpush1.msra.mxu0 0.0
  %1440 = vmatprep.subr.mxu0 0.0
  %1441 = vmatpush1.msra.mxu0 0.0
  %1442 = vmatprep.subr.mxu0 0.0
  %1443 = vmatpush1.msra.mxu0 0.0
  %1444 = vmatprep.subr.mxu0 0.0
  %1445 = vmatpush1.msra.mxu0 0.0
  %1446 = vmatprep.subr.mxu0 0.0
  %1447 = vmatpush1.msra.mxu0 0.0
  %1448 = vmatprep.subr.mxu0 0.0
  %1449 = vmatpush1.msra.mxu0 0.0
  %1450 = vmatprep.subr.mxu0 0.0
  %1451 = vmatpush1.msra.mxu0 0.0
  %1452 = vmatprep.subr.mxu0 0.0
  %1453 = vmatpush1.msra.mxu0 0.0
  %1454 = vmatprep.subr.mxu0 0.0
  %1455 = vmatpush1.msra.mxu0 0.0
  %1456 = vmatprep.subr.mxu0 0.0
  %1457 = vmatpush1.msra.mxu0 0.0
  %1458 = vmatprep.mubr.f32.mxu0 0.0
  %1459 = vmatmul.mubr.f32.gmra.mrb[0].mxu0 %v1321
  %v1460 = vpop.f32.mrb[0].mxu0
  %v1461 = vadd.f32 0.0, %v1460
  %v1462 = vpop.f32.mrb[0].mxu0
  %v1463 = vadd.f32 0.0, %v1462
  %1464 = vdwg.mxu0
  %1465 = vmatprep.subr.mxu0 %v1318
  %1466 = vmatpush1.msra.mxu0 %v1317
  %1467 = vmatprep.subr.mxu0 0.0
  %1468 = vmatpush1.msra.mxu0 0.0
  %1469 = vmatprep.subr.mxu0 0.0
  %1470 = vmatpush1.msra.mxu0 0.0
  %1471 = vmatprep.subr.mxu0 0.0
  %1472 = vmatpush1.msra.mxu0 0.0
  %1473 = vmatprep.subr.mxu0 0.0
  %1474 = vmatpush1.msra.mxu0 0.0
  %1475 = vmatprep.subr.mxu0 0.0
  %1476 = vmatpush1.msra.mxu0 0.0
  %1477 = vmatprep.subr.mxu0 0.0
  %1478 = vmatpush1.msra.mxu0 0.0
  %1479 = vmatprep.subr.mxu0 0.0
  %1480 = vmatpush1.msra.mxu0 0.0
  %1481 = vmatprep.subr.mxu0 0.0
  %1482 = vmatpush1.msra.mxu0 0.0
  %1483 = vmatprep.subr.mxu0 0.0
  %1484 = vmatpush1.msra.mxu0 0.0
  %1485 = vmatprep.subr.mxu0 0.0
  %1486 = vmatpush1.msra.mxu0 0.0
  %1487 = vmatprep.subr.mxu0 0.0
  %1488 = vmatpush1.msra.mxu0 0.0
  %1489 = vmatprep.subr.mxu0 0.0
  %1490 = vmatpush1.msra.mxu0 0.0
  %1491 = vmatprep.subr.mxu0 0.0
  %1492 = vmatpush1.msra.mxu0 0.0
  %1493 = vmatprep.subr.mxu0 0.0
  %1494 = vmatpush1.msra.mxu0 0.0
  %1495 = vmatprep.subr.mxu0 0.0
  %1496 = vmatpush1.msra.mxu0 0.0
  %1497 = vmatprep.subr.mxu0 0.0
  %1498 = vmatpush1.msra.mxu0 0.0
  %1499 = vmatprep.subr.mxu0 0.0
  %1500 = vmatpush1.msra.mxu0 0.0
  %1501 = vmatprep.subr.mxu0 0.0
  %1502 = vmatpush1.msra.mxu0 0.0
  %1503 = vmatprep.subr.mxu0 0.0
  %1504 = vmatpush1.msra.mxu0 0.0
  %1505 = vmatprep.subr.mxu0 0.0
  %1506 = vmatpush1.msra.mxu0 0.0
  %1507 = vmatprep.subr.mxu0 0.0
  %1508 = vmatpush1.msra.mxu0 0.0
  %1509 = vmatprep.subr.mxu0 0.0
  %1510 = vmatpush1.msra.mxu0 0.0
  %1511 = vmatprep.subr.mxu0 0.0
  %1512 = vmatpush1.msra.mxu0 0.0
  %1513 = vmatprep.subr.mxu0 0.0
  %1514 = vmatpush1.msra.mxu0 0.0
  %1515 = vmatprep.subr.mxu0 0.0
  %1516 = vmatpush1.msra.mxu0 0.0
  %1517 = vmatprep.subr.mxu0 0.0
  %1518 = vmatpush1.msra.mxu0 0.0
  %1519 = vmatprep.subr.mxu0 0.0
  %1520 = vmatpush1.msra.mxu0 0.0
  %1521 = vmatprep.subr.mxu0 0.0
  %1522 = vmatpush1.msra.mxu0 0.0
  %1523 = vmatprep.subr.mxu0 0.0
  %1524 = vmatpush1.msra.mxu0 0.0
  %1525 = vmatprep.subr.mxu0 0.0
  %1526 = vmatpush1.msra.mxu0 0.0
  %1527 = vmatprep.subr.mxu0 0.0
  %1528 = vmatpush1.msra.mxu0 0.0
  %1529 = vmatprep.mubr.f32.mxu0 0.0
  %1530 = vmatmul.mubr.f32.gmra.mrb[0].mxu0 %v1321
  %v1531 = vpop.f32.mrb[0].mxu0
  %v1532 = vadd.f32 0.0, %v1531
  %v1533 = vpop.f32.mrb[0].mxu0
  %v1534 = vadd.f32 0.0, %v1533
  %1535 = vdwg.mxu0
  %v1536 = vmul.f32 %v1390, 1.25e-05
  %v1537 = vmul.f32 %v1392, 1.25e-05
  %v1538 = vmul.f32 %v1461, 1.25e-05
  %v1539 = vmul.f32 %v1463, 1.25e-05
  %v1540 = vmul.f32 %v1532, 1.25e-05
  %v1541 = vmul.f32 %v1534, 1.25e-05
  %v1542 = vadd.f32 %v1536, 1.0
  %v1543 = vadd.f32 %v1537, 1.0
  %v1544 = vadd.f32 %v1538, 1.0
  %v1545 = vadd.f32 %v1539, 1.0
  %v1546 = vadd.f32 %v1540, 1.0
  %v1547 = vadd.f32 %v1541, 1.0
  %v1548 = vrsqrt.pop %v1542
  %v1549 = vrsqrt.pop %v1543
  %v1550 = vrsqrt.pop %v1544
  %v1551 = vrsqrt.pop %v1545
  %v1552 = vrsqrt.pop %v1546
  %v1553 = vrsqrt.pop %v1547
  %v1554 = vmul.f32 %v1306, %v1548
  %v1555 = vmul.f32 %v1307, %v1549
  %v1556 = vmul.f32 %v1308, %v1550
  %v1557 = vmul.f32 %v1309, %v1551
  %v1558 = vmul.f32 %v1310, %v1552
  %v1559 = vmul.f32 %v1311, %v1553
  %v1560 = vrsqrt.pop %v1548
  %v1561 = vmul.f32 %v1548, %v1560
  %vm1562 = vcmp.eq.f32.partialorder %v1548, inf
  %v1563 = vsel %vm1562, %v1548, %v1561
  %vm1564 = vcmp.eq.f32.partialorder %v1548, 0.0
  %v1565 = vand.u32 %v1548, 2147483648
  %v1566 = vsel %vm1564, %v1565, %v1563
  %v1567 = vrsqrt.pop %v1549
  %v1568 = vmul.f32 %v1549, %v1567
  %vm1569 = vcmp.eq.f32.partialorder %v1549, inf
  %v1570 = vsel %vm1569, %v1549, %v1568
  %vm1571 = vcmp.eq.f32.partialorder %v1549, 0.0
  %v1572 = vand.u32 %v1549, 2147483648
  %v1573 = vsel %vm1571, %v1572, %v1570
  %v1574 = vrsqrt.pop %v1550
  %v1575 = vmul.f32 %v1550, %v1574
  %vm1576 = vcmp.eq.f32.partialorder %v1550, inf
  %v1577 = vsel %vm1576, %v1550, %v1575
  %vm1578 = vcmp.eq.f32.partialorder %v1550, 0.0
  %v1579 = vand.u32 %v1550, 2147483648
  %v1580 = vsel %vm1578, %v1579, %v1577
  %v1581 = vrsqrt.pop %v1551
  %v1582 = vmul.f32 %v1551, %v1581
  %vm1583 = vcmp.eq.f32.partialorder %v1551, inf
  %v1584 = vsel %vm1583, %v1551, %v1582
  %vm1585 = vcmp.eq.f32.partialorder %v1551, 0.0
  %v1586 = vand.u32 %v1551, 2147483648
  %v1587 = vsel %vm1585, %v1586, %v1584
  %v1588 = vrsqrt.pop %v1552
  %v1589 = vmul.f32 %v1552, %v1588
  %vm1590 = vcmp.eq.f32.partialorder %v1552, inf
  %v1591 = vsel %vm1590, %v1552, %v1589
  %vm1592 = vcmp.eq.f32.partialorder %v1552, 0.0
  %v1593 = vand.u32 %v1552, 2147483648
  %v1594 = vsel %vm1592, %v1593, %v1591
  %v1595 = vrsqrt.pop %v1553
  %v1596 = vmul.f32 %v1553, %v1595
  %vm1597 = vcmp.eq.f32.partialorder %v1553, inf
  %v1598 = vsel %vm1597, %v1553, %v1596
  %vm1599 = vcmp.eq.f32.partialorder %v1553, 0.0
  %v1600 = vand.u32 %v1553, 2147483648
  %v1601 = vsel %vm1599, %v1600, %v1598
  %v1602 = vmul.f32 %v1554, %v1566
  %v1603 = vmul.f32 %v1555, %v1573
  %v1604 = vmul.f32 %v1556, %v1580
  %v1605 = vmul.f32 %v1557, %v1587
  %v1606 = vmul.f32 %v1558, %v1594
  %v1607 = vmul.f32 %v1559, %v1601
  %v1608 = vld [vmem:[%s12] sm:$0xff]
  %v1609 = vld [vmem:[%s12 + $0x8] sm:$0xff]
  %v1610 = vld [vmem:[%s12 + $0x10] sm:$0xff]
  %v1611 = vld [vmem:[%s12 + $0x18] sm:$0xff]
  %v1612 = vld [vmem:[%s12 + $0x20] sm:$0xff]
  %v1613 = vld [vmem:[%s12 + $0x28] sm:$0xff]
  %v1614 = vld [vmem:[%s12 + $0x30] sm:$0xff]
  %v1615 = vld [vmem:[%s12 + $0x38] sm:$0xff]
  %v1616 = vld [vmem:[%s12 + $0x40] sm:$0xff]
  %v1617 = vld [vmem:[%s12 + $0x48] sm:$0xff]
  %v1618 = vld [vmem:[%s12 + $0x50] sm:$0xff]
  %v1619 = vld [vmem:[%s12 + $0x58] sm:$0xff]
  %v1620 = vld [vmem:[%s12 + $0x60] sm:$0xff]
  %v1621 = vld [vmem:[%s12 + $0x68] sm:$0xff]
  %v1622 = vld [vmem:[%s12 + $0x70] sm:$0xff]
  %v1623 = vld [vmem:[%s12 + $0x78] sm:$0xff]
  %v1624 = vld [vmem:[%s12 + $0x80] sm:$0xff]
  %v1625 = vld [vmem:[%s12 + $0x88] sm:$0xff]
  %v1626 = vld [vmem:[%s12 + $0x90] sm:$0xff]
  %v1627 = vld [vmem:[%s12 + $0x98] sm:$0xff]
  %v1628 = vld [vmem:[%s12 + $0xa0] sm:$0xff]
  %v1629 = vld [vmem:[%s12 + $0xa8] sm:$0xff]
  %v1630 = vld [vmem:[%s12 + $0xb0] sm:$0xff]
  %v1631 = vld [vmem:[%s12 + $0xb8] sm:$0xff]
  %v1632 = vld [vmem:[%s13] sm:$0xff]
  %v1633 = vmul.f32 %v1608, %v1602
  %v1634 = vmul.f32 %v1609, %v1603
  %v1635 = vmul.f32 %v1610, %v1604
  %v1636 = vmul.f32 %v1611, %v1602
  %v1637 = vmul.f32 %v1612, %v1603
  %v1638 = vmul.f32 %v1613, %v1604
  %v1639 = vmul.f32 %v1614, %v1602
  %v1640 = vmul.f32 %v1615, %v1603
  %v1641 = vmul.f32 %v1616, %v1604
  %v1642 = vmul.f32 %v1617, %v1602
  %v1643 = vmul.f32 %v1618, %v1603
  %v1644 = vmul.f32 %v1619, %v1604
  %v1645 = vmul.f32 %v1620, %v1602
  %v1646 = vmul.f32 %v1621, %v1603
  %v1647 = vmul.f32 %v1622, %v1604
  %v1648 = vmul.f32 %v1623, %v1602
  %v1649 = vmul.f32 %v1624, %v1603
  %v1650 = vmul.f32 %v1625, %v1604
  %v1651 = vmul.f32 %v1626, %v1602
  %v1652 = vmul.f32 %v1627, %v1603
  %v1653 = vmul.f32 %v1628, %v1604
  %v1654 = vmul.f32 %v1629, %v1602
  %v1655 = vmul.f32 %v1630, %v1603
  %v1656 = vmul.f32 %v1631, %v1604
  %v1657 = vadd.f32 %v1633, %v1634
  %v1658 = vadd.f32 %v1657, %v1635
  %1659 = vadd.xlane.f32.xlu0 %v1658
  %v1660 = vpop.xlane.xlu0 %1659
  %v1661 = vadd.f32 %v1636, %v1637
  %v1662 = vadd.f32 %v1661, %v1638
  %1663 = vadd.xlane.f32.xlu0 %v1662
  %v1664 = vpop.xlane.xlu0 %1663
  %v1665 = vadd.f32 %v1639, %v1640
  %v1666 = vadd.f32 %v1665, %v1641
  %1667 = vadd.xlane.f32.xlu0 %v1666
  %v1668 = vpop.xlane.xlu0 %1667
  %v1669 = vadd.f32 %v1642, %v1643
  %v1670 = vadd.f32 %v1669, %v1644
  %1671 = vadd.xlane.f32.xlu0 %v1670
  %v1672 = vpop.xlane.xlu0 %1671
  %v1673 = vadd.f32 %v1645, %v1646
  %v1674 = vadd.f32 %v1673, %v1647
  %1675 = vadd.xlane.f32.xlu0 %v1674
  %v1676 = vpop.xlane.xlu0 %1675
  %v1677 = vadd.f32 %v1648, %v1649
  %v1678 = vadd.f32 %v1677, %v1650
  %1679 = vadd.xlane.f32.xlu0 %v1678
  %v1680 = vpop.xlane.xlu0 %1679
  %v1681 = vadd.f32 %v1651, %v1652
  %v1682 = vadd.f32 %v1681, %v1653
  %1683 = vadd.xlane.f32.xlu0 %v1682
  %v1684 = vpop.xlane.xlu0 %1683
  %v1685 = vadd.f32 %v1654, %v1655
  %v1686 = vadd.f32 %v1685, %v1656
  %1687 = vadd.xlane.f32.xlu0 %v1686
  %v1688 = vpop.xlane.xlu0 %1687
  %v1697 = vlaneseq
  %v1698 = vand.u32 %v1697, 127
  %v1699 = vlaneseq
  %v1700 = vshrl.u32 %v1699, 7
  %v1701 = vsub.s32 %v1698, %v1700
  %v1702 = vrot.slane %v1660, %v1701
  %v1703 = vlaneseq
  %v1704 = vshrl.u32 %v1703, 7
  %v1705 = vsub.s32 %v1698, %v1704
  %v1706 = vrot.slane %v1664, %v1705
  %v1707 = vlaneseq
  %v1708 = vshrl.u32 %v1707, 7
  %v1709 = vsub.s32 %v1698, %v1708
  %v1710 = vrot.slane %v1668, %v1709
  %v1711 = vlaneseq
  %v1712 = vshrl.u32 %v1711, 7
  %v1713 = vsub.s32 %v1698, %v1712
  %v1714 = vrot.slane %v1672, %v1713
  %v1715 = vlaneseq
  %v1716 = vshrl.u32 %v1715, 7
  %v1717 = vsub.s32 %v1698, %v1716
  %v1718 = vrot.slane %v1676, %v1717
  %v1719 = vlaneseq
  %v1720 = vshrl.u32 %v1719, 7
  %v1721 = vsub.s32 %v1698, %v1720
  %v1722 = vrot.slane %v1680, %v1721
  %v1723 = vlaneseq
  %v1724 = vshrl.u32 %v1723, 7
  %v1725 = vsub.s32 %v1698, %v1724
  %v1726 = vrot.slane %v1684, %v1725
  %v1727 = vlaneseq
  %v1728 = vshrl.u32 %v1727, 7
  %v1729 = vsub.s32 %v1698, %v1728
  %v1730 = vrot.slane %v1688, %v1729
  %vm1731 = vcmask 1041409
  %v1732 = vsel %vm1731, %v1706, %v1702
  %vm1733 = vcmask 1042434
  %v1734 = vsel %vm1733, %v1710, %v1732
  %vm1735 = vcmask 1043459
  %v1736 = vsel %vm1735, %v1714, %v1734
  %vm1737 = vcmask 1044484
  %v1738 = vsel %vm1737, %v1718, %v1736
  %vm1739 = vcmask 1045509
  %v1740 = vsel %vm1739, %v1722, %v1738
  %vm1741 = vcmask 1046534
  %v1742 = vsel %vm1741, %v1726, %v1740
  %vm1743 = vcmask 1047559
  %v1744 = vsel %vm1743, %v1730, %v1742
  %v1746 = vsel %vm1319, %v1744, 0.0
  %1747 = vadd.xlane.f32.xlu0 %v1746
  %v1748 = vpop.xlane.xlu0 %1747
  %v1749 = vadd.f32 %v1748, %v1632
  %vm1750 = vcmask 7168
  %1751 = vst.msk [vmem:[%s14] sm:$0xff] %vm1750, %v1749
  %v1752 = vmul.f32 %v1608, %v1605
  %v1753 = vmul.f32 %v1609, %v1606
  %v1754 = vmul.f32 %v1610, %v1607
  %v1755 = vmul.f32 %v1611, %v1605
  %v1756 = vmul.f32 %v1612, %v1606
  %v1757 = vmul.f32 %v1613, %v1607
  %v1758 = vmul.f32 %v1614, %v1605
  %v1759 = vmul.f32 %v1615, %v1606
  %v1760 = vmul.f32 %v1616, %v1607
  %v1761 = vmul.f32 %v1617, %v1605
  %v1762 = vmul.f32 %v1618, %v1606
  %v1763 = vmul.f32 %v1619, %v1607
  %v1764 = vmul.f32 %v1620, %v1605
  %v1765 = vmul.f32 %v1621, %v1606
  %v1766 = vmul.f32 %v1622, %v1607
  %v1767 = vmul.f32 %v1623, %v1605
  %v1768 = vmul.f32 %v1624, %v1606
  %v1769 = vmul.f32 %v1625, %v1607
  %v1770 = vmul.f32 %v1626, %v1605
  %v1771 = vmul.f32 %v1627, %v1606
  %v1772 = vmul.f32 %v1628, %v1607
  %v1773 = vmul.f32 %v1629, %v1605
  %v1774 = vmul.f32 %v1630, %v1606
  %v1775 = vmul.f32 %v1631, %v1607
  %v1776 = vadd.f32 %v1752, %v1753
  %v1777 = vadd.f32 %v1776, %v1754
  %1778 = vadd.xlane.f32.xlu0 %v1777
  %v1779 = vpop.xlane.xlu0 %1778
  %v1780 = vadd.f32 %v1755, %v1756
  %v1781 = vadd.f32 %v1780, %v1757
  %1782 = vadd.xlane.f32.xlu0 %v1781
  %v1783 = vpop.xlane.xlu0 %1782
  %v1784 = vadd.f32 %v1758, %v1759
  %v1785 = vadd.f32 %v1784, %v1760
  %1786 = vadd.xlane.f32.xlu0 %v1785
  %v1787 = vpop.xlane.xlu0 %1786
  %v1788 = vadd.f32 %v1761, %v1762
  %v1789 = vadd.f32 %v1788, %v1763
  %1790 = vadd.xlane.f32.xlu0 %v1789
  %v1791 = vpop.xlane.xlu0 %1790
  %v1792 = vadd.f32 %v1764, %v1765
  %v1793 = vadd.f32 %v1792, %v1766
  %1794 = vadd.xlane.f32.xlu0 %v1793
  %v1795 = vpop.xlane.xlu0 %1794
  %v1796 = vadd.f32 %v1767, %v1768
  %v1797 = vadd.f32 %v1796, %v1769
  %1798 = vadd.xlane.f32.xlu0 %v1797
  %v1799 = vpop.xlane.xlu0 %1798
  %v1800 = vadd.f32 %v1770, %v1771
  %v1801 = vadd.f32 %v1800, %v1772
  %1802 = vadd.xlane.f32.xlu0 %v1801
  %v1803 = vpop.xlane.xlu0 %1802
  %v1804 = vadd.f32 %v1773, %v1774
  %v1805 = vadd.f32 %v1804, %v1775
  %1806 = vadd.xlane.f32.xlu0 %v1805
  %v1807 = vpop.xlane.xlu0 %1806
  %v1816 = vlaneseq
  %v1817 = vshrl.u32 %v1816, 7
  %v1818 = vsub.s32 %v1698, %v1817
  %v1819 = vrot.slane %v1779, %v1818
  %v1820 = vlaneseq
  %v1821 = vshrl.u32 %v1820, 7
  %v1822 = vsub.s32 %v1698, %v1821
  %v1823 = vrot.slane %v1783, %v1822
  %v1824 = vlaneseq
  %v1825 = vshrl.u32 %v1824, 7
  %v1826 = vsub.s32 %v1698, %v1825
  %v1827 = vrot.slane %v1787, %v1826
  %v1828 = vlaneseq
  %v1829 = vshrl.u32 %v1828, 7
  %v1830 = vsub.s32 %v1698, %v1829
  %v1831 = vrot.slane %v1791, %v1830
  %v1832 = vlaneseq
  %v1833 = vshrl.u32 %v1832, 7
  %v1834 = vsub.s32 %v1698, %v1833
  %v1835 = vrot.slane %v1795, %v1834
  %v1836 = vlaneseq
  %v1837 = vshrl.u32 %v1836, 7
  %v1838 = vsub.s32 %v1698, %v1837
  %v1839 = vrot.slane %v1799, %v1838
  %v1840 = vlaneseq
  %v1841 = vshrl.u32 %v1840, 7
  %v1842 = vsub.s32 %v1698, %v1841
  %v1843 = vrot.slane %v1803, %v1842
  %v1844 = vlaneseq
  %v1845 = vshrl.u32 %v1844, 7
  %v1846 = vsub.s32 %v1698, %v1845
  %v1847 = vrot.slane %v1807, %v1846
  %v1848 = vsel %vm1731, %v1823, %v1819
  %v1849 = vsel %vm1733, %v1827, %v1848
  %v1850 = vsel %vm1735, %v1831, %v1849
  %v1851 = vsel %vm1737, %v1835, %v1850
  %v1852 = vsel %vm1739, %v1839, %v1851
  %v1853 = vsel %vm1741, %v1843, %v1852
  %v1854 = vsel %vm1743, %v1847, %v1853
  %v1856 = vsel %vm1319, %v1854, 0.0
  %1857 = vadd.xlane.f32.xlu0 %v1856
  %v1858 = vpop.xlane.xlu0 %1857
  %v1859 = vadd.f32 %v1858, %v1632
  %1861 = vrot.lane.b32.xlu0 %v1859, 1
  %v1862 = vpop.permute.xlu0 %1861
  %vm1864 = vcmask 15368
  %1865 = vst.msk [vmem:[%s14] sm:$0xff] %vm1864, %v1862
  // Predicated region
  $region58: #{spatial_transformer_forward.2} parent=0 // pred_check
    _
  $region59: #{spatial_transformer_forward.2} parent=0 // pred_check_branch
    %1867 = sbr.rel (0) target = $region61
  $region60: #{spatial_transformer_forward.2} parent=0 // pred_region
    _
  $region61: #{spatial_transformer_forward.2} parent=0 // pred_fallthru
    _
  // Predicated region
  $region62: #{spatial_transformer_forward.2} parent=0 // pred_check
    _
  $region63: #{spatial_transformer_forward.2} parent=0 // pred_check_branch
    %1869 = sbr.rel (0) target = $region65
  $region64: #{spatial_transformer_forward.2} parent=0 // pred_region
    _
  $region65: #{spatial_transformer_forward.2} parent=0 // pred_fallthru
    _

</llo_original>
